<compile_context>
chip_gen: v6e
topology: v6e:2x2x1
jax: 0.10.0
libtpu: 0.0.40
codegen_flags: <defaults>
</compile_context>

<pallas_src>
import jax
import jax.numpy as jnp
from jax.experimental import pallas as pl
from jax.experimental.pallas import tpu as pltpu


def lstm_kernel(*refs):
    """Single-invocation multi-layer LSTM recurrence (no grid over time).

    Ref order (inputs..., outputs..., scratch):
      x_ref       : (T*Bp, Hp)      bf16  embedded input, time-major rows
      len_ref     : (Bp, 1)         int32 sequence lengths (padded rows are 0)
      w_ih0_ref   : (Hp, 4Hp)       bf16  layer-0 input weights   (gate order i, f, o, g)
      w_hh0_ref   : (Hp, 4Hp)       bf16  layer-0 recurrent weights
      b0_ref      : (1, 4Hp)        f32   layer-0 combined bias
      [w_ih_r_ref : (L-1, Hp, 4Hp)  bf16  input weights, layers >= 1   (only if L > 1)]
      [w_hh_r_ref : (L-1, Hp, 4Hp)  bf16  recurrent weights, layers >= 1]
      [b_r_ref    : (L-1, 1, 4Hp)   f32   combined bias, layers >= 1]
      h_ref       : (L, Bp, Hp)     f32   output hidden state
      c_ref       : (L, Bp, Hp)     f32   output cell state
      xg_ref      : (T, Bp, 4Hp)    f32   VMEM scratch: precomputed layer-0 input gates
    """
    h_ref, c_ref, xg_ref = refs[-3], refs[-2], refs[-1]
    L, Bp, Hp = h_ref.shape
    T = xg_ref.shape[0]
    G = 4 * Hp

    if L > 1:
        (x_ref, len_ref, w_ih0_ref, w_hh0_ref, b0_ref,
         w_ih_r_ref, w_hh_r_ref, b_r_ref) = refs[:-3]
    else:
        (x_ref, len_ref, w_ih0_ref, w_hh0_ref, b0_ref) = refs[:-3]
        w_ih_r_ref = w_hh_r_ref = b_r_ref = None

    # ---- hoisted layer-0 input projection: one big MXU matmul over all timesteps ----
    xg = jnp.dot(x_ref[...], w_ih0_ref[...],
                 preferred_element_type=jnp.float32) + b0_ref[...]
    xg_ref[...] = xg.reshape(T, Bp, G)

    # ---- loop-invariant loads hoisted out of the unrolled body ----
    lens = len_ref[...]                                    # (Bp, 1) int32
    b_rest = [b_r_ref[l] for l in range(L - 1)]            # each (1, G) f32

    def gates_to_state(gates, c_prev):
        # Gate column order is [i, f, o, g]: one wide sigmoid covers the first 3 blocks.
        sig = jax.nn.sigmoid(gates[:, 0:3 * Hp])
        i_g = sig[:, 0 * Hp:1 * Hp]
        f_g = sig[:, 1 * Hp:2 * Hp]
        o_g = sig[:, 2 * Hp:3 * Hp]
        g_g = jnp.tanh(gates[:, 3 * Hp:4 * Hp])
        c_new = f_g * c_prev + i_g * g_g
        h_new = o_g * jnp.tanh(c_new)
        return h_new, c_new

    def step(t, carry):
        hs, cs = carry
        # pack_padded_sequence semantics: padded steps do not advance the state.
        # One broadcast per step, reused by all 2*L selects.
        valid = jnp.broadcast_to(t < lens, (Bp, Hp))

        # -------- layer 0: input gates precomputed, one recurrent matmul --------
        gates0 = xg_ref[t] + jnp.dot(hs[0].astype(jnp.bfloat16), w_hh0_ref[...],
                                     preferred_element_type=jnp.float32)
        h_new, c_new = gates_to_state(gates0, cs[0])
        h_l = jnp.where(valid, h_new, hs[0])
        c_l = jnp.where(valid, c_new, cs[0])
        new_h = [h_l]
        new_c = [c_l]
        x_l = h_l

        # -------- layers >= 1: two K=Hp matmuls accumulated in f32 (no concat) --------
        for l in range(1, L):                              # static unroll, small L
            gates = (jnp.dot(x_l.astype(jnp.bfloat16), w_ih_r_ref[l - 1],
                             preferred_element_type=jnp.float32)
                     + jnp.dot(hs[l].astype(jnp.bfloat16), w_hh_r_ref[l - 1],
                               preferred_element_type=jnp.float32)
                     + b_rest[l - 1])
            h_new, c_new = gates_to_state(gates, cs[l])
            h_l = jnp.where(valid, h_new, hs[l])
            c_l = jnp.where(valid, c_new, cs[l])
            new_h.append(h_l)
            new_c.append(c_l)
            x_l = h_l
        return tuple(new_h), tuple(new_c)

    # ---- state lives in vregs for the whole recurrence ----
    zero = jnp.zeros((Bp, Hp), jnp.float32)
    init = (tuple(zero for _ in range(L)), tuple(zero for _ in range(L)))
    # Full unroll only for short T; partial unroll bounds vreg live ranges otherwise.
    unroll = True if T <= 16 else 8
    h_fin, c_fin = jax.lax.fori_loop(0, T, step, init, unroll=unroll)

    # ---- outputs written exactly once ----
    for l in range(L):
        h_ref[l] = h_fin[l]
        c_ref[l] = c_fin[l]


def _round_up(x, m):
    return ((x + m - 1) // m) * m


# Kernel-internal gate column order is [i, f, o, g]; parameter order is [i, f, g, o].
_KERNEL_GATE_ORDER = (0, 1, 3, 2)


def encoder_lstm_forward(input_sequences, input_lengths, params):
    """Mirrors EncoderLSTM.forward: returns (hidden, cell), each (L, B, H)."""
    emb = params["embedding"]                  # (V, H), padding row zeroed
    w_ih = params["w_ih"]                      # (L, H, 4H)   gate order i, f, g, o
    w_hh = params["w_hh"]                      # (L, H, 4H)
    b = params["b"]                            # (L, 1, 4H)   combined bias (b_ih + b_hh)

    B, T = input_sequences.shape
    L, H, _ = w_ih.shape
    Bp = 8 if B <= 8 else _round_up(B, 16)     # bf16 packs 16 rows/vreg once B grows
    Hp = _round_up(H, 128)                     # lane-dense hidden / gate blocks
    G = 4 * Hp

    # ---- batch padding: padded rows get length 0, so their state stays zero ----
    seq_p = jnp.zeros((Bp, T), input_sequences.dtype).at[:B, :].set(input_sequences)
    len_p = jnp.zeros((Bp, 1), jnp.int32).at[:B, 0].set(input_lengths.astype(jnp.int32))

    # ---- bf16 embedding table; gather produces time-major MXU-ready activations ----
    emb_p = jnp.zeros((emb.shape[0], Hp), jnp.bfloat16).at[:, :H].set(
        emb.astype(jnp.bfloat16))
    x_tbh = jnp.take(emb_p, seq_p.T, axis=0)                       # (T, Bp, Hp) bf16
    x2d = x_tbh.reshape(T * Bp, Hp)

    # ---- lane-aligned, gate-reordered weight padding ----
    def pad_gate_cols(w):                      # (..., 4H) -> (..., 4Hp), order i,f,o,g
        out = jnp.zeros(w.shape[:-1] + (G,), w.dtype)
        for slot, g in enumerate(_KERNEL_GATE_ORDER):
            out = out.at[..., slot * Hp:slot * Hp + H].set(w[..., g * H:(g + 1) * H])
        return out

    def pad_in_rows(w):                        # (L, H, 4Hp) -> (L, Hp, 4Hp)
        out = jnp.zeros(w.shape[:-2] + (Hp, w.shape[-1]), w.dtype)
        return out.at[..., :H, :].set(w)

    w_ih_p = pad_in_rows(pad_gate_cols(w_ih)).astype(jnp.bfloat16)  # (L, Hp, G)
    w_hh_p = pad_in_rows(pad_gate_cols(w_hh)).astype(jnp.bfloat16)  # (L, Hp, G)
    b_p = pad_gate_cols(b)                                          # (L, 1, G) f32

    operands = [x2d, len_p, w_ih_p[0], w_hh_p[0], b_p[0]]
    if L > 1:                                  # no dummy operands when L == 1
        operands += [w_ih_p[1:], w_hh_p[1:], b_p[1:]]

    vmem_spec = pl.BlockSpec(memory_space=pltpu.MemorySpace.VMEM)

    # Explicit VMEM budget: everything resident once (no grid => no double buffering).
    resident = sum(int(o.size) * o.dtype.itemsize for o in operands)
    resident += 2 * L * Bp * Hp * 4            # outputs
    resident += T * Bp * G * 4                 # xg scratch
    vmem_limit = int(min(max(2 * resident, 16 * (1 << 20)), 48 * (1 << 20)))

    hidden, cell = pl.pallas_call(
        lstm_kernel,
        out_shape=(jax.ShapeDtypeStruct((L, Bp, Hp), jnp.float32),
                   jax.ShapeDtypeStruct((L, Bp, Hp), jnp.float32)),
        in_specs=[vmem_spec for _ in operands],
        out_specs=(vmem_spec, vmem_spec),
        scratch_shapes=[pltpu.VMEM((T, Bp, G), jnp.float32)],
        compiler_params=pltpu.CompilerParams(vmem_limit_bytes=vmem_limit),
    )(*operands)

    return hidden[:, :B, :H], cell[:, :B, :H]


def reference_forward(input_sequences, input_lengths, params):
    """Pure-JAX reference with identical masking and matmul-input precision (bf16)."""
    q = lambda a: a.astype(jnp.bfloat16).astype(jnp.float32)
    emb = params["embedding"]
    w_ih, w_hh, b = params["w_ih"], params["w_hh"], params["b"]
    B, T = input_sequences.shape
    L, H, _ = w_ih.shape
    x_bth = q(jnp.take(emb, input_sequences, axis=0).astype(jnp.float32))
    w_ih_q, w_hh_q = q(w_ih), q(w_hh)

    h = jnp.zeros((L, B, H), jnp.float32)
    c = jnp.zeros((L, B, H), jnp.float32)
    for t in range(T):
        valid = (t < input_lengths)[:, None]
        x = x_bth[:, t, :]
        h_list, c_list = [], []
        for l in range(L):
            gates = q(x) @ w_ih_q[l] + q(h[l]) @ w_hh_q[l] + b[l]
            i_g = jax.nn.sigmoid(gates[:, 0 * H:1 * H])
            f_g = jax.nn.sigmoid(gates[:, 1 * H:2 * H])
            g_g = jnp.tanh(gates[:, 2 * H:3 * H])
            o_g = jax.nn.sigmoid(gates[:, 3 * H:4 * H])
            c_new = f_g * c[l] + i_g * g_g
            h_new = o_g * jnp.tanh(c_new)
            h_upd = jnp.where(valid, h_new, h[l])
            c_upd = jnp.where(valid, c_new, c[l])
            h_list.append(h_upd)
            c_list.append(c_upd)
            x = h_upd
        h = jnp.stack(h_list)
        c = jnp.stack(c_list)
    return h, c


def init_params(key, vocab_size, hidden_size, num_layers, pad_idx):
    ks = jax.random.split(key, 4)
    scale = 1.0 / jnp.sqrt(hidden_size)
    emb = jax.random.normal(ks[0], (vocab_size, hidden_size), jnp.float32)
    emb = emb.at[pad_idx].set(0.0)             # nn.Embedding padding_idx row is zero
    w_ih = jax.random.uniform(ks[1], (num_layers, hidden_size, 4 * hidden_size),
                              jnp.float32, -scale, scale)
    w_hh = jax.random.uniform(ks[2], (num_layers, hidden_size, 4 * hidden_size),
                              jnp.float32, -scale, scale)
    # Combined bias = b_ih + b_hh (a real checkpoint would sum the two bias vectors).
    b = jax.random.uniform(ks[3], (num_layers, 1, 4 * hidden_size),
                           jnp.float32, -2 * scale, 2 * scale)
    return {"embedding": emb, "w_ih": w_ih, "w_hh": w_hh, "b": b}


if __name__ == "__main__":
    VOCAB = 50        # input_size
    HIDDEN = 32       # hidden_size
    LAYERS = 2        # config.SEQ2SEQ_ENCODER_LAYER_COUNT
    PAD_IDX = 0       # InputLang.pad_char_i
    B, T = 2, 8

    key = jax.random.PRNGKey(0)
    k_param, k_seq = jax.random.split(key)
    params = init_params(k_param, VOCAB, HIDDEN, LAYERS, PAD_IDX)

    lengths = jnp.array([8, 5], dtype=jnp.int32)
    seqs = jax.random.randint(k_seq, (B, T), 1, VOCAB, dtype=jnp.int32)
    pos = jnp.arange(T)[None, :]
    seqs = jnp.where(pos < lengths[:, None], seqs, PAD_IDX)   # pad tail with pad_char

    hidden, cell = encoder_lstm_forward(seqs, lengths, params)
    jax.block_until_ready((hidden, cell))

    h_ref, c_ref = reference_forward(seqs, lengths, params)
    assert hidden.shape == (LAYERS, B, HIDDEN) and cell.shape == (LAYERS, B, HIDDEN)
    assert jnp.allclose(hidden, h_ref, atol=5e-3, rtol=1e-3), "hidden mismatch"
    assert jnp.allclose(cell, c_ref, atol=5e-3, rtol=1e-3), "cell mismatch"

    print("KERNEL_OK")
</pallas_src>

<mosaic_0001>
module attributes {stable_mosaic.version = 11 : i64} {
  func.func @lstm_kernel(%arg0: memref<64x128xbf16, #tpu.memory_space<vmem>>, %arg1: memref<8x1xi32, #tpu.memory_space<vmem>>, %arg2: memref<128x512xbf16, #tpu.memory_space<vmem>>, %arg3: memref<128x512xbf16, #tpu.memory_space<vmem>>, %arg4: memref<1x512xf32, #tpu.memory_space<vmem>>, %arg5: memref<1x128x512xbf16, #tpu.memory_space<vmem>>, %arg6: memref<1x128x512xbf16, #tpu.memory_space<vmem>>, %arg7: memref<1x1x512xf32, #tpu.memory_space<vmem>>, %arg8: memref<2x8x128xf32, #tpu.memory_space<vmem>>, %arg9: memref<2x8x128xf32, #tpu.memory_space<vmem>>, %arg10: memref<8x8x512xf32, #tpu.memory_space<vmem>>) attributes {dimension_semantics = [], scalar_prefetch = 0 : i64, scratch_operands = 1 : i64, tpu.core_type = #tpu.core_type<tc>} {
    %c0 = arith.constant 0 : index
    %c0_0 = arith.constant 0 : index
    %0 = vector.load %arg0[%c0, %c0_0] : memref<64x128xbf16, #tpu.memory_space<vmem>>, vector<64x128xbf16>
    %c0_1 = arith.constant 0 : index
    %c0_2 = arith.constant 0 : index
    %1 = vector.load %arg2[%c0_1, %c0_2] : memref<128x512xbf16, #tpu.memory_space<vmem>>, vector<128x512xbf16>
    %cst = arith.constant dense<0.000000e+00> : vector<64x512xf32>
    %2 = tpu.matmul %0, %1, %cst {dimension_numbers = #tpu.dot_dimension_numbers<[1], [0], [0], [1], [0, 0, 1, 1], [], []>} : vector<64x128xbf16>, vector<128x512xbf16>, vector<64x512xf32> -> vector<64x512xf32>
    %c0_3 = arith.constant 0 : index
    %c0_4 = arith.constant 0 : index
    %3 = vector.load %arg4[%c0_3, %c0_4] : memref<1x512xf32, #tpu.memory_space<vmem>>, vector<1x512xf32>
    %4 = vector.broadcast %3 : vector<1x512xf32> to vector<64x512xf32>
    %5 = arith.addf %2, %4 : vector<64x512xf32>
    %6 = vector.shape_cast %5 : vector<64x512xf32> to vector<8x8x512xf32>
    %c0_5 = arith.constant 0 : index
    %c0_6 = arith.constant 0 : index
    %c0_7 = arith.constant 0 : index
    %7 = vector.load %arg10[%c0_5, %c0_6, %c0_7] : memref<8x8x512xf32, #tpu.memory_space<vmem>>, vector<8x8x512xf32>
    tpu.vector_store %arg10[%c0_5, %c0_6, %c0_7], %6 {strides = array<i32>} : memref<8x8x512xf32, #tpu.memory_space<vmem>>, vector<8x8x512xf32>,
    %c0_8 = arith.constant 0 : index
    %c0_9 = arith.constant 0 : index
    %8 = vector.load %arg1[%c0_8, %c0_9] : memref<8x1xi32, #tpu.memory_space<vmem>>, vector<8x1xi32>
    %c0_10 = arith.constant 0 : index
    %c0_11 = arith.constant 0 : index
    %c0_12 = arith.constant 0 : index
    %9 = vector.load %arg7[%c0_10, %c0_11, %c0_12] : memref<1x1x512xf32, #tpu.memory_space<vmem>>, vector<1x1x512xf32>
    %10 = vector.shape_cast %9 : vector<1x1x512xf32> to vector<1x512xf32>
    %cst_13 = arith.constant 0.000000e+00 : f32
    %11 = vector.broadcast %cst_13 : f32 to vector<8x128xf32>
    %c0_i32 = arith.constant 0 : i32
    %12 = vector.broadcast %c0_i32 : i32 to vector<8x1xi32>
    %13 = arith.cmpi slt, %12, %8 : vector<8x1xi32>
    %14 = vector.shape_cast %13 : vector<8x1xi1> to vector<8x1xi1>
    %15 = vector.broadcast %14 : vector<8x1xi1> to vector<8x128xi1>
    %16 = arith.index_cast %c0_i32 : i32 to index
    %c0_14 = arith.constant 0 : index
    %c0_15 = arith.constant 0 : index
    %17 = vector.load %arg10[%16, %c0_14, %c0_15] : memref<8x8x512xf32, #tpu.memory_space<vmem>>, vector<1x8x512xf32>
    %18 = vector.shape_cast %17 : vector<1x8x512xf32> to vector<8x512xf32>
    %19 = arith.truncf %11 : vector<8x128xf32> to vector<8x128xbf16>
    %c0_16 = arith.constant 0 : index
    %c0_17 = arith.constant 0 : index
    %20 = vector.load %arg3[%c0_16, %c0_17] : memref<128x512xbf16, #tpu.memory_space<vmem>>, vector<128x512xbf16>
    %cst_18 = arith.constant dense<0.000000e+00> : vector<8x512xf32>
    %21 = tpu.matmul %19, %20, %cst_18 {dimension_numbers = #tpu.dot_dimension_numbers<[1], [0], [0], [1], [0, 0, 1, 1], [], []>} : vector<8x128xbf16>, vector<128x512xbf16>, vector<8x512xf32> -> vector<8x512xf32>
    %22 = arith.addf %18, %21 : vector<8x512xf32>
    %23 = vector.extract_strided_slice %22 {offsets = [0, 0], sizes = [8, 384], strides = [1, 1]} : vector<8x512xf32> to vector<8x384xf32>
    %24 = arith.negf %23 : vector<8x384xf32>
    %25 = math.exp %24 : vector<8x384xf32>
    %cst_19 = arith.constant 1.000000e+00 : f32
    %26 = vector.broadcast %cst_19 : f32 to vector<8x384xf32>
    %27 = arith.addf %26, %25 : vector<8x384xf32>
    %28 = arith.divf %26, %27 : vector<8x384xf32>
    %29 = vector.extract_strided_slice %28 {offsets = [0, 0], sizes = [8, 128], strides = [1, 1]} : vector<8x384xf32> to vector<8x128xf32>
    %30 = vector.extract_strided_slice %28 {offsets = [0, 128], sizes = [8, 128], strides = [1, 1]} : vector<8x384xf32> to vector<8x128xf32>
    %31 = vector.extract_strided_slice %28 {offsets = [0, 256], sizes = [8, 128], strides = [1, 1]} : vector<8x384xf32> to vector<8x128xf32>
    %32 = vector.extract_strided_slice %22 {offsets = [0, 384], sizes = [8, 128], strides = [1, 1]} : vector<8x512xf32> to vector<8x128xf32>
    %33 = math.tanh %32 : vector<8x128xf32>
    %34 = arith.mulf %30, %11 : vector<8x128xf32>
    %35 = arith.mulf %29, %33 : vector<8x128xf32>
    %36 = arith.addf %34, %35 : vector<8x128xf32>
    %37 = math.tanh %36 : vector<8x128xf32>
    %38 = arith.mulf %31, %37 : vector<8x128xf32>
    %39 = arith.select %15, %38, %11 : vector<8x128xi1>, vector<8x128xf32>
    %40 = arith.select %15, %36, %11 : vector<8x128xi1>, vector<8x128xf32>
    %41 = arith.truncf %39 : vector<8x128xf32> to vector<8x128xbf16>
    %c0_20 = arith.constant 0 : index
    %c0_21 = arith.constant 0 : index
    %c0_22 = arith.constant 0 : index
    %42 = vector.load %arg5[%c0_20, %c0_21, %c0_22] : memref<1x128x512xbf16, #tpu.memory_space<vmem>>, vector<1x128x512xbf16>
    %43 = vector.shape_cast %42 : vector<1x128x512xbf16> to vector<128x512xbf16>
    %cst_23 = arith.constant dense<0.000000e+00> : vector<8x512xf32>
    %44 = tpu.matmul %41, %43, %cst_23 {dimension_numbers = #tpu.dot_dimension_numbers<[1], [0], [0], [1], [0, 0, 1, 1], [], []>} : vector<8x128xbf16>, vector<128x512xbf16>, vector<8x512xf32> -> vector<8x512xf32>
    %45 = arith.truncf %11 : vector<8x128xf32> to vector<8x128xbf16>
    %c0_24 = arith.constant 0 : index
    %c0_25 = arith.constant 0 : index
    %c0_26 = arith.constant 0 : index
    %46 = vector.load %arg6[%c0_24, %c0_25, %c0_26] : memref<1x128x512xbf16, #tpu.memory_space<vmem>>, vector<1x128x512xbf16>
    %47 = vector.shape_cast %46 : vector<1x128x512xbf16> to vector<128x512xbf16>
    %cst_27 = arith.constant dense<0.000000e+00> : vector<8x512xf32>
    %48 = tpu.matmul %45, %47, %cst_27 {dimension_numbers = #tpu.dot_dimension_numbers<[1], [0], [0], [1], [0, 0, 1, 1], [], []>} : vector<8x128xbf16>, vector<128x512xbf16>, vector<8x512xf32> -> vector<8x512xf32>
    %49 = arith.addf %44, %48 : vector<8x512xf32>
    %50 = vector.broadcast %10 : vector<1x512xf32> to vector<8x512xf32>
    %51 = arith.addf %49, %50 : vector<8x512xf32>
    %52 = vector.extract_strided_slice %51 {offsets = [0, 0], sizes = [8, 384], strides = [1, 1]} : vector<8x512xf32> to vector<8x384xf32>
    %53 = arith.negf %52 : vector<8x384xf32>
    %54 = math.exp %53 : vector<8x384xf32>
    %cst_28 = arith.constant 1.000000e+00 : f32
    %55 = vector.broadcast %cst_28 : f32 to vector<8x384xf32>
    %56 = arith.addf %55, %54 : vector<8x384xf32>
    %57 = arith.divf %55, %56 : vector<8x384xf32>
    %58 = vector.extract_strided_slice %57 {offsets = [0, 0], sizes = [8, 128], strides = [1, 1]} : vector<8x384xf32> to vector<8x128xf32>
    %59 = vector.extract_strided_slice %57 {offsets = [0, 128], sizes = [8, 128], strides = [1, 1]} : vector<8x384xf32> to vector<8x128xf32>
    %60 = vector.extract_strided_slice %57 {offsets = [0, 256], sizes = [8, 128], strides = [1, 1]} : vector<8x384xf32> to vector<8x128xf32>
    %61 = vector.extract_strided_slice %51 {offsets = [0, 384], sizes = [8, 128], strides = [1, 1]} : vector<8x512xf32> to vector<8x128xf32>
    %62 = math.tanh %61 : vector<8x128xf32>
    %63 = arith.mulf %59, %11 : vector<8x128xf32>
    %64 = arith.mulf %58, %62 : vector<8x128xf32>
    %65 = arith.addf %63, %64 : vector<8x128xf32>
    %66 = math.tanh %65 : vector<8x128xf32>
    %67 = arith.mulf %60, %66 : vector<8x128xf32>
    %68 = arith.select %15, %67, %11 : vector<8x128xi1>, vector<8x128xf32>
    %69 = arith.select %15, %65, %11 : vector<8x128xi1>, vector<8x128xf32>
    %c1_i32 = arith.constant 1 : i32
    %70 = vector.broadcast %c1_i32 : i32 to vector<8x1xi32>
    %71 = arith.cmpi slt, %70, %8 : vector<8x1xi32>
    %72 = vector.shape_cast %71 : vector<8x1xi1> to vector<8x1xi1>
    %73 = vector.broadcast %72 : vector<8x1xi1> to vector<8x128xi1>
    %74 = arith.index_cast %c1_i32 : i32 to index
    %c0_29 = arith.constant 0 : index
    %c0_30 = arith.constant 0 : index
    %75 = vector.load %arg10[%74, %c0_29, %c0_30] : memref<8x8x512xf32, #tpu.memory_space<vmem>>, vector<1x8x512xf32>
    %76 = vector.shape_cast %75 : vector<1x8x512xf32> to vector<8x512xf32>
    %77 = arith.truncf %39 : vector<8x128xf32> to vector<8x128xbf16>
    %c0_31 = arith.constant 0 : index
    %c0_32 = arith.constant 0 : index
    %78 = vector.load %arg3[%c0_31, %c0_32] : memref<128x512xbf16, #tpu.memory_space<vmem>>, vector<128x512xbf16>
    %cst_33 = arith.constant dense<0.000000e+00> : vector<8x512xf32>
    %79 = tpu.matmul %77, %78, %cst_33 {dimension_numbers = #tpu.dot_dimension_numbers<[1], [0], [0], [1], [0, 0, 1, 1], [], []>} : vector<8x128xbf16>, vector<128x512xbf16>, vector<8x512xf32> -> vector<8x512xf32>
    %80 = arith.addf %76, %79 : vector<8x512xf32>
    %81 = vector.extract_strided_slice %80 {offsets = [0, 0], sizes = [8, 384], strides = [1, 1]} : vector<8x512xf32> to vector<8x384xf32>
    %82 = arith.negf %81 : vector<8x384xf32>
    %83 = math.exp %82 : vector<8x384xf32>
    %cst_34 = arith.constant 1.000000e+00 : f32
    %84 = vector.broadcast %cst_34 : f32 to vector<8x384xf32>
    %85 = arith.addf %84, %83 : vector<8x384xf32>
    %86 = arith.divf %84, %85 : vector<8x384xf32>
    %87 = vector.extract_strided_slice %86 {offsets = [0, 0], sizes = [8, 128], strides = [1, 1]} : vector<8x384xf32> to vector<8x128xf32>
    %88 = vector.extract_strided_slice %86 {offsets = [0, 128], sizes = [8, 128], strides = [1, 1]} : vector<8x384xf32> to vector<8x128xf32>
    %89 = vector.extract_strided_slice %86 {offsets = [0, 256], sizes = [8, 128], strides = [1, 1]} : vector<8x384xf32> to vector<8x128xf32>
    %90 = vector.extract_strided_slice %80 {offsets = [0, 384], sizes = [8, 128], strides = [1, 1]} : vector<8x512xf32> to vector<8x128xf32>
    %91 = math.tanh %90 : vector<8x128xf32>
    %92 = arith.mulf %88, %40 : vector<8x128xf32>
    %93 = arith.mulf %87, %91 : vector<8x128xf32>
    %94 = arith.addf %92, %93 : vector<8x128xf32>
    %95 = math.tanh %94 : vector<8x128xf32>
    %96 = arith.mulf %89, %95 : vector<8x128xf32>
    %97 = arith.select %73, %96, %39 : vector<8x128xi1>, vector<8x128xf32>
    %98 = arith.select %73, %94, %40 : vector<8x128xi1>, vector<8x128xf32>
    %99 = arith.truncf %97 : vector<8x128xf32> to vector<8x128xbf16>
    %c0_35 = arith.constant 0 : index
    %c0_36 = arith.constant 0 : index
    %c0_37 = arith.constant 0 : index
    %100 = vector.load %arg5[%c0_35, %c0_36, %c0_37] : memref<1x128x512xbf16, #tpu.memory_space<vmem>>, vector<1x128x512xbf16>
    %101 = vector.shape_cast %100 : vector<1x128x512xbf16> to vector<128x512xbf16>
    %cst_38 = arith.constant dense<0.000000e+00> : vector<8x512xf32>
    %102 = tpu.matmul %99, %101, %cst_38 {dimension_numbers = #tpu.dot_dimension_numbers<[1], [0], [0], [1], [0, 0, 1, 1], [], []>} : vector<8x128xbf16>, vector<128x512xbf16>, vector<8x512xf32> -> vector<8x512xf32>
    %103 = arith.truncf %68 : vector<8x128xf32> to vector<8x128xbf16>
    %c0_39 = arith.constant 0 : index
    %c0_40 = arith.constant 0 : index
    %c0_41 = arith.constant 0 : index
    %104 = vector.load %arg6[%c0_39, %c0_40, %c0_41] : memref<1x128x512xbf16, #tpu.memory_space<vmem>>, vector<1x128x512xbf16>
    %105 = vector.shape_cast %104 : vector<1x128x512xbf16> to vector<128x512xbf16>
    %cst_42 = arith.constant dense<0.000000e+00> : vector<8x512xf32>
    %106 = tpu.matmul %103, %105, %cst_42 {dimension_numbers = #tpu.dot_dimension_numbers<[1], [0], [0], [1], [0, 0, 1, 1], [], []>} : vector<8x128xbf16>, vector<128x512xbf16>, vector<8x512xf32> -> vector<8x512xf32>
    %107 = arith.addf %102, %106 : vector<8x512xf32>
    %108 = vector.broadcast %10 : vector<1x512xf32> to vector<8x512xf32>
    %109 = arith.addf %107, %108 : vector<8x512xf32>
    %110 = vector.extract_strided_slice %109 {offsets = [0, 0], sizes = [8, 384], strides = [1, 1]} : vector<8x512xf32> to vector<8x384xf32>
    %111 = arith.negf %110 : vector<8x384xf32>
    %112 = math.exp %111 : vector<8x384xf32>
    %cst_43 = arith.constant 1.000000e+00 : f32
    %113 = vector.broadcast %cst_43 : f32 to vector<8x384xf32>
    %114 = arith.addf %113, %112 : vector<8x384xf32>
    %115 = arith.divf %113, %114 : vector<8x384xf32>
    %116 = vector.extract_strided_slice %115 {offsets = [0, 0], sizes = [8, 128], strides = [1, 1]} : vector<8x384xf32> to vector<8x128xf32>
    %117 = vector.extract_strided_slice %115 {offsets = [0, 128], sizes = [8, 128], strides = [1, 1]} : vector<8x384xf32> to vector<8x128xf32>
    %118 = vector.extract_strided_slice %115 {offsets = [0, 256], sizes = [8, 128], strides = [1, 1]} : vector<8x384xf32> to vector<8x128xf32>
    %119 = vector.extract_strided_slice %109 {offsets = [0, 384], sizes = [8, 128], strides = [1, 1]} : vector<8x512xf32> to vector<8x128xf32>
    %120 = math.tanh %119 : vector<8x128xf32>
    %121 = arith.mulf %117, %69 : vector<8x128xf32>
    %122 = arith.mulf %116, %120 : vector<8x128xf32>
    %123 = arith.addf %121, %122 : vector<8x128xf32>
    %124 = math.tanh %123 : vector<8x128xf32>
    %125 = arith.mulf %118, %124 : vector<8x128xf32>
    %126 = arith.select %73, %125, %68 : vector<8x128xi1>, vector<8x128xf32>
    %127 = arith.select %73, %123, %69 : vector<8x128xi1>, vector<8x128xf32>
    %c2_i32 = arith.constant 2 : i32
    %128 = vector.broadcast %c2_i32 : i32 to vector<8x1xi32>
    %129 = arith.cmpi slt, %128, %8 : vector<8x1xi32>
    %130 = vector.shape_cast %129 : vector<8x1xi1> to vector<8x1xi1>
    %131 = vector.broadcast %130 : vector<8x1xi1> to vector<8x128xi1>
    %132 = arith.index_cast %c2_i32 : i32 to index
    %c0_44 = arith.constant 0 : index
    %c0_45 = arith.constant 0 : index
    %133 = vector.load %arg10[%132, %c0_44, %c0_45] : memref<8x8x512xf32, #tpu.memory_space<vmem>>, vector<1x8x512xf32>
    %134 = vector.shape_cast %133 : vector<1x8x512xf32> to vector<8x512xf32>
    %135 = arith.truncf %97 : vector<8x128xf32> to vector<8x128xbf16>
    %c0_46 = arith.constant 0 : index
    %c0_47 = arith.constant 0 : index
    %136 = vector.load %arg3[%c0_46, %c0_47] : memref<128x512xbf16, #tpu.memory_space<vmem>>, vector<128x512xbf16>
    %cst_48 = arith.constant dense<0.000000e+00> : vector<8x512xf32>
    %137 = tpu.matmul %135, %136, %cst_48 {dimension_numbers = #tpu.dot_dimension_numbers<[1], [0], [0], [1], [0, 0, 1, 1], [], []>} : vector<8x128xbf16>, vector<128x512xbf16>, vector<8x512xf32> -> vector<8x512xf32>
    %138 = arith.addf %134, %137 : vector<8x512xf32>
    %139 = vector.extract_strided_slice %138 {offsets = [0, 0], sizes = [8, 384], strides = [1, 1]} : vector<8x512xf32> to vector<8x384xf32>
    %140 = arith.negf %139 : vector<8x384xf32>
    %141 = math.exp %140 : vector<8x384xf32>
    %cst_49 = arith.constant 1.000000e+00 : f32
    %142 = vector.broadcast %cst_49 : f32 to vector<8x384xf32>
    %143 = arith.addf %142, %141 : vector<8x384xf32>
    %144 = arith.divf %142, %143 : vector<8x384xf32>
    %145 = vector.extract_strided_slice %144 {offsets = [0, 0], sizes = [8, 128], strides = [1, 1]} : vector<8x384xf32> to vector<8x128xf32>
    %146 = vector.extract_strided_slice %144 {offsets = [0, 128], sizes = [8, 128], strides = [1, 1]} : vector<8x384xf32> to vector<8x128xf32>
    %147 = vector.extract_strided_slice %144 {offsets = [0, 256], sizes = [8, 128], strides = [1, 1]} : vector<8x384xf32> to vector<8x128xf32>
    %148 = vector.extract_strided_slice %138 {offsets = [0, 384], sizes = [8, 128], strides = [1, 1]} : vector<8x512xf32> to vector<8x128xf32>
    %149 = math.tanh %148 : vector<8x128xf32>
    %150 = arith.mulf %146, %98 : vector<8x128xf32>
    %151 = arith.mulf %145, %149 : vector<8x128xf32>
    %152 = arith.addf %150, %151 : vector<8x128xf32>
    %153 = math.tanh %152 : vector<8x128xf32>
    %154 = arith.mulf %147, %153 : vector<8x128xf32>
    %155 = arith.select %131, %154, %97 : vector<8x128xi1>, vector<8x128xf32>
    %156 = arith.select %131, %152, %98 : vector<8x128xi1>, vector<8x128xf32>
    %157 = arith.truncf %155 : vector<8x128xf32> to vector<8x128xbf16>
    %c0_50 = arith.constant 0 : index
    %c0_51 = arith.constant 0 : index
    %c0_52 = arith.constant 0 : index
    %158 = vector.load %arg5[%c0_50, %c0_51, %c0_52] : memref<1x128x512xbf16, #tpu.memory_space<vmem>>, vector<1x128x512xbf16>
    %159 = vector.shape_cast %158 : vector<1x128x512xbf16> to vector<128x512xbf16>
    %cst_53 = arith.constant dense<0.000000e+00> : vector<8x512xf32>
    %160 = tpu.matmul %157, %159, %cst_53 {dimension_numbers = #tpu.dot_dimension_numbers<[1], [0], [0], [1], [0, 0, 1, 1], [], []>} : vector<8x128xbf16>, vector<128x512xbf16>, vector<8x512xf32> -> vector<8x512xf32>
    %161 = arith.truncf %126 : vector<8x128xf32> to vector<8x128xbf16>
    %c0_54 = arith.constant 0 : index
    %c0_55 = arith.constant 0 : index
    %c0_56 = arith.constant 0 : index
    %162 = vector.load %arg6[%c0_54, %c0_55, %c0_56] : memref<1x128x512xbf16, #tpu.memory_space<vmem>>, vector<1x128x512xbf16>
    %163 = vector.shape_cast %162 : vector<1x128x512xbf16> to vector<128x512xbf16>
    %cst_57 = arith.constant dense<0.000000e+00> : vector<8x512xf32>
    %164 = tpu.matmul %161, %163, %cst_57 {dimension_numbers = #tpu.dot_dimension_numbers<[1], [0], [0], [1], [0, 0, 1, 1], [], []>} : vector<8x128xbf16>, vector<128x512xbf16>, vector<8x512xf32> -> vector<8x512xf32>
    %165 = arith.addf %160, %164 : vector<8x512xf32>
    %166 = vector.broadcast %10 : vector<1x512xf32> to vector<8x512xf32>
    %167 = arith.addf %165, %166 : vector<8x512xf32>
    %168 = vector.extract_strided_slice %167 {offsets = [0, 0], sizes = [8, 384], strides = [1, 1]} : vector<8x512xf32> to vector<8x384xf32>
    %169 = arith.negf %168 : vector<8x384xf32>
    %170 = math.exp %169 : vector<8x384xf32>
    %cst_58 = arith.constant 1.000000e+00 : f32
    %171 = vector.broadcast %cst_58 : f32 to vector<8x384xf32>
    %172 = arith.addf %171, %170 : vector<8x384xf32>
    %173 = arith.divf %171, %172 : vector<8x384xf32>
    %174 = vector.extract_strided_slice %173 {offsets = [0, 0], sizes = [8, 128], strides = [1, 1]} : vector<8x384xf32> to vector<8x128xf32>
    %175 = vector.extract_strided_slice %173 {offsets = [0, 128], sizes = [8, 128], strides = [1, 1]} : vector<8x384xf32> to vector<8x128xf32>
    %176 = vector.extract_strided_slice %173 {offsets = [0, 256], sizes = [8, 128], strides = [1, 1]} : vector<8x384xf32> to vector<8x128xf32>
    %177 = vector.extract_strided_slice %167 {offsets = [0, 384], sizes = [8, 128], strides = [1, 1]} : vector<8x512xf32> to vector<8x128xf32>
    %178 = math.tanh %177 : vector<8x128xf32>
    %179 = arith.mulf %175, %127 : vector<8x128xf32>
    %180 = arith.mulf %174, %178 : vector<8x128xf32>
    %181 = arith.addf %179, %180 : vector<8x128xf32>
    %182 = math.tanh %181 : vector<8x128xf32>
    %183 = arith.mulf %176, %182 : vector<8x128xf32>
    %184 = arith.select %131, %183, %126 : vector<8x128xi1>, vector<8x128xf32>
    %185 = arith.select %131, %181, %127 : vector<8x128xi1>, vector<8x128xf32>
    %c3_i32 = arith.constant 3 : i32
    %186 = vector.broadcast %c3_i32 : i32 to vector<8x1xi32>
    %187 = arith.cmpi slt, %186, %8 : vector<8x1xi32>
    %188 = vector.shape_cast %187 : vector<8x1xi1> to vector<8x1xi1>
    %189 = vector.broadcast %188 : vector<8x1xi1> to vector<8x128xi1>
    %190 = arith.index_cast %c3_i32 : i32 to index
    %c0_59 = arith.constant 0 : index
    %c0_60 = arith.constant 0 : index
    %191 = vector.load %arg10[%190, %c0_59, %c0_60] : memref<8x8x512xf32, #tpu.memory_space<vmem>>, vector<1x8x512xf32>
    %192 = vector.shape_cast %191 : vector<1x8x512xf32> to vector<8x512xf32>
    %193 = arith.truncf %155 : vector<8x128xf32> to vector<8x128xbf16>
    %c0_61 = arith.constant 0 : index
    %c0_62 = arith.constant 0 : index
    %194 = vector.load %arg3[%c0_61, %c0_62] : memref<128x512xbf16, #tpu.memory_space<vmem>>, vector<128x512xbf16>
    %cst_63 = arith.constant dense<0.000000e+00> : vector<8x512xf32>
    %195 = tpu.matmul %193, %194, %cst_63 {dimension_numbers = #tpu.dot_dimension_numbers<[1], [0], [0], [1], [0, 0, 1, 1], [], []>} : vector<8x128xbf16>, vector<128x512xbf16>, vector<8x512xf32> -> vector<8x512xf32>
    %196 = arith.addf %192, %195 : vector<8x512xf32>
    %197 = vector.extract_strided_slice %196 {offsets = [0, 0], sizes = [8, 384], strides = [1, 1]} : vector<8x512xf32> to vector<8x384xf32>
    %198 = arith.negf %197 : vector<8x384xf32>
    %199 = math.exp %198 : vector<8x384xf32>
    %cst_64 = arith.constant 1.000000e+00 : f32
    %200 = vector.broadcast %cst_64 : f32 to vector<8x384xf32>
    %201 = arith.addf %200, %199 : vector<8x384xf32>
    %202 = arith.divf %200, %201 : vector<8x384xf32>
    %203 = vector.extract_strided_slice %202 {offsets = [0, 0], sizes = [8, 128], strides = [1, 1]} : vector<8x384xf32> to vector<8x128xf32>
    %204 = vector.extract_strided_slice %202 {offsets = [0, 128], sizes = [8, 128], strides = [1, 1]} : vector<8x384xf32> to vector<8x128xf32>
    %205 = vector.extract_strided_slice %202 {offsets = [0, 256], sizes = [8, 128], strides = [1, 1]} : vector<8x384xf32> to vector<8x128xf32>
    %206 = vector.extract_strided_slice %196 {offsets = [0, 384], sizes = [8, 128], strides = [1, 1]} : vector<8x512xf32> to vector<8x128xf32>
    %207 = math.tanh %206 : vector<8x128xf32>
    %208 = arith.mulf %204, %156 : vector<8x128xf32>
    %209 = arith.mulf %203, %207 : vector<8x128xf32>
    %210 = arith.addf %208, %209 : vector<8x128xf32>
    %211 = math.tanh %210 : vector<8x128xf32>
    %212 = arith.mulf %205, %211 : vector<8x128xf32>
    %213 = arith.select %189, %212, %155 : vector<8x128xi1>, vector<8x128xf32>
    %214 = arith.select %189, %210, %156 : vector<8x128xi1>, vector<8x128xf32>
    %215 = arith.truncf %213 : vector<8x128xf32> to vector<8x128xbf16>
    %c0_65 = arith.constant 0 : index
    %c0_66 = arith.constant 0 : index
    %c0_67 = arith.constant 0 : index
    %216 = vector.load %arg5[%c0_65, %c0_66, %c0_67] : memref<1x128x512xbf16, #tpu.memory_space<vmem>>, vector<1x128x512xbf16>
    %217 = vector.shape_cast %216 : vector<1x128x512xbf16> to vector<128x512xbf16>
    %cst_68 = arith.constant dense<0.000000e+00> : vector<8x512xf32>
    %218 = tpu.matmul %215, %217, %cst_68 {dimension_numbers = #tpu.dot_dimension_numbers<[1], [0], [0], [1], [0, 0, 1, 1], [], []>} : vector<8x128xbf16>, vector<128x512xbf16>, vector<8x512xf32> -> vector<8x512xf32>
    %219 = arith.truncf %184 : vector<8x128xf32> to vector<8x128xbf16>
    %c0_69 = arith.constant 0 : index
    %c0_70 = arith.constant 0 : index
    %c0_71 = arith.constant 0 : index
    %220 = vector.load %arg6[%c0_69, %c0_70, %c0_71] : memref<1x128x512xbf16, #tpu.memory_space<vmem>>, vector<1x128x512xbf16>
    %221 = vector.shape_cast %220 : vector<1x128x512xbf16> to vector<128x512xbf16>
    %cst_72 = arith.constant dense<0.000000e+00> : vector<8x512xf32>
    %222 = tpu.matmul %219, %221, %cst_72 {dimension_numbers = #tpu.dot_dimension_numbers<[1], [0], [0], [1], [0, 0, 1, 1], [], []>} : vector<8x128xbf16>, vector<128x512xbf16>, vector<8x512xf32> -> vector<8x512xf32>
    %223 = arith.addf %218, %222 : vector<8x512xf32>
    %224 = vector.broadcast %10 : vector<1x512xf32> to vector<8x512xf32>
    %225 = arith.addf %223, %224 : vector<8x512xf32>
    %226 = vector.extract_strided_slice %225 {offsets = [0, 0], sizes = [8, 384], strides = [1, 1]} : vector<8x512xf32> to vector<8x384xf32>
    %227 = arith.negf %226 : vector<8x384xf32>
    %228 = math.exp %227 : vector<8x384xf32>
    %cst_73 = arith.constant 1.000000e+00 : f32
    %229 = vector.broadcast %cst_73 : f32 to vector<8x384xf32>
    %230 = arith.addf %229, %228 : vector<8x384xf32>
    %231 = arith.divf %229, %230 : vector<8x384xf32>
    %232 = vector.extract_strided_slice %231 {offsets = [0, 0], sizes = [8, 128], strides = [1, 1]} : vector<8x384xf32> to vector<8x128xf32>
    %233 = vector.extract_strided_slice %231 {offsets = [0, 128], sizes = [8, 128], strides = [1, 1]} : vector<8x384xf32> to vector<8x128xf32>
    %234 = vector.extract_strided_slice %231 {offsets = [0, 256], sizes = [8, 128], strides = [1, 1]} : vector<8x384xf32> to vector<8x128xf32>
    %235 = vector.extract_strided_slice %225 {offsets = [0, 384], sizes = [8, 128], strides = [1, 1]} : vector<8x512xf32> to vector<8x128xf32>
    %236 = math.tanh %235 : vector<8x128xf32>
    %237 = arith.mulf %233, %185 : vector<8x128xf32>
    %238 = arith.mulf %232, %236 : vector<8x128xf32>
    %239 = arith.addf %237, %238 : vector<8x128xf32>
    %240 = math.tanh %239 : vector<8x128xf32>
    %241 = arith.mulf %234, %240 : vector<8x128xf32>
    %242 = arith.select %189, %241, %184 : vector<8x128xi1>, vector<8x128xf32>
    %243 = arith.select %189, %239, %185 : vector<8x128xi1>, vector<8x128xf32>
    %c4_i32 = arith.constant 4 : i32
    %244 = vector.broadcast %c4_i32 : i32 to vector<8x1xi32>
    %245 = arith.cmpi slt, %244, %8 : vector<8x1xi32>
    %246 = vector.shape_cast %245 : vector<8x1xi1> to vector<8x1xi1>
    %247 = vector.broadcast %246 : vector<8x1xi1> to vector<8x128xi1>
    %248 = arith.index_cast %c4_i32 : i32 to index
    %c0_74 = arith.constant 0 : index
    %c0_75 = arith.constant 0 : index
    %249 = vector.load %arg10[%248, %c0_74, %c0_75] : memref<8x8x512xf32, #tpu.memory_space<vmem>>, vector<1x8x512xf32>
    %250 = vector.shape_cast %249 : vector<1x8x512xf32> to vector<8x512xf32>
    %251 = arith.truncf %213 : vector<8x128xf32> to vector<8x128xbf16>
    %c0_76 = arith.constant 0 : index
    %c0_77 = arith.constant 0 : index
    %252 = vector.load %arg3[%c0_76, %c0_77] : memref<128x512xbf16, #tpu.memory_space<vmem>>, vector<128x512xbf16>
    %cst_78 = arith.constant dense<0.000000e+00> : vector<8x512xf32>
    %253 = tpu.matmul %251, %252, %cst_78 {dimension_numbers = #tpu.dot_dimension_numbers<[1], [0], [0], [1], [0, 0, 1, 1], [], []>} : vector<8x128xbf16>, vector<128x512xbf16>, vector<8x512xf32> -> vector<8x512xf32>
    %254 = arith.addf %250, %253 : vector<8x512xf32>
    %255 = vector.extract_strided_slice %254 {offsets = [0, 0], sizes = [8, 384], strides = [1, 1]} : vector<8x512xf32> to vector<8x384xf32>
    %256 = arith.negf %255 : vector<8x384xf32>
    %257 = math.exp %256 : vector<8x384xf32>
    %cst_79 = arith.constant 1.000000e+00 : f32
    %258 = vector.broadcast %cst_79 : f32 to vector<8x384xf32>
    %259 = arith.addf %258, %257 : vector<8x384xf32>
    %260 = arith.divf %258, %259 : vector<8x384xf32>
    %261 = vector.extract_strided_slice %260 {offsets = [0, 0], sizes = [8, 128], strides = [1, 1]} : vector<8x384xf32> to vector<8x128xf32>
    %262 = vector.extract_strided_slice %260 {offsets = [0, 128], sizes = [8, 128], strides = [1, 1]} : vector<8x384xf32> to vector<8x128xf32>
    %263 = vector.extract_strided_slice %260 {offsets = [0, 256], sizes = [8, 128], strides = [1, 1]} : vector<8x384xf32> to vector<8x128xf32>
    %264 = vector.extract_strided_slice %254 {offsets = [0, 384], sizes = [8, 128], strides = [1, 1]} : vector<8x512xf32> to vector<8x128xf32>
    %265 = math.tanh %264 : vector<8x128xf32>
    %266 = arith.mulf %262, %214 : vector<8x128xf32>
    %267 = arith.mulf %261, %265 : vector<8x128xf32>
    %268 = arith.addf %266, %267 : vector<8x128xf32>
    %269 = math.tanh %268 : vector<8x128xf32>
    %270 = arith.mulf %263, %269 : vector<8x128xf32>
    %271 = arith.select %247, %270, %213 : vector<8x128xi1>, vector<8x128xf32>
    %272 = arith.select %247, %268, %214 : vector<8x128xi1>, vector<8x128xf32>
    %273 = arith.truncf %271 : vector<8x128xf32> to vector<8x128xbf16>
    %c0_80 = arith.constant 0 : index
    %c0_81 = arith.constant 0 : index
    %c0_82 = arith.constant 0 : index
    %274 = vector.load %arg5[%c0_80, %c0_81, %c0_82] : memref<1x128x512xbf16, #tpu.memory_space<vmem>>, vector<1x128x512xbf16>
    %275 = vector.shape_cast %274 : vector<1x128x512xbf16> to vector<128x512xbf16>
    %cst_83 = arith.constant dense<0.000000e+00> : vector<8x512xf32>
    %276 = tpu.matmul %273, %275, %cst_83 {dimension_numbers = #tpu.dot_dimension_numbers<[1], [0], [0], [1], [0, 0, 1, 1], [], []>} : vector<8x128xbf16>, vector<128x512xbf16>, vector<8x512xf32> -> vector<8x512xf32>
    %277 = arith.truncf %242 : vector<8x128xf32> to vector<8x128xbf16>
    %c0_84 = arith.constant 0 : index
    %c0_85 = arith.constant 0 : index
    %c0_86 = arith.constant 0 : index
    %278 = vector.load %arg6[%c0_84, %c0_85, %c0_86] : memref<1x128x512xbf16, #tpu.memory_space<vmem>>, vector<1x128x512xbf16>
    %279 = vector.shape_cast %278 : vector<1x128x512xbf16> to vector<128x512xbf16>
    %cst_87 = arith.constant dense<0.000000e+00> : vector<8x512xf32>
    %280 = tpu.matmul %277, %279, %cst_87 {dimension_numbers = #tpu.dot_dimension_numbers<[1], [0], [0], [1], [0, 0, 1, 1], [], []>} : vector<8x128xbf16>, vector<128x512xbf16>, vector<8x512xf32> -> vector<8x512xf32>
    %281 = arith.addf %276, %280 : vector<8x512xf32>
    %282 = vector.broadcast %10 : vector<1x512xf32> to vector<8x512xf32>
    %283 = arith.addf %281, %282 : vector<8x512xf32>
    %284 = vector.extract_strided_slice %283 {offsets = [0, 0], sizes = [8, 384], strides = [1, 1]} : vector<8x512xf32> to vector<8x384xf32>
    %285 = arith.negf %284 : vector<8x384xf32>
    %286 = math.exp %285 : vector<8x384xf32>
    %cst_88 = arith.constant 1.000000e+00 : f32
    %287 = vector.broadcast %cst_88 : f32 to vector<8x384xf32>
    %288 = arith.addf %287, %286 : vector<8x384xf32>
    %289 = arith.divf %287, %288 : vector<8x384xf32>
    %290 = vector.extract_strided_slice %289 {offsets = [0, 0], sizes = [8, 128], strides = [1, 1]} : vector<8x384xf32> to vector<8x128xf32>
    %291 = vector.extract_strided_slice %289 {offsets = [0, 128], sizes = [8, 128], strides = [1, 1]} : vector<8x384xf32> to vector<8x128xf32>
    %292 = vector.extract_strided_slice %289 {offsets = [0, 256], sizes = [8, 128], strides = [1, 1]} : vector<8x384xf32> to vector<8x128xf32>
    %293 = vector.extract_strided_slice %283 {offsets = [0, 384], sizes = [8, 128], strides = [1, 1]} : vector<8x512xf32> to vector<8x128xf32>
    %294 = math.tanh %293 : vector<8x128xf32>
    %295 = arith.mulf %291, %243 : vector<8x128xf32>
    %296 = arith.mulf %290, %294 : vector<8x128xf32>
    %297 = arith.addf %295, %296 : vector<8x128xf32>
    %298 = math.tanh %297 : vector<8x128xf32>
    %299 = arith.mulf %292, %298 : vector<8x128xf32>
    %300 = arith.select %247, %299, %242 : vector<8x128xi1>, vector<8x128xf32>
    %301 = arith.select %247, %297, %243 : vector<8x128xi1>, vector<8x128xf32>
    %c5_i32 = arith.constant 5 : i32
    %302 = vector.broadcast %c5_i32 : i32 to vector<8x1xi32>
    %303 = arith.cmpi slt, %302, %8 : vector<8x1xi32>
    %304 = vector.shape_cast %303 : vector<8x1xi1> to vector<8x1xi1>
    %305 = vector.broadcast %304 : vector<8x1xi1> to vector<8x128xi1>
    %306 = arith.index_cast %c5_i32 : i32 to index
    %c0_89 = arith.constant 0 : index
    %c0_90 = arith.constant 0 : index
    %307 = vector.load %arg10[%306, %c0_89, %c0_90] : memref<8x8x512xf32, #tpu.memory_space<vmem>>, vector<1x8x512xf32>
    %308 = vector.shape_cast %307 : vector<1x8x512xf32> to vector<8x512xf32>
    %309 = arith.truncf %271 : vector<8x128xf32> to vector<8x128xbf16>
    %c0_91 = arith.constant 0 : index
    %c0_92 = arith.constant 0 : index
    %310 = vector.load %arg3[%c0_91, %c0_92] : memref<128x512xbf16, #tpu.memory_space<vmem>>, vector<128x512xbf16>
    %cst_93 = arith.constant dense<0.000000e+00> : vector<8x512xf32>
    %311 = tpu.matmul %309, %310, %cst_93 {dimension_numbers = #tpu.dot_dimension_numbers<[1], [0], [0], [1], [0, 0, 1, 1], [], []>} : vector<8x128xbf16>, vector<128x512xbf16>, vector<8x512xf32> -> vector<8x512xf32>
    %312 = arith.addf %308, %311 : vector<8x512xf32>
    %313 = vector.extract_strided_slice %312 {offsets = [0, 0], sizes = [8, 384], strides = [1, 1]} : vector<8x512xf32> to vector<8x384xf32>
    %314 = arith.negf %313 : vector<8x384xf32>
    %315 = math.exp %314 : vector<8x384xf32>
    %cst_94 = arith.constant 1.000000e+00 : f32
    %316 = vector.broadcast %cst_94 : f32 to vector<8x384xf32>
    %317 = arith.addf %316, %315 : vector<8x384xf32>
    %318 = arith.divf %316, %317 : vector<8x384xf32>
    %319 = vector.extract_strided_slice %318 {offsets = [0, 0], sizes = [8, 128], strides = [1, 1]} : vector<8x384xf32> to vector<8x128xf32>
    %320 = vector.extract_strided_slice %318 {offsets = [0, 128], sizes = [8, 128], strides = [1, 1]} : vector<8x384xf32> to vector<8x128xf32>
    %321 = vector.extract_strided_slice %318 {offsets = [0, 256], sizes = [8, 128], strides = [1, 1]} : vector<8x384xf32> to vector<8x128xf32>
    %322 = vector.extract_strided_slice %312 {offsets = [0, 384], sizes = [8, 128], strides = [1, 1]} : vector<8x512xf32> to vector<8x128xf32>
    %323 = math.tanh %322 : vector<8x128xf32>
    %324 = arith.mulf %320, %272 : vector<8x128xf32>
    %325 = arith.mulf %319, %323 : vector<8x128xf32>
    %326 = arith.addf %324, %325 : vector<8x128xf32>
    %327 = math.tanh %326 : vector<8x128xf32>
    %328 = arith.mulf %321, %327 : vector<8x128xf32>
    %329 = arith.select %305, %328, %271 : vector<8x128xi1>, vector<8x128xf32>
    %330 = arith.select %305, %326, %272 : vector<8x128xi1>, vector<8x128xf32>
    %331 = arith.truncf %329 : vector<8x128xf32> to vector<8x128xbf16>
    %c0_95 = arith.constant 0 : index
    %c0_96 = arith.constant 0 : index
    %c0_97 = arith.constant 0 : index
    %332 = vector.load %arg5[%c0_95, %c0_96, %c0_97] : memref<1x128x512xbf16, #tpu.memory_space<vmem>>, vector<1x128x512xbf16>
    %333 = vector.shape_cast %332 : vector<1x128x512xbf16> to vector<128x512xbf16>
    %cst_98 = arith.constant dense<0.000000e+00> : vector<8x512xf32>
    %334 = tpu.matmul %331, %333, %cst_98 {dimension_numbers = #tpu.dot_dimension_numbers<[1], [0], [0], [1], [0, 0, 1, 1], [], []>} : vector<8x128xbf16>, vector<128x512xbf16>, vector<8x512xf32> -> vector<8x512xf32>
    %335 = arith.truncf %300 : vector<8x128xf32> to vector<8x128xbf16>
    %c0_99 = arith.constant 0 : index
    %c0_100 = arith.constant 0 : index
    %c0_101 = arith.constant 0 : index
    %336 = vector.load %arg6[%c0_99, %c0_100, %c0_101] : memref<1x128x512xbf16, #tpu.memory_space<vmem>>, vector<1x128x512xbf16>
    %337 = vector.shape_cast %336 : vector<1x128x512xbf16> to vector<128x512xbf16>
    %cst_102 = arith.constant dense<0.000000e+00> : vector<8x512xf32>
    %338 = tpu.matmul %335, %337, %cst_102 {dimension_numbers = #tpu.dot_dimension_numbers<[1], [0], [0], [1], [0, 0, 1, 1], [], []>} : vector<8x128xbf16>, vector<128x512xbf16>, vector<8x512xf32> -> vector<8x512xf32>
    %339 = arith.addf %334, %338 : vector<8x512xf32>
    %340 = vector.broadcast %10 : vector<1x512xf32> to vector<8x512xf32>
    %341 = arith.addf %339, %340 : vector<8x512xf32>
    %342 = vector.extract_strided_slice %341 {offsets = [0, 0], sizes = [8, 384], strides = [1, 1]} : vector<8x512xf32> to vector<8x384xf32>
    %343 = arith.negf %342 : vector<8x384xf32>
    %344 = math.exp %343 : vector<8x384xf32>
    %cst_103 = arith.constant 1.000000e+00 : f32
    %345 = vector.broadcast %cst_103 : f32 to vector<8x384xf32>
    %346 = arith.addf %345, %344 : vector<8x384xf32>
    %347 = arith.divf %345, %346 : vector<8x384xf32>
    %348 = vector.extract_strided_slice %347 {offsets = [0, 0], sizes = [8, 128], strides = [1, 1]} : vector<8x384xf32> to vector<8x128xf32>
    %349 = vector.extract_strided_slice %347 {offsets = [0, 128], sizes = [8, 128], strides = [1, 1]} : vector<8x384xf32> to vector<8x128xf32>
    %350 = vector.extract_strided_slice %347 {offsets = [0, 256], sizes = [8, 128], strides = [1, 1]} : vector<8x384xf32> to vector<8x128xf32>
    %351 = vector.extract_strided_slice %341 {offsets = [0, 384], sizes = [8, 128], strides = [1, 1]} : vector<8x512xf32> to vector<8x128xf32>
    %352 = math.tanh %351 : vector<8x128xf32>
    %353 = arith.mulf %349, %301 : vector<8x128xf32>
    %354 = arith.mulf %348, %352 : vector<8x128xf32>
    %355 = arith.addf %353, %354 : vector<8x128xf32>
    %356 = math.tanh %355 : vector<8x128xf32>
    %357 = arith.mulf %350, %356 : vector<8x128xf32>
    %358 = arith.select %305, %357, %300 : vector<8x128xi1>, vector<8x128xf32>
    %359 = arith.select %305, %355, %301 : vector<8x128xi1>, vector<8x128xf32>
    %c6_i32 = arith.constant 6 : i32
    %360 = vector.broadcast %c6_i32 : i32 to vector<8x1xi32>
    %361 = arith.cmpi slt, %360, %8 : vector<8x1xi32>
    %362 = vector.shape_cast %361 : vector<8x1xi1> to vector<8x1xi1>
    %363 = vector.broadcast %362 : vector<8x1xi1> to vector<8x128xi1>
    %364 = arith.index_cast %c6_i32 : i32 to index
    %c0_104 = arith.constant 0 : index
    %c0_105 = arith.constant 0 : index
    %365 = vector.load %arg10[%364, %c0_104, %c0_105] : memref<8x8x512xf32, #tpu.memory_space<vmem>>, vector<1x8x512xf32>
    %366 = vector.shape_cast %365 : vector<1x8x512xf32> to vector<8x512xf32>
    %367 = arith.truncf %329 : vector<8x128xf32> to vector<8x128xbf16>
    %c0_106 = arith.constant 0 : index
    %c0_107 = arith.constant 0 : index
    %368 = vector.load %arg3[%c0_106, %c0_107] : memref<128x512xbf16, #tpu.memory_space<vmem>>, vector<128x512xbf16>
    %cst_108 = arith.constant dense<0.000000e+00> : vector<8x512xf32>
    %369 = tpu.matmul %367, %368, %cst_108 {dimension_numbers = #tpu.dot_dimension_numbers<[1], [0], [0], [1], [0, 0, 1, 1], [], []>} : vector<8x128xbf16>, vector<128x512xbf16>, vector<8x512xf32> -> vector<8x512xf32>
    %370 = arith.addf %366, %369 : vector<8x512xf32>
    %371 = vector.extract_strided_slice %370 {offsets = [0, 0], sizes = [8, 384], strides = [1, 1]} : vector<8x512xf32> to vector<8x384xf32>
    %372 = arith.negf %371 : vector<8x384xf32>
    %373 = math.exp %372 : vector<8x384xf32>
    %cst_109 = arith.constant 1.000000e+00 : f32
    %374 = vector.broadcast %cst_109 : f32 to vector<8x384xf32>
    %375 = arith.addf %374, %373 : vector<8x384xf32>
    %376 = arith.divf %374, %375 : vector<8x384xf32>
    %377 = vector.extract_strided_slice %376 {offsets = [0, 0], sizes = [8, 128], strides = [1, 1]} : vector<8x384xf32> to vector<8x128xf32>
    %378 = vector.extract_strided_slice %376 {offsets = [0, 128], sizes = [8, 128], strides = [1, 1]} : vector<8x384xf32> to vector<8x128xf32>
    %379 = vector.extract_strided_slice %376 {offsets = [0, 256], sizes = [8, 128], strides = [1, 1]} : vector<8x384xf32> to vector<8x128xf32>
    %380 = vector.extract_strided_slice %370 {offsets = [0, 384], sizes = [8, 128], strides = [1, 1]} : vector<8x512xf32> to vector<8x128xf32>
    %381 = math.tanh %380 : vector<8x128xf32>
    %382 = arith.mulf %378, %330 : vector<8x128xf32>
    %383 = arith.mulf %377, %381 : vector<8x128xf32>
    %384 = arith.addf %382, %383 : vector<8x128xf32>
    %385 = math.tanh %384 : vector<8x128xf32>
    %386 = arith.mulf %379, %385 : vector<8x128xf32>
    %387 = arith.select %363, %386, %329 : vector<8x128xi1>, vector<8x128xf32>
    %388 = arith.select %363, %384, %330 : vector<8x128xi1>, vector<8x128xf32>
    %389 = arith.truncf %387 : vector<8x128xf32> to vector<8x128xbf16>
    %c0_110 = arith.constant 0 : index
    %c0_111 = arith.constant 0 : index
    %c0_112 = arith.constant 0 : index
    %390 = vector.load %arg5[%c0_110, %c0_111, %c0_112] : memref<1x128x512xbf16, #tpu.memory_space<vmem>>, vector<1x128x512xbf16>
    %391 = vector.shape_cast %390 : vector<1x128x512xbf16> to vector<128x512xbf16>
    %cst_113 = arith.constant dense<0.000000e+00> : vector<8x512xf32>
    %392 = tpu.matmul %389, %391, %cst_113 {dimension_numbers = #tpu.dot_dimension_numbers<[1], [0], [0], [1], [0, 0, 1, 1], [], []>} : vector<8x128xbf16>, vector<128x512xbf16>, vector<8x512xf32> -> vector<8x512xf32>
    %393 = arith.truncf %358 : vector<8x128xf32> to vector<8x128xbf16>
    %c0_114 = arith.constant 0 : index
    %c0_115 = arith.constant 0 : index
    %c0_116 = arith.constant 0 : index
    %394 = vector.load %arg6[%c0_114, %c0_115, %c0_116] : memref<1x128x512xbf16, #tpu.memory_space<vmem>>, vector<1x128x512xbf16>
    %395 = vector.shape_cast %394 : vector<1x128x512xbf16> to vector<128x512xbf16>
    %cst_117 = arith.constant dense<0.000000e+00> : vector<8x512xf32>
    %396 = tpu.matmul %393, %395, %cst_117 {dimension_numbers = #tpu.dot_dimension_numbers<[1], [0], [0], [1], [0, 0, 1, 1], [], []>} : vector<8x128xbf16>, vector<128x512xbf16>, vector<8x512xf32> -> vector<8x512xf32>
    %397 = arith.addf %392, %396 : vector<8x512xf32>
    %398 = vector.broadcast %10 : vector<1x512xf32> to vector<8x512xf32>
    %399 = arith.addf %397, %398 : vector<8x512xf32>
    %400 = vector.extract_strided_slice %399 {offsets = [0, 0], sizes = [8, 384], strides = [1, 1]} : vector<8x512xf32> to vector<8x384xf32>
    %401 = arith.negf %400 : vector<8x384xf32>
    %402 = math.exp %401 : vector<8x384xf32>
    %cst_118 = arith.constant 1.000000e+00 : f32
    %403 = vector.broadcast %cst_118 : f32 to vector<8x384xf32>
    %404 = arith.addf %403, %402 : vector<8x384xf32>
    %405 = arith.divf %403, %404 : vector<8x384xf32>
    %406 = vector.extract_strided_slice %405 {offsets = [0, 0], sizes = [8, 128], strides = [1, 1]} : vector<8x384xf32> to vector<8x128xf32>
    %407 = vector.extract_strided_slice %405 {offsets = [0, 128], sizes = [8, 128], strides = [1, 1]} : vector<8x384xf32> to vector<8x128xf32>
    %408 = vector.extract_strided_slice %405 {offsets = [0, 256], sizes = [8, 128], strides = [1, 1]} : vector<8x384xf32> to vector<8x128xf32>
    %409 = vector.extract_strided_slice %399 {offsets = [0, 384], sizes = [8, 128], strides = [1, 1]} : vector<8x512xf32> to vector<8x128xf32>
    %410 = math.tanh %409 : vector<8x128xf32>
    %411 = arith.mulf %407, %359 : vector<8x128xf32>
    %412 = arith.mulf %406, %410 : vector<8x128xf32>
    %413 = arith.addf %411, %412 : vector<8x128xf32>
    %414 = math.tanh %413 : vector<8x128xf32>
    %415 = arith.mulf %408, %414 : vector<8x128xf32>
    %416 = arith.select %363, %415, %358 : vector<8x128xi1>, vector<8x128xf32>
    %417 = arith.select %363, %413, %359 : vector<8x128xi1>, vector<8x128xf32>
    %c7_i32 = arith.constant 7 : i32
    %418 = vector.broadcast %c7_i32 : i32 to vector<8x1xi32>
    %419 = arith.cmpi slt, %418, %8 : vector<8x1xi32>
    %420 = vector.shape_cast %419 : vector<8x1xi1> to vector<8x1xi1>
    %421 = vector.broadcast %420 : vector<8x1xi1> to vector<8x128xi1>
    %422 = arith.index_cast %c7_i32 : i32 to index
    %c0_119 = arith.constant 0 : index
    %c0_120 = arith.constant 0 : index
    %423 = vector.load %arg10[%422, %c0_119, %c0_120] : memref<8x8x512xf32, #tpu.memory_space<vmem>>, vector<1x8x512xf32>
    %424 = vector.shape_cast %423 : vector<1x8x512xf32> to vector<8x512xf32>
    %425 = arith.truncf %387 : vector<8x128xf32> to vector<8x128xbf16>
    %c0_121 = arith.constant 0 : index
    %c0_122 = arith.constant 0 : index
    %426 = vector.load %arg3[%c0_121, %c0_122] : memref<128x512xbf16, #tpu.memory_space<vmem>>, vector<128x512xbf16>
    %cst_123 = arith.constant dense<0.000000e+00> : vector<8x512xf32>
    %427 = tpu.matmul %425, %426, %cst_123 {dimension_numbers = #tpu.dot_dimension_numbers<[1], [0], [0], [1], [0, 0, 1, 1], [], []>} : vector<8x128xbf16>, vector<128x512xbf16>, vector<8x512xf32> -> vector<8x512xf32>
    %428 = arith.addf %424, %427 : vector<8x512xf32>
    %429 = vector.extract_strided_slice %428 {offsets = [0, 0], sizes = [8, 384], strides = [1, 1]} : vector<8x512xf32> to vector<8x384xf32>
    %430 = arith.negf %429 : vector<8x384xf32>
    %431 = math.exp %430 : vector<8x384xf32>
    %cst_124 = arith.constant 1.000000e+00 : f32
    %432 = vector.broadcast %cst_124 : f32 to vector<8x384xf32>
    %433 = arith.addf %432, %431 : vector<8x384xf32>
    %434 = arith.divf %432, %433 : vector<8x384xf32>
    %435 = vector.extract_strided_slice %434 {offsets = [0, 0], sizes = [8, 128], strides = [1, 1]} : vector<8x384xf32> to vector<8x128xf32>
    %436 = vector.extract_strided_slice %434 {offsets = [0, 128], sizes = [8, 128], strides = [1, 1]} : vector<8x384xf32> to vector<8x128xf32>
    %437 = vector.extract_strided_slice %434 {offsets = [0, 256], sizes = [8, 128], strides = [1, 1]} : vector<8x384xf32> to vector<8x128xf32>
    %438 = vector.extract_strided_slice %428 {offsets = [0, 384], sizes = [8, 128], strides = [1, 1]} : vector<8x512xf32> to vector<8x128xf32>
    %439 = math.tanh %438 : vector<8x128xf32>
    %440 = arith.mulf %436, %388 : vector<8x128xf32>
    %441 = arith.mulf %435, %439 : vector<8x128xf32>
    %442 = arith.addf %440, %441 : vector<8x128xf32>
    %443 = math.tanh %442 : vector<8x128xf32>
    %444 = arith.mulf %437, %443 : vector<8x128xf32>
    %445 = arith.select %421, %444, %387 : vector<8x128xi1>, vector<8x128xf32>
    %446 = arith.select %421, %442, %388 : vector<8x128xi1>, vector<8x128xf32>
    %447 = arith.truncf %445 : vector<8x128xf32> to vector<8x128xbf16>
    %c0_125 = arith.constant 0 : index
    %c0_126 = arith.constant 0 : index
    %c0_127 = arith.constant 0 : index
    %448 = vector.load %arg5[%c0_125, %c0_126, %c0_127] : memref<1x128x512xbf16, #tpu.memory_space<vmem>>, vector<1x128x512xbf16>
    %449 = vector.shape_cast %448 : vector<1x128x512xbf16> to vector<128x512xbf16>
    %cst_128 = arith.constant dense<0.000000e+00> : vector<8x512xf32>
    %450 = tpu.matmul %447, %449, %cst_128 {dimension_numbers = #tpu.dot_dimension_numbers<[1], [0], [0], [1], [0, 0, 1, 1], [], []>} : vector<8x128xbf16>, vector<128x512xbf16>, vector<8x512xf32> -> vector<8x512xf32>
    %451 = arith.truncf %416 : vector<8x128xf32> to vector<8x128xbf16>
    %c0_129 = arith.constant 0 : index
    %c0_130 = arith.constant 0 : index
    %c0_131 = arith.constant 0 : index
    %452 = vector.load %arg6[%c0_129, %c0_130, %c0_131] : memref<1x128x512xbf16, #tpu.memory_space<vmem>>, vector<1x128x512xbf16>
    %453 = vector.shape_cast %452 : vector<1x128x512xbf16> to vector<128x512xbf16>
    %cst_132 = arith.constant dense<0.000000e+00> : vector<8x512xf32>
    %454 = tpu.matmul %451, %453, %cst_132 {dimension_numbers = #tpu.dot_dimension_numbers<[1], [0], [0], [1], [0, 0, 1, 1], [], []>} : vector<8x128xbf16>, vector<128x512xbf16>, vector<8x512xf32> -> vector<8x512xf32>
    %455 = arith.addf %450, %454 : vector<8x512xf32>
    %456 = vector.broadcast %10 : vector<1x512xf32> to vector<8x512xf32>
    %457 = arith.addf %455, %456 : vector<8x512xf32>
    %458 = vector.extract_strided_slice %457 {offsets = [0, 0], sizes = [8, 384], strides = [1, 1]} : vector<8x512xf32> to vector<8x384xf32>
    %459 = arith.negf %458 : vector<8x384xf32>
    %460 = math.exp %459 : vector<8x384xf32>
    %cst_133 = arith.constant 1.000000e+00 : f32
    %461 = vector.broadcast %cst_133 : f32 to vector<8x384xf32>
    %462 = arith.addf %461, %460 : vector<8x384xf32>
    %463 = arith.divf %461, %462 : vector<8x384xf32>
    %464 = vector.extract_strided_slice %463 {offsets = [0, 0], sizes = [8, 128], strides = [1, 1]} : vector<8x384xf32> to vector<8x128xf32>
    %465 = vector.extract_strided_slice %463 {offsets = [0, 128], sizes = [8, 128], strides = [1, 1]} : vector<8x384xf32> to vector<8x128xf32>
    %466 = vector.extract_strided_slice %463 {offsets = [0, 256], sizes = [8, 128], strides = [1, 1]} : vector<8x384xf32> to vector<8x128xf32>
    %467 = vector.extract_strided_slice %457 {offsets = [0, 384], sizes = [8, 128], strides = [1, 1]} : vector<8x512xf32> to vector<8x128xf32>
    %468 = math.tanh %467 : vector<8x128xf32>
    %469 = arith.mulf %465, %417 : vector<8x128xf32>
    %470 = arith.mulf %464, %468 : vector<8x128xf32>
    %471 = arith.addf %469, %470 : vector<8x128xf32>
    %472 = math.tanh %471 : vector<8x128xf32>
    %473 = arith.mulf %466, %472 : vector<8x128xf32>
    %474 = arith.select %421, %473, %416 : vector<8x128xi1>, vector<8x128xf32>
    %475 = arith.select %421, %471, %417 : vector<8x128xi1>, vector<8x128xf32>
    %c8_i32 = arith.constant 8 : i32
    %c0_134 = arith.constant 0 : index
    %c0_135 = arith.constant 0 : index
    %c0_136 = arith.constant 0 : index
    %476 = vector.load %arg8[%c0_134, %c0_135, %c0_136] : memref<2x8x128xf32, #tpu.memory_space<vmem>>, vector<1x8x128xf32>
    %477 = vector.shape_cast %476 : vector<1x8x128xf32> to vector<8x128xf32>
    %478 = vector.shape_cast %445 : vector<8x128xf32> to vector<1x8x128xf32>
    tpu.vector_store %arg8[%c0_134, %c0_135, %c0_136], %478 {strides = array<i32>} : memref<2x8x128xf32, #tpu.memory_space<vmem>>, vector<1x8x128xf32>,
    %c0_137 = arith.constant 0 : index
    %c0_138 = arith.constant 0 : index
    %c0_139 = arith.constant 0 : index
    %479 = vector.load %arg9[%c0_137, %c0_138, %c0_139] : memref<2x8x128xf32, #tpu.memory_space<vmem>>, vector<1x8x128xf32>
    %480 = vector.shape_cast %479 : vector<1x8x128xf32> to vector<8x128xf32>
    %481 = vector.shape_cast %446 : vector<8x128xf32> to vector<1x8x128xf32>
    tpu.vector_store %arg9[%c0_137, %c0_138, %c0_139], %481 {strides = array<i32>} : memref<2x8x128xf32, #tpu.memory_space<vmem>>, vector<1x8x128xf32>,
    %c1 = arith.constant 1 : index
    %c0_140 = arith.constant 0 : index
    %c0_141 = arith.constant 0 : index
    %482 = vector.load %arg8[%c1, %c0_140, %c0_141] : memref<2x8x128xf32, #tpu.memory_space<vmem>>, vector<1x8x128xf32>
    %483 = vector.shape_cast %482 : vector<1x8x128xf32> to vector<8x128xf32>
    %484 = vector.shape_cast %474 : vector<8x128xf32> to vector<1x8x128xf32>
    tpu.vector_store %arg8[%c1, %c0_140, %c0_141], %484 {strides = array<i32>} : memref<2x8x128xf32, #tpu.memory_space<vmem>>, vector<1x8x128xf32>,
    %c1_142 = arith.constant 1 : index
    %c0_143 = arith.constant 0 : index
    %c0_144 = arith.constant 0 : index
    %485 = vector.load %arg9[%c1_142, %c0_143, %c0_144] : memref<2x8x128xf32, #tpu.memory_space<vmem>>, vector<1x8x128xf32>
    %486 = vector.shape_cast %485 : vector<1x8x128xf32> to vector<8x128xf32>
    %487 = vector.shape_cast %475 : vector<8x128xf32> to vector<1x8x128xf32>
    tpu.vector_store %arg9[%c1_142, %c0_143, %c0_144], %487 {strides = array<i32>} : memref<2x8x128xf32, #tpu.memory_space<vmem>>, vector<1x8x128xf32>,
    return
  }
}

</mosaic_0001>

<llo_original>
// kernel: tpu_custom_call.1
$region0: #{tpu_custom_call.1}
  #allocation0 [shape = 'u32[]', space=smem, size = 0x4, offset = 0x4, fixed_abs, tag = 'smem constant byte address 0x4 - core index']
  #allocation1 [shape = 'u32[144,128]{1,0:T(1,128)}', space=vmem, size = 0x12000, scoped, tag = 'internal scratch']
  #allocation2 [shape = 'f32[8,8,512]{2,1,0:T(8,128)}', space=vmem, size = 0x20000, scoped, tag = 'scratch operand']
  %s0 = inlined_call_operand.hbm [shape: bf16[64,128], index: 0, kind: input, shape index: {}]
  %s1 = inlined_call_operand.vmem [shape: s32[8,1], index: 1, kind: input, shape index: {}]
  %s2 = inlined_call_operand.hbm [shape: bf16[128,512], index: 2, kind: input, shape index: {}]
  %s3 = inlined_call_operand.hbm [shape: bf16[128,512], index: 3, kind: input, shape index: {}]
  %s4 = inlined_call_operand.vmem [shape: f32[1,512], index: 4, kind: input, shape index: {}]
  %s5 = inlined_call_operand.hbm [shape: bf16[1,128,512], index: 5, kind: input, shape index: {}]
  %s6 = inlined_call_operand.hbm [shape: bf16[1,128,512], index: 6, kind: input, shape index: {}]
  %s7 = inlined_call_operand.vmem [shape: f32[1,1,512], index: 7, kind: input, shape index: {}]
  %s8 = inlined_call_operand.hbm [shape: f32[2,8,128], index: 8, kind: output, shape index: {0}]
  %s9 = inlined_call_operand.hbm [shape: f32[2,8,128], index: 9, kind: output, shape index: {1}]
  %10 = xla_tuple %s8, %s9
  %s11 = sld [smem:[#allocation0]]
  $region70: #{tpu_custom_call.1} parent=0
    _
  %s13 = ssub.s32 1, %s11
  %s14 = scalar_select 0, %s13, %s11
  $region1: #{tpu_custom_call.1} parent=0
    #allocation3 [shape = 'u8[16384]{0}', space=vmem, size = 0x4000, scoped, tag = 'input window, operand 0, single buffered']
    #allocation4 [shape = 's32[1]{0}', space=sflag, size = 0x4, scoped, tag = 'scoped memory for tpu_custom_call.1']
    #allocation5 [shape = 's32[1]{0}', space=sflag, size = 0x4, scoped, tag = 'scoped memory for tpu_custom_call.1']
    #allocation6 [shape = 'u8[131072]{0}', space=vmem, size = 0x20000, scoped, tag = 'input window, operand 2, single buffered']
    #allocation7 [shape = 's32[1]{0}', space=sflag, size = 0x4, scoped, tag = 'scoped memory for tpu_custom_call.1']
    #allocation8 [shape = 'u8[131072]{0}', space=vmem, size = 0x20000, scoped, tag = 'input window, operand 3, single buffered']
    #allocation9 [shape = 'u8[131072]{0}', space=vmem, size = 0x20000, scoped, tag = 'input window, operand 5, single buffered']
    #allocation10 [shape = 's32[1]{0}', space=sflag, size = 0x4, scoped, tag = 'scoped memory for tpu_custom_call.1']
    #allocation11 [shape = 'u8[131072]{0}', space=vmem, size = 0x20000, scoped, tag = 'input window, operand 6, single buffered']
    #allocation12 [shape = 'u8[8192]{0}', space=vmem, size = 0x2000, scoped, tag = 'output window, operand 0, single buffered']
    #allocation13 [shape = 'u8[8192]{0}', space=vmem, size = 0x2000, scoped, tag = 'output window, operand 1, single buffered']
    #allocation14 [shape = 's32[1]{0}', space=sflag, size = 0x4, scoped, tag = 'scoped memory for tpu_custom_call.1']
    %15 = vsyncpa [#allocation4], 0
    %16 = vsyncpa [#allocation7], 0
    %17 = vsyncpa [#allocation10], 0
    %18 = vsyncpa [#allocation5], 0
    %19 = vsyncpa [#allocation14], 0
    // Predicated region
    $region2: #{tpu_custom_call.1} parent=1 // pred_check
      _
    $region3: #{tpu_custom_call.1} parent=1 // pred_check_branch
      %21 = sbr.rel (0) target = $region5
    $region4: #{tpu_custom_call.1} parent=1 // pred_region
      %s23 = ssub.s32 512, 512
      %24 = vsyncadd [#allocation4], %s23
      %s25 = sshll.u32 [#allocation3], 4
      %s26 = int_to_ptr.vmem [resolvable:$true] %s25
      %31 = dma.hbm_to_vmem [thread:$0]  %s0, 512, %s26, [#allocation4], 64, 64, 4
    $region5: #{tpu_custom_call.1} parent=1 // pred_fallthru
      _
    // Predicated region
    $region6: #{tpu_custom_call.1} parent=1 // pred_check
      _
    $region7: #{tpu_custom_call.1} parent=1 // pred_check_branch
      %33 = sbr.rel (0) target = $region9
    $region8: #{tpu_custom_call.1} parent=1 // pred_region
      _
    $region9: #{tpu_custom_call.1} parent=1 // pred_fallthru
      _
    // Predicated region
    $region10: #{tpu_custom_call.1} parent=1 // pred_check
      _
    $region11: #{tpu_custom_call.1} parent=1 // pred_check_branch
      %35 = sbr.rel (0) target = $region13
    $region12: #{tpu_custom_call.1} parent=1 // pred_region
      %s37 = ssub.s32 4096, 4096
      %38 = vsyncadd [#allocation7], %s37
      %s39 = sshll.u32 [#allocation6], 4
      %s40 = int_to_ptr.vmem [resolvable:$true] %s39
      %45 = dma.hbm_to_vmem [thread:$0]  %s2, 4096, %s40, [#allocation7], 256, 256, 16
    $region13: #{tpu_custom_call.1} parent=1 // pred_fallthru
      _
    // Predicated region
    $region14: #{tpu_custom_call.1} parent=1 // pred_check
      _
    $region15: #{tpu_custom_call.1} parent=1 // pred_check_branch
      %47 = sbr.rel (0) target = $region17
    $region16: #{tpu_custom_call.1} parent=1 // pred_region
      %s49 = ssub.s32 4096, 4096
      %50 = vsyncadd [#allocation7], %s49
      %s51 = sshll.u32 [#allocation8], 4
      %s52 = int_to_ptr.vmem [resolvable:$true] %s51
      %57 = dma.hbm_to_vmem [thread:$0]  %s3, 4096, %s52, [#allocation7], 256, 256, 16
    $region17: #{tpu_custom_call.1} parent=1 // pred_fallthru
      _
    // Predicated region
    $region18: #{tpu_custom_call.1} parent=1 // pred_check
      _
    $region19: #{tpu_custom_call.1} parent=1 // pred_check_branch
      %59 = sbr.rel (0) target = $region21
    $region20: #{tpu_custom_call.1} parent=1 // pred_region
      _
    $region21: #{tpu_custom_call.1} parent=1 // pred_fallthru
      _
    // Predicated region
    $region22: #{tpu_custom_call.1} parent=1 // pred_check
      _
    $region23: #{tpu_custom_call.1} parent=1 // pred_check_branch
      %61 = sbr.rel (0) target = $region25
    $region24: #{tpu_custom_call.1} parent=1 // pred_region
      %s63 = ssub.s32 4096, 4096
      %64 = vsyncadd [#allocation10], %s63
      %s65 = sshll.u32 [#allocation9], 4
      %s66 = int_to_ptr.vmem [resolvable:$true] %s65
      %71 = dma.hbm_to_vmem [thread:$0]  %s5, 4096, %s66, [#allocation10], 256, 256, 16
    $region25: #{tpu_custom_call.1} parent=1 // pred_fallthru
      _
    // Predicated region
    $region26: #{tpu_custom_call.1} parent=1 // pred_check
      _
    $region27: #{tpu_custom_call.1} parent=1 // pred_check_branch
      %73 = sbr.rel (0) target = $region29
    $region28: #{tpu_custom_call.1} parent=1 // pred_region
      %s75 = ssub.s32 4096, 4096
      %76 = vsyncadd [#allocation10], %s75
      %s77 = sshll.u32 [#allocation11], 4
      %s78 = int_to_ptr.vmem [resolvable:$true] %s77
      %83 = dma.hbm_to_vmem [thread:$0]  %s6, 4096, %s78, [#allocation10], 256, 256, 16
    $region29: #{tpu_custom_call.1} parent=1 // pred_fallthru
      _
    // Predicated region
    $region30: #{tpu_custom_call.1} parent=1 // pred_check
      _
    $region31: #{tpu_custom_call.1} parent=1 // pred_check_branch
      %85 = sbr.rel (0) target = $region33
    $region32: #{tpu_custom_call.1} parent=1 // pred_region
      _
    $region33: #{tpu_custom_call.1} parent=1 // pred_fallthru
      _
    // Predicated region
    $region34: #{tpu_custom_call.1} parent=1 // pred_check
      _
    $region35: #{tpu_custom_call.1} parent=1 // pred_check_branch
      %87 = sbr.rel (0) target = $region37
    $region36: #{tpu_custom_call.1} parent=1 // pred_region
      %88 = dma.done [#allocation4], 512
    $region37: #{tpu_custom_call.1} parent=1 // pred_fallthru
      _
    // Predicated region
    $region38: #{tpu_custom_call.1} parent=1 // pred_check
      _
    $region39: #{tpu_custom_call.1} parent=1 // pred_check_branch
      %90 = sbr.rel (0) target = $region41
    $region40: #{tpu_custom_call.1} parent=1 // pred_region
      %91 = dma.done [#allocation7], 4096
    $region41: #{tpu_custom_call.1} parent=1 // pred_fallthru
      _
    // Predicated region
    $region42: #{tpu_custom_call.1} parent=1 // pred_check
      _
    $region43: #{tpu_custom_call.1} parent=1 // pred_check_branch
      %93 = sbr.rel (0) target = $region45
    $region44: #{tpu_custom_call.1} parent=1 // pred_region
      %94 = dma.done [#allocation7], 4096
    $region45: #{tpu_custom_call.1} parent=1 // pred_fallthru
      _
    // Predicated region
    $region46: #{tpu_custom_call.1} parent=1 // pred_check
      _
    $region47: #{tpu_custom_call.1} parent=1 // pred_check_branch
      %96 = sbr.rel (0) target = $region49
    $region48: #{tpu_custom_call.1} parent=1 // pred_region
      %97 = dma.done [#allocation10], 4096
    $region49: #{tpu_custom_call.1} parent=1 // pred_fallthru
      _
    // Predicated region
    $region50: #{tpu_custom_call.1} parent=1 // pred_check
      _
    $region51: #{tpu_custom_call.1} parent=1 // pred_check_branch
      %99 = sbr.rel (0) target = $region53
    $region52: #{tpu_custom_call.1} parent=1 // pred_region
      %100 = dma.done [#allocation10], 4096
    $region53: #{tpu_custom_call.1} parent=1 // pred_fallthru
      _
    %v102 = vld [vmem:[#allocation3] sm:$0xf]
    %v103 = vld [vmem:[#allocation3 + $0x4] sm:$0xf]
    %v104 = vld [vmem:[#allocation3 + $0x8] sm:$0xf]
    %v105 = vld [vmem:[#allocation3 + $0xc] sm:$0xf]
    %v106 = vld [vmem:[#allocation3 + $0x10] sm:$0xf]
    %v107 = vld [vmem:[#allocation3 + $0x14] sm:$0xf]
    %v108 = vld [vmem:[#allocation3 + $0x18] sm:$0xf]
    %v109 = vld [vmem:[#allocation3 + $0x1c] sm:$0xf]
    %v110 = vld [vmem:[#allocation6] sm:$0xff]
    %v111 = vld [vmem:[#allocation6 + $0x8] sm:$0xff]
    %v112 = vld [vmem:[#allocation6 + $0x10] sm:$0xff]
    %v113 = vld [vmem:[#allocation6 + $0x18] sm:$0xff]
    %v114 = vld [vmem:[#allocation6 + $0x20] sm:$0xff]
    %v115 = vld [vmem:[#allocation6 + $0x28] sm:$0xff]
    %v116 = vld [vmem:[#allocation6 + $0x30] sm:$0xff]
    %v117 = vld [vmem:[#allocation6 + $0x38] sm:$0xff]
    %v118 = vld [vmem:[#allocation6 + $0x40] sm:$0xff]
    %v119 = vld [vmem:[#allocation6 + $0x48] sm:$0xff]
    %v120 = vld [vmem:[#allocation6 + $0x50] sm:$0xff]
    %v121 = vld [vmem:[#allocation6 + $0x58] sm:$0xff]
    %v122 = vld [vmem:[#allocation6 + $0x60] sm:$0xff]
    %v123 = vld [vmem:[#allocation6 + $0x68] sm:$0xff]
    %v124 = vld [vmem:[#allocation6 + $0x70] sm:$0xff]
    %v125 = vld [vmem:[#allocation6 + $0x78] sm:$0xff]
    %v126 = vld [vmem:[#allocation6 + $0x80] sm:$0xff]
    %v127 = vld [vmem:[#allocation6 + $0x88] sm:$0xff]
    %v128 = vld [vmem:[#allocation6 + $0x90] sm:$0xff]
    %v129 = vld [vmem:[#allocation6 + $0x98] sm:$0xff]
    %v130 = vld [vmem:[#allocation6 + $0xa0] sm:$0xff]
    %v131 = vld [vmem:[#allocation6 + $0xa8] sm:$0xff]
    %v132 = vld [vmem:[#allocation6 + $0xb0] sm:$0xff]
    %v133 = vld [vmem:[#allocation6 + $0xb8] sm:$0xff]
    %v134 = vld [vmem:[#allocation6 + $0xc0] sm:$0xff]
    %v135 = vld [vmem:[#allocation6 + $0xc8] sm:$0xff]
    %v136 = vld [vmem:[#allocation6 + $0xd0] sm:$0xff]
    %v137 = vld [vmem:[#allocation6 + $0xd8] sm:$0xff]
    %v138 = vld [vmem:[#allocation6 + $0xe0] sm:$0xff]
    %v139 = vld [vmem:[#allocation6 + $0xe8] sm:$0xff]
    %v140 = vld [vmem:[#allocation6 + $0xf0] sm:$0xff]
    %v141 = vld [vmem:[#allocation6 + $0xf8] sm:$0xff]
    %v142 = vld [vmem:[%s4] sm:$0xf]
    %v144 = vlaneseq
    %v145 = vshrl.u32 %v144, 7
    %v146 = vsub.s32 0, %v145
    %v147 = vrot.slane %v142, %v146
    %v148 = vlaneseq
    %v149 = vshrl.u32 %v148, 7
    %v150 = vsub.s32 1, %v149
    %v151 = vrot.slane %v142, %v150
    %v152 = vlaneseq
    %v153 = vshrl.u32 %v152, 7
    %v154 = vsub.s32 2, %v153
    %v155 = vrot.slane %v142, %v154
    %v156 = vlaneseq
    %v157 = vshrl.u32 %v156, 7
    %v158 = vsub.s32 3, %v157
    %v159 = vrot.slane %v142, %v158
    %v172 = vunpack.c.l.b16 %v102
    %v173 = vunpack.c.l.b16 %v103
    %v174 = vunpack.c.l.b16 %v104
    %v175 = vunpack.c.l.b16 %v105
    %v176 = vunpack.c.l.b16 %v106
    %v177 = vunpack.c.l.b16 %v107
    %v178 = vunpack.c.l.b16 %v108
    %v179 = vunpack.c.l.b16 %v109
    %v180 = vpack.c.b16 %v173, %v172
    %v181 = vpack.c.b16 %v175, %v174
    %v182 = vpack.c.b16 %v177, %v176
    %v183 = vpack.c.b16 %v179, %v178
    %v220 = vunpack.c.l.b16 %v110
    %v221 = vunpack.c.h.b16 %v110
    %v222 = vunpack.c.l.b16 %v111
    %v223 = vunpack.c.h.b16 %v111
    %v224 = vunpack.c.l.b16 %v112
    %v225 = vunpack.c.h.b16 %v112
    %v226 = vunpack.c.l.b16 %v113
    %v227 = vunpack.c.h.b16 %v113
    %v228 = vunpack.c.l.b16 %v114
    %v229 = vunpack.c.h.b16 %v114
    %v230 = vunpack.c.l.b16 %v115
    %v231 = vunpack.c.h.b16 %v115
    %v232 = vunpack.c.l.b16 %v116
    %v233 = vunpack.c.h.b16 %v116
    %v234 = vunpack.c.l.b16 %v117
    %v235 = vunpack.c.h.b16 %v117
    %v236 = vunpack.c.l.b16 %v118
    %v237 = vunpack.c.h.b16 %v118
    %v238 = vunpack.c.l.b16 %v119
    %v239 = vunpack.c.h.b16 %v119
    %v240 = vunpack.c.l.b16 %v120
    %v241 = vunpack.c.h.b16 %v120
    %v242 = vunpack.c.l.b16 %v121
    %v243 = vunpack.c.h.b16 %v121
    %v244 = vunpack.c.l.b16 %v122
    %v245 = vunpack.c.h.b16 %v122
    %v246 = vunpack.c.l.b16 %v123
    %v247 = vunpack.c.h.b16 %v123
    %v248 = vunpack.c.l.b16 %v124
    %v249 = vunpack.c.h.b16 %v124
    %v250 = vunpack.c.l.b16 %v125
    %v251 = vunpack.c.h.b16 %v125
    %v252 = vunpack.c.l.b16 %v126
    %v253 = vunpack.c.h.b16 %v126
    %v254 = vunpack.c.l.b16 %v127
    %v255 = vunpack.c.h.b16 %v127
    %v256 = vunpack.c.l.b16 %v128
    %v257 = vunpack.c.h.b16 %v128
    %v258 = vunpack.c.l.b16 %v129
    %v259 = vunpack.c.h.b16 %v129
    %v260 = vunpack.c.l.b16 %v130
    %v261 = vunpack.c.h.b16 %v130
    %v262 = vunpack.c.l.b16 %v131
    %v263 = vunpack.c.h.b16 %v131
    %v264 = vunpack.c.l.b16 %v132
    %v265 = vunpack.c.h.b16 %v132
    %v266 = vunpack.c.l.b16 %v133
    %v267 = vunpack.c.h.b16 %v133
    %v268 = vunpack.c.l.b16 %v134
    %v269 = vunpack.c.h.b16 %v134
    %v270 = vunpack.c.l.b16 %v135
    %v271 = vunpack.c.h.b16 %v135
    %v272 = vunpack.c.l.b16 %v136
    %v273 = vunpack.c.h.b16 %v136
    %v274 = vunpack.c.l.b16 %v137
    %v275 = vunpack.c.h.b16 %v137
    %v276 = vunpack.c.l.b16 %v138
    %v277 = vunpack.c.h.b16 %v138
    %v278 = vunpack.c.l.b16 %v139
    %v279 = vunpack.c.h.b16 %v139
    %v280 = vunpack.c.l.b16 %v140
    %v281 = vunpack.c.h.b16 %v140
    %v282 = vunpack.c.l.b16 %v141
    %v283 = vunpack.c.h.b16 %v141
    %v284 = vpack.c.b16 %v224, %v220
    %v285 = vpack.c.b16 %v225, %v221
    %v286 = vpack.c.b16 %v226, %v222
    %v287 = vpack.c.b16 %v227, %v223
    %v288 = vpack.c.b16 %v232, %v228
    %v289 = vpack.c.b16 %v233, %v229
    %v290 = vpack.c.b16 %v234, %v230
    %v291 = vpack.c.b16 %v235, %v231
    %v292 = vpack.c.b16 %v240, %v236
    %v293 = vpack.c.b16 %v241, %v237
    %v294 = vpack.c.b16 %v242, %v238
    %v295 = vpack.c.b16 %v243, %v239
    %v296 = vpack.c.b16 %v248, %v244
    %v297 = vpack.c.b16 %v249, %v245
    %v298 = vpack.c.b16 %v250, %v246
    %v299 = vpack.c.b16 %v251, %v247
    %v300 = vpack.c.b16 %v256, %v252
    %v301 = vpack.c.b16 %v257, %v253
    %v302 = vpack.c.b16 %v258, %v254
    %v303 = vpack.c.b16 %v259, %v255
    %v304 = vpack.c.b16 %v264, %v260
    %v305 = vpack.c.b16 %v265, %v261
    %v306 = vpack.c.b16 %v266, %v262
    %v307 = vpack.c.b16 %v267, %v263
    %v308 = vpack.c.b16 %v272, %v268
    %v309 = vpack.c.b16 %v273, %v269
    %v310 = vpack.c.b16 %v274, %v270
    %v311 = vpack.c.b16 %v275, %v271
    %v312 = vpack.c.b16 %v280, %v276
    %v313 = vpack.c.b16 %v281, %v277
    %v314 = vpack.c.b16 %v282, %v278
    %v315 = vpack.c.b16 %v283, %v279
    %348 = vmatprep.subr.bf16.mxu0 %v313
    %349 = vmatpush1.bf16.msra.mxu0 %v312
    %350 = vmatprep.subr.bf16.mxu0 %v309
    %351 = vmatpush1.bf16.msra.mxu0 %v308
    %352 = vmatprep.subr.bf16.mxu0 %v305
    %353 = vmatpush1.bf16.msra.mxu0 %v304
    %354 = vmatprep.subr.bf16.mxu0 %v301
    %355 = vmatpush1.bf16.msra.mxu0 %v300
    %356 = vmatprep.subr.bf16.mxu0 %v297
    %357 = vmatpush1.bf16.msra.mxu0 %v296
    %358 = vmatprep.subr.bf16.mxu0 %v293
    %359 = vmatpush1.bf16.msra.mxu0 %v292
    %360 = vmatprep.subr.bf16.mxu0 %v289
    %361 = vmatpush1.bf16.msra.mxu0 %v288
    %362 = vmatprep.subr.bf16.mxu0 %v285
    %363 = vmatpush1.bf16.msra.mxu0 %v284
    %364 = vmatprep.subr.bf16.mxu0 0
    %365 = vmatpush2.bf16.msra.mxu0 0
    %366 = vmatprep.subr.bf16.mxu0 0
    %367 = vmatpush2.bf16.msra.mxu0 0
    %368 = vmatprep.subr.bf16.mxu0 0
    %369 = vmatpush2.bf16.msra.mxu0 0
    %370 = vmatprep.subr.bf16.mxu0 0
    %371 = vmatpush2.bf16.msra.mxu0 0
    %372 = vmatprep.subr.bf16.mxu0 0
    %373 = vmatpush2.bf16.msra.mxu0 0
    %374 = vmatprep.subr.bf16.mxu0 0
    %375 = vmatpush2.bf16.msra.mxu0 0
    %376 = vmatprep.subr.bf16.mxu0 0
    %377 = vmatpush2.bf16.msra.mxu0 0
    %378 = vmatprep.subr.bf16.mxu0 0
    %379 = vmatpush2.bf16.msra.mxu0 0
    %380 = vmatprep.mubr.bf16.mxu0 0
    %381 = vmatmul.mubr.bf16.gmra.mxu0 %v180
    %v382 = vpop.f32.mrf.mxu0
    %v383 = vadd.f32 %v147, %v382
    %v384 = vpop.f32.mrf.mxu0
    %v385 = vadd.f32 %v151, %v384
    %v386 = vpop.f32.mrf.mxu0
    %v387 = vadd.f32 %v147, %v386
    %v388 = vpop.f32.mrf.mxu0
    %v389 = vadd.f32 %v151, %v388
    %390 = vmatprep.mubr.bf16.mxu0 0
    %391 = vmatmul.mubr.bf16.gmra.mxu0 %v181
    %v392 = vpop.f32.mrf.mxu0
    %v393 = vadd.f32 %v147, %v392
    %v394 = vpop.f32.mrf.mxu0
    %v395 = vadd.f32 %v151, %v394
    %v396 = vpop.f32.mrf.mxu0
    %v397 = vadd.f32 %v147, %v396
    %v398 = vpop.f32.mrf.mxu0
    %v399 = vadd.f32 %v151, %v398
    %400 = vmatprep.mubr.bf16.mxu0 0
    %401 = vmatmul.mubr.bf16.gmra.mxu0 %v182
    %v402 = vpop.f32.mrf.mxu0
    %v403 = vadd.f32 %v147, %v402
    %v404 = vpop.f32.mrf.mxu0
    %v405 = vadd.f32 %v151, %v404
    %v406 = vpop.f32.mrf.mxu0
    %v407 = vadd.f32 %v147, %v406
    %v408 = vpop.f32.mrf.mxu0
    %v409 = vadd.f32 %v151, %v408
    %410 = vmatprep.mubr.bf16.mxu0 0
    %411 = vmatmul.mubr.bf16.gmra.mxu0 %v183
    %v412 = vpop.f32.mrf.mxu0
    %v413 = vadd.f32 %v147, %v412
    %v414 = vpop.f32.mrf.mxu0
    %v415 = vadd.f32 %v151, %v414
    %v416 = vpop.f32.mrf.mxu0
    %v417 = vadd.f32 %v147, %v416
    %v418 = vpop.f32.mrf.mxu0
    %v419 = vadd.f32 %v151, %v418
    %420 = vdwg.mxu0
    %421 = vmatprep.subr.bf16.mxu0 %v315
    %422 = vmatpush1.bf16.msra.mxu0 %v314
    %423 = vmatprep.subr.bf16.mxu0 %v311
    %424 = vmatpush1.bf16.msra.mxu0 %v310
    %425 = vmatprep.subr.bf16.mxu0 %v307
    %426 = vmatpush1.bf16.msra.mxu0 %v306
    %427 = vmatprep.subr.bf16.mxu0 %v303
    %428 = vmatpush1.bf16.msra.mxu0 %v302
    %429 = vmatprep.subr.bf16.mxu0 %v299
    %430 = vmatpush1.bf16.msra.mxu0 %v298
    %431 = vmatprep.subr.bf16.mxu0 %v295
    %432 = vmatpush1.bf16.msra.mxu0 %v294
    %433 = vmatprep.subr.bf16.mxu0 %v291
    %434 = vmatpush1.bf16.msra.mxu0 %v290
    %435 = vmatprep.subr.bf16.mxu0 %v287
    %436 = vmatpush1.bf16.msra.mxu0 %v286
    %437 = vmatprep.subr.bf16.mxu0 0
    %438 = vmatpush2.bf16.msra.mxu0 0
    %439 = vmatprep.subr.bf16.mxu0 0
    %440 = vmatpush2.bf16.msra.mxu0 0
    %441 = vmatprep.subr.bf16.mxu0 0
    %442 = vmatpush2.bf16.msra.mxu0 0
    %443 = vmatprep.subr.bf16.mxu0 0
    %444 = vmatpush2.bf16.msra.mxu0 0
    %445 = vmatprep.subr.bf16.mxu0 0
    %446 = vmatpush2.bf16.msra.mxu0 0
    %447 = vmatprep.subr.bf16.mxu0 0
    %448 = vmatpush2.bf16.msra.mxu0 0
    %449 = vmatprep.subr.bf16.mxu0 0
    %450 = vmatpush2.bf16.msra.mxu0 0
    %451 = vmatprep.subr.bf16.mxu0 0
    %452 = vmatpush2.bf16.msra.mxu0 0
    %453 = vmatprep.mubr.bf16.mxu0 0
    %454 = vmatmul.mubr.bf16.gmra.mxu0 %v180
    %v455 = vpop.f32.mrf.mxu0
    %v456 = vadd.f32 %v155, %v455
    %v457 = vpop.f32.mrf.mxu0
    %v458 = vadd.f32 %v159, %v457
    %v459 = vpop.f32.mrf.mxu0
    %v460 = vadd.f32 %v155, %v459
    %v461 = vpop.f32.mrf.mxu0
    %v462 = vadd.f32 %v159, %v461
    %463 = vmatprep.mubr.bf16.mxu0 0
    %464 = vmatmul.mubr.bf16.gmra.mxu0 %v181
    %v465 = vpop.f32.mrf.mxu0
    %v466 = vadd.f32 %v155, %v465
    %v467 = vpop.f32.mrf.mxu0
    %v468 = vadd.f32 %v159, %v467
    %v469 = vpop.f32.mrf.mxu0
    %v470 = vadd.f32 %v155, %v469
    %v471 = vpop.f32.mrf.mxu0
    %v472 = vadd.f32 %v159, %v471
    %473 = vmatprep.mubr.bf16.mxu0 0
    %474 = vmatmul.mubr.bf16.gmra.mxu0 %v182
    %v475 = vpop.f32.mrf.mxu0
    %v476 = vadd.f32 %v155, %v475
    %v477 = vpop.f32.mrf.mxu0
    %v478 = vadd.f32 %v159, %v477
    %v479 = vpop.f32.mrf.mxu0
    %v480 = vadd.f32 %v155, %v479
    %v481 = vpop.f32.mrf.mxu0
    %v482 = vadd.f32 %v159, %v481
    %483 = vmatprep.mubr.bf16.mxu0 0
    %484 = vmatmul.mubr.bf16.gmra.mxu0 %v183
    %v485 = vpop.f32.mrf.mxu0
    %v486 = vadd.f32 %v155, %v485
    %v487 = vpop.f32.mrf.mxu0
    %v488 = vadd.f32 %v159, %v487
    %v489 = vpop.f32.mrf.mxu0
    %v490 = vadd.f32 %v155, %v489
    %v491 = vpop.f32.mrf.mxu0
    %v492 = vadd.f32 %v159, %v491
    %493 = vdwg.mxu0
    %494 = vst [vmem:[#allocation2] sm:$0xff] %v383
    %495 = vst [vmem:[#allocation2 + $0x8] sm:$0xff] %v385
    %496 = vst [vmem:[#allocation2 + $0x10] sm:$0xff] %v456
    %497 = vst [vmem:[#allocation2 + $0x18] sm:$0xff] %v458
    %498 = vst [vmem:[#allocation2 + $0x20] sm:$0xff] %v387
    %499 = vst [vmem:[#allocation2 + $0x28] sm:$0xff] %v389
    %500 = vst [vmem:[#allocation2 + $0x30] sm:$0xff] %v460
    %501 = vst [vmem:[#allocation2 + $0x38] sm:$0xff] %v462
    %502 = vst [vmem:[#allocation2 + $0x40] sm:$0xff] %v393
    %503 = vst [vmem:[#allocation2 + $0x48] sm:$0xff] %v395
    %504 = vst [vmem:[#allocation2 + $0x50] sm:$0xff] %v466
    %505 = vst [vmem:[#allocation2 + $0x58] sm:$0xff] %v468
    %506 = vst [vmem:[#allocation2 + $0x60] sm:$0xff] %v397
    %507 = vst [vmem:[#allocation2 + $0x68] sm:$0xff] %v399
    %508 = vst [vmem:[#allocation2 + $0x70] sm:$0xff] %v470
    %509 = vst [vmem:[#allocation2 + $0x78] sm:$0xff] %v472
    %510 = vst [vmem:[#allocation2 + $0x80] sm:$0xff] %v403
    %511 = vst [vmem:[#allocation2 + $0x88] sm:$0xff] %v405
    %512 = vst [vmem:[#allocation2 + $0x90] sm:$0xff] %v476
    %513 = vst [vmem:[#allocation2 + $0x98] sm:$0xff] %v478
    %514 = vst [vmem:[#allocation2 + $0xa0] sm:$0xff] %v407
    %515 = vst [vmem:[#allocation2 + $0xa8] sm:$0xff] %v409
    %516 = vst [vmem:[#allocation2 + $0xb0] sm:$0xff] %v480
    %517 = vst [vmem:[#allocation2 + $0xb8] sm:$0xff] %v482
    %518 = vst [vmem:[#allocation2 + $0xc0] sm:$0xff] %v413
    %519 = vst [vmem:[#allocation2 + $0xc8] sm:$0xff] %v415
    %520 = vst [vmem:[#allocation2 + $0xd0] sm:$0xff] %v486
    %521 = vst [vmem:[#allocation2 + $0xd8] sm:$0xff] %v488
    %522 = vst [vmem:[#allocation2 + $0xe0] sm:$0xff] %v417
    %523 = vst [vmem:[#allocation2 + $0xe8] sm:$0xff] %v419
    %524 = vst [vmem:[#allocation2 + $0xf0] sm:$0xff] %v490
    %525 = vst [vmem:[#allocation2 + $0xf8] sm:$0xff] %v492
    %v526 = vld [vmem:[%s1] sm:$0xff]
    %v527 = vld [vmem:[%s7] sm:$0xf]
    %vm528 = vcmp.gt.s32.totalorder %v526, 0
    %v529 = vsel %vm528, 1, 0
    %530 = vset.pattern.permute.xlu0 0
    %531 = vperm.xlu0 %530, %v529
    %v532 = vpop.permute.xlu0 %531
    %vm533 = vcmp.eq.s32.totalorder %v532, 1
    %v534 = vld [vmem:[#allocation2] sm:$0xff]
    %v535 = vld [vmem:[#allocation2 + $0x8] sm:$0xff]
    %v536 = vld [vmem:[#allocation2 + $0x10] sm:$0xff]
    %v537 = vld [vmem:[#allocation2 + $0x18] sm:$0xff]
    %v538 = vld [vmem:[#allocation8] sm:$0xff]
    %v539 = vld [vmem:[#allocation8 + $0x8] sm:$0xff]
    %v540 = vld [vmem:[#allocation8 + $0x10] sm:$0xff]
    %v541 = vld [vmem:[#allocation8 + $0x18] sm:$0xff]
    %v542 = vld [vmem:[#allocation8 + $0x20] sm:$0xff]
    %v543 = vld [vmem:[#allocation8 + $0x28] sm:$0xff]
    %v544 = vld [vmem:[#allocation8 + $0x30] sm:$0xff]
    %v545 = vld [vmem:[#allocation8 + $0x38] sm:$0xff]
    %v546 = vld [vmem:[#allocation8 + $0x40] sm:$0xff]
    %v547 = vld [vmem:[#allocation8 + $0x48] sm:$0xff]
    %v548 = vld [vmem:[#allocation8 + $0x50] sm:$0xff]
    %v549 = vld [vmem:[#allocation8 + $0x58] sm:$0xff]
    %v550 = vld [vmem:[#allocation8 + $0x60] sm:$0xff]
    %v551 = vld [vmem:[#allocation8 + $0x68] sm:$0xff]
    %v552 = vld [vmem:[#allocation8 + $0x70] sm:$0xff]
    %v553 = vld [vmem:[#allocation8 + $0x78] sm:$0xff]
    %v554 = vld [vmem:[#allocation8 + $0x80] sm:$0xff]
    %v555 = vld [vmem:[#allocation8 + $0x88] sm:$0xff]
    %v556 = vld [vmem:[#allocation8 + $0x90] sm:$0xff]
    %v557 = vld [vmem:[#allocation8 + $0x98] sm:$0xff]
    %v558 = vld [vmem:[#allocation8 + $0xa0] sm:$0xff]
    %v559 = vld [vmem:[#allocation8 + $0xa8] sm:$0xff]
    %v560 = vld [vmem:[#allocation8 + $0xb0] sm:$0xff]
    %v561 = vld [vmem:[#allocation8 + $0xb8] sm:$0xff]
    %v562 = vld [vmem:[#allocation8 + $0xc0] sm:$0xff]
    %v563 = vld [vmem:[#allocation8 + $0xc8] sm:$0xff]
    %v564 = vld [vmem:[#allocation8 + $0xd0] sm:$0xff]
    %v565 = vld [vmem:[#allocation8 + $0xd8] sm:$0xff]
    %v566 = vld [vmem:[#allocation8 + $0xe0] sm:$0xff]
    %v567 = vld [vmem:[#allocation8 + $0xe8] sm:$0xff]
    %v568 = vld [vmem:[#allocation8 + $0xf0] sm:$0xff]
    %v569 = vld [vmem:[#allocation8 + $0xf8] sm:$0xff]
    %v602 = vunpack.c.l.b16 %v538
    %v603 = vunpack.c.h.b16 %v538
    %v604 = vunpack.c.l.b16 %v539
    %v605 = vunpack.c.h.b16 %v539
    %v606 = vunpack.c.l.b16 %v540
    %v607 = vunpack.c.h.b16 %v540
    %v608 = vunpack.c.l.b16 %v541
    %v609 = vunpack.c.h.b16 %v541
    %v610 = vunpack.c.l.b16 %v542
    %v611 = vunpack.c.h.b16 %v542
    %v612 = vunpack.c.l.b16 %v543
    %v613 = vunpack.c.h.b16 %v543
    %v614 = vunpack.c.l.b16 %v544
    %v615 = vunpack.c.h.b16 %v544
    %v616 = vunpack.c.l.b16 %v545
    %v617 = vunpack.c.h.b16 %v545
    %v618 = vunpack.c.l.b16 %v546
    %v619 = vunpack.c.h.b16 %v546
    %v620 = vunpack.c.l.b16 %v547
    %v621 = vunpack.c.h.b16 %v547
    %v622 = vunpack.c.l.b16 %v548
    %v623 = vunpack.c.h.b16 %v548
    %v624 = vunpack.c.l.b16 %v549
    %v625 = vunpack.c.h.b16 %v549
    %v626 = vunpack.c.l.b16 %v550
    %v627 = vunpack.c.h.b16 %v550
    %v628 = vunpack.c.l.b16 %v551
    %v629 = vunpack.c.h.b16 %v551
    %v630 = vunpack.c.l.b16 %v552
    %v631 = vunpack.c.h.b16 %v552
    %v632 = vunpack.c.l.b16 %v553
    %v633 = vunpack.c.h.b16 %v553
    %v634 = vunpack.c.l.b16 %v554
    %v635 = vunpack.c.h.b16 %v554
    %v636 = vunpack.c.l.b16 %v555
    %v637 = vunpack.c.h.b16 %v555
    %v638 = vunpack.c.l.b16 %v556
    %v639 = vunpack.c.h.b16 %v556
    %v640 = vunpack.c.l.b16 %v557
    %v641 = vunpack.c.h.b16 %v557
    %v642 = vunpack.c.l.b16 %v558
    %v643 = vunpack.c.h.b16 %v558
    %v644 = vunpack.c.l.b16 %v559
    %v645 = vunpack.c.h.b16 %v559
    %v646 = vunpack.c.l.b16 %v560
    %v647 = vunpack.c.h.b16 %v560
    %v648 = vunpack.c.l.b16 %v561
    %v649 = vunpack.c.h.b16 %v561
    %v650 = vunpack.c.l.b16 %v562
    %v651 = vunpack.c.h.b16 %v562
    %v652 = vunpack.c.l.b16 %v563
    %v653 = vunpack.c.h.b16 %v563
    %v654 = vunpack.c.l.b16 %v564
    %v655 = vunpack.c.h.b16 %v564
    %v656 = vunpack.c.l.b16 %v565
    %v657 = vunpack.c.h.b16 %v565
    %v658 = vunpack.c.l.b16 %v566
    %v659 = vunpack.c.h.b16 %v566
    %v660 = vunpack.c.l.b16 %v567
    %v661 = vunpack.c.h.b16 %v567
    %v662 = vunpack.c.l.b16 %v568
    %v663 = vunpack.c.h.b16 %v568
    %v664 = vunpack.c.l.b16 %v569
    %v665 = vunpack.c.h.b16 %v569
    %v666 = vpack.c.b16 %v606, %v602
    %v667 = vpack.c.b16 %v607, %v603
    %v668 = vpack.c.b16 %v608, %v604
    %v669 = vpack.c.b16 %v609, %v605
    %v670 = vpack.c.b16 %v614, %v610
    %v671 = vpack.c.b16 %v615, %v611
    %v672 = vpack.c.b16 %v616, %v612
    %v673 = vpack.c.b16 %v617, %v613
    %v674 = vpack.c.b16 %v622, %v618
    %v675 = vpack.c.b16 %v623, %v619
    %v676 = vpack.c.b16 %v624, %v620
    %v677 = vpack.c.b16 %v625, %v621
    %v678 = vpack.c.b16 %v630, %v626
    %v679 = vpack.c.b16 %v631, %v627
    %v680 = vpack.c.b16 %v632, %v628
    %v681 = vpack.c.b16 %v633, %v629
    %v682 = vpack.c.b16 %v638, %v634
    %v683 = vpack.c.b16 %v639, %v635
    %v684 = vpack.c.b16 %v640, %v636
    %v685 = vpack.c.b16 %v641, %v637
    %v686 = vpack.c.b16 %v646, %v642
    %v687 = vpack.c.b16 %v647, %v643
    %v688 = vpack.c.b16 %v648, %v644
    %v689 = vpack.c.b16 %v649, %v645
    %v690 = vpack.c.b16 %v654, %v650
    %v691 = vpack.c.b16 %v655, %v651
    %v692 = vpack.c.b16 %v656, %v652
    %v693 = vpack.c.b16 %v657, %v653
    %v694 = vpack.c.b16 %v662, %v658
    %v695 = vpack.c.b16 %v663, %v659
    %v696 = vpack.c.b16 %v664, %v660
    %v697 = vpack.c.b16 %v665, %v661
    %730 = vmatprep.subr.bf16.mxu0 %v695
    %731 = vmatpush1.bf16.msra.mxu0 %v694
    %732 = vmatprep.subr.bf16.mxu0 %v691
    %733 = vmatpush1.bf16.msra.mxu0 %v690
    %734 = vmatprep.subr.bf16.mxu0 %v687
    %735 = vmatpush1.bf16.msra.mxu0 %v686
    %736 = vmatprep.subr.bf16.mxu0 %v683
    %737 = vmatpush1.bf16.msra.mxu0 %v682
    %738 = vmatprep.subr.bf16.mxu0 %v679
    %739 = vmatpush1.bf16.msra.mxu0 %v678
    %740 = vmatprep.subr.bf16.mxu0 %v675
    %741 = vmatpush1.bf16.msra.mxu0 %v674
    %742 = vmatprep.subr.bf16.mxu0 %v671
    %743 = vmatpush1.bf16.msra.mxu0 %v670
    %744 = vmatprep.subr.bf16.mxu0 %v667
    %745 = vmatpush1.bf16.msra.mxu0 %v666
    %746 = vmatprep.subr.bf16.mxu0 0
    %747 = vmatpush2.bf16.msra.mxu0 0
    %748 = vmatprep.subr.bf16.mxu0 0
    %749 = vmatpush2.bf16.msra.mxu0 0
    %750 = vmatprep.subr.bf16.mxu0 0
    %751 = vmatpush2.bf16.msra.mxu0 0
    %752 = vmatprep.subr.bf16.mxu0 0
    %753 = vmatpush2.bf16.msra.mxu0 0
    %754 = vmatprep.subr.bf16.mxu0 0
    %755 = vmatpush2.bf16.msra.mxu0 0
    %756 = vmatprep.subr.bf16.mxu0 0
    %757 = vmatpush2.bf16.msra.mxu0 0
    %758 = vmatprep.subr.bf16.mxu0 0
    %759 = vmatpush2.bf16.msra.mxu0 0
    %760 = vmatprep.subr.bf16.mxu0 0
    %761 = vmatpush2.bf16.msra.mxu0 0
    %762 = vmatprep.mubr.bf16.mxu0 0
    %763 = vmatmul.mubr.bf16.gmra.mxu0 0
    %v764 = vpop.f32.mrf.mxu0
    %v765 = vadd.f32 0.0, %v764
    %v766 = vpop.f32.mrf.mxu0
    %v767 = vadd.f32 0.0, %v766
    %v768 = vpop.f32.mrf.mxu0
    %v769 = vpop.f32.mrf.mxu0
    %770 = vdwg.mxu0
    %771 = vmatprep.subr.bf16.mxu0 %v697
    %772 = vmatpush1.bf16.msra.mxu0 %v696
    %773 = vmatprep.subr.bf16.mxu0 %v693
    %774 = vmatpush1.bf16.msra.mxu0 %v692
    %775 = vmatprep.subr.bf16.mxu0 %v689
    %776 = vmatpush1.bf16.msra.mxu0 %v688
    %777 = vmatprep.subr.bf16.mxu0 %v685
    %778 = vmatpush1.bf16.msra.mxu0 %v684
    %779 = vmatprep.subr.bf16.mxu0 %v681
    %780 = vmatpush1.bf16.msra.mxu0 %v680
    %781 = vmatprep.subr.bf16.mxu0 %v677
    %782 = vmatpush1.bf16.msra.mxu0 %v676
    %783 = vmatprep.subr.bf16.mxu0 %v673
    %784 = vmatpush1.bf16.msra.mxu0 %v672
    %785 = vmatprep.subr.bf16.mxu0 %v669
    %786 = vmatpush1.bf16.msra.mxu0 %v668
    %787 = vmatprep.subr.bf16.mxu0 0
    %788 = vmatpush2.bf16.msra.mxu0 0
    %789 = vmatprep.subr.bf16.mxu0 0
    %790 = vmatpush2.bf16.msra.mxu0 0
    %791 = vmatprep.subr.bf16.mxu0 0
    %792 = vmatpush2.bf16.msra.mxu0 0
    %793 = vmatprep.subr.bf16.mxu0 0
    %794 = vmatpush2.bf16.msra.mxu0 0
    %795 = vmatprep.subr.bf16.mxu0 0
    %796 = vmatpush2.bf16.msra.mxu0 0
    %797 = vmatprep.subr.bf16.mxu0 0
    %798 = vmatpush2.bf16.msra.mxu0 0
    %799 = vmatprep.subr.bf16.mxu0 0
    %800 = vmatpush2.bf16.msra.mxu0 0
    %801 = vmatprep.subr.bf16.mxu0 0
    %802 = vmatpush2.bf16.msra.mxu0 0
    %803 = vmatprep.mubr.bf16.mxu0 0
    %804 = vmatmul.mubr.bf16.gmra.mxu0 0
    %v805 = vpop.f32.mrf.mxu0
    %v806 = vadd.f32 0.0, %v805
    %v807 = vpop.f32.mrf.mxu0
    %v808 = vadd.f32 0.0, %v807
    %v809 = vpop.f32.mrf.mxu0
    %v810 = vpop.f32.mrf.mxu0
    %811 = vdwg.mxu0
    %v812 = vadd.f32 %v534, %v765
    %v813 = vadd.f32 %v535, %v767
    %v814 = vadd.f32 %v536, %v806
    %v815 = vadd.f32 %v537, %v808
    %v816 = vxor.u32 %v812, 2147483648
    %v817 = vxor.u32 %v813, 2147483648
    %v818 = vxor.u32 %v814, 2147483648
    %v819 = vmul.f32 %v816, 1.442695
    %v820 = vpow.pop %v819
    %v821 = vmul.f32 %v817, 1.442695
    %v822 = vpow.pop %v821
    %v823 = vmul.f32 %v818, 1.442695
    %v824 = vpow.pop %v823
    %v825 = vadd.f32 %v820, 1.0
    %v826 = vadd.f32 %v822, 1.0
    %v827 = vadd.f32 %v824, 1.0
    %v828 = vrcp.pop %v825
    %v829 = vmul.f32 1.0, %v828
    %v830 = vrcp.pop %v826
    %v831 = vmul.f32 1.0, %v830
    %v832 = vrcp.pop %v827
    %v833 = vmul.f32 1.0, %v832
    %v834 = vtanh.pop %v815
    %v835 = vmul.f32 %v831, 0.0
    %v836 = vmul.f32 %v829, %v834
    %v837 = vadd.f32 %v835, %v836
    %v838 = vtanh.pop %v837
    %v839 = vmul.f32 %v833, %v838
    %v840 = vsel %vm533, %v839, 0.0
    %v841 = vsel %vm533, %v837, 0.0
    %v842 = vpack.c.bf16 %v840, %v840
    %v843 = vld [vmem:[#allocation9] sm:$0xff]
    %v844 = vld [vmem:[#allocation9 + $0x8] sm:$0xff]
    %v845 = vld [vmem:[#allocation9 + $0x10] sm:$0xff]
    %v846 = vld [vmem:[#allocation9 + $0x18] sm:$0xff]
    %v847 = vld [vmem:[#allocation9 + $0x20] sm:$0xff]
    %v848 = vld [vmem:[#allocation9 + $0x28] sm:$0xff]
    %v849 = vld [vmem:[#allocation9 + $0x30] sm:$0xff]
    %v850 = vld [vmem:[#allocation9 + $0x38] sm:$0xff]
    %v851 = vld [vmem:[#allocation9 + $0x40] sm:$0xff]
    %v852 = vld [vmem:[#allocation9 + $0x48] sm:$0xff]
    %v853 = vld [vmem:[#allocation9 + $0x50] sm:$0xff]
    %v854 = vld [vmem:[#allocation9 + $0x58] sm:$0xff]
    %v855 = vld [vmem:[#allocation9 + $0x60] sm:$0xff]
    %v856 = vld [vmem:[#allocation9 + $0x68] sm:$0xff]
    %v857 = vld [vmem:[#allocation9 + $0x70] sm:$0xff]
    %v858 = vld [vmem:[#allocation9 + $0x78] sm:$0xff]
    %v859 = vld [vmem:[#allocation9 + $0x80] sm:$0xff]
    %v860 = vld [vmem:[#allocation9 + $0x88] sm:$0xff]
    %v861 = vld [vmem:[#allocation9 + $0x90] sm:$0xff]
    %v862 = vld [vmem:[#allocation9 + $0x98] sm:$0xff]
    %v863 = vld [vmem:[#allocation9 + $0xa0] sm:$0xff]
    %v864 = vld [vmem:[#allocation9 + $0xa8] sm:$0xff]
    %v865 = vld [vmem:[#allocation9 + $0xb0] sm:$0xff]
    %v866 = vld [vmem:[#allocation9 + $0xb8] sm:$0xff]
    %v867 = vld [vmem:[#allocation9 + $0xc0] sm:$0xff]
    %v868 = vld [vmem:[#allocation9 + $0xc8] sm:$0xff]
    %v869 = vld [vmem:[#allocation9 + $0xd0] sm:$0xff]
    %v870 = vld [vmem:[#allocation9 + $0xd8] sm:$0xff]
    %v871 = vld [vmem:[#allocation9 + $0xe0] sm:$0xff]
    %v872 = vld [vmem:[#allocation9 + $0xe8] sm:$0xff]
    %v873 = vld [vmem:[#allocation9 + $0xf0] sm:$0xff]
    %v874 = vld [vmem:[#allocation9 + $0xf8] sm:$0xff]
    %v875 = vld [vmem:[#allocation11] sm:$0xff]
    %v876 = vld [vmem:[#allocation11 + $0x8] sm:$0xff]
    %v877 = vld [vmem:[#allocation11 + $0x10] sm:$0xff]
    %v878 = vld [vmem:[#allocation11 + $0x18] sm:$0xff]
    %v879 = vld [vmem:[#allocation11 + $0x20] sm:$0xff]
    %v880 = vld [vmem:[#allocation11 + $0x28] sm:$0xff]
    %v881 = vld [vmem:[#allocation11 + $0x30] sm:$0xff]
    %v882 = vld [vmem:[#allocation11 + $0x38] sm:$0xff]
    %v883 = vld [vmem:[#allocation11 + $0x40] sm:$0xff]
    %v884 = vld [vmem:[#allocation11 + $0x48] sm:$0xff]
    %v885 = vld [vmem:[#allocation11 + $0x50] sm:$0xff]
    %v886 = vld [vmem:[#allocation11 + $0x58] sm:$0xff]
    %v887 = vld [vmem:[#allocation11 + $0x60] sm:$0xff]
    %v888 = vld [vmem:[#allocation11 + $0x68] sm:$0xff]
    %v889 = vld [vmem:[#allocation11 + $0x70] sm:$0xff]
    %v890 = vld [vmem:[#allocation11 + $0x78] sm:$0xff]
    %v891 = vld [vmem:[#allocation11 + $0x80] sm:$0xff]
    %v892 = vld [vmem:[#allocation11 + $0x88] sm:$0xff]
    %v893 = vld [vmem:[#allocation11 + $0x90] sm:$0xff]
    %v894 = vld [vmem:[#allocation11 + $0x98] sm:$0xff]
    %v895 = vld [vmem:[#allocation11 + $0xa0] sm:$0xff]
    %v896 = vld [vmem:[#allocation11 + $0xa8] sm:$0xff]
    %v897 = vld [vmem:[#allocation11 + $0xb0] sm:$0xff]
    %v898 = vld [vmem:[#allocation11 + $0xb8] sm:$0xff]
    %v899 = vld [vmem:[#allocation11 + $0xc0] sm:$0xff]
    %v900 = vld [vmem:[#allocation11 + $0xc8] sm:$0xff]
    %v901 = vld [vmem:[#allocation11 + $0xd0] sm:$0xff]
    %v902 = vld [vmem:[#allocation11 + $0xd8] sm:$0xff]
    %v903 = vld [vmem:[#allocation11 + $0xe0] sm:$0xff]
    %v904 = vld [vmem:[#allocation11 + $0xe8] sm:$0xff]
    %v905 = vld [vmem:[#allocation11 + $0xf0] sm:$0xff]
    %v906 = vld [vmem:[#allocation11 + $0xf8] sm:$0xff]
    %v939 = vunpack.c.l.b16 %v875
    %v940 = vunpack.c.h.b16 %v875
    %v941 = vunpack.c.l.b16 %v876
    %v942 = vunpack.c.h.b16 %v876
    %v943 = vunpack.c.l.b16 %v877
    %v944 = vunpack.c.h.b16 %v877
    %v945 = vunpack.c.l.b16 %v878
    %v946 = vunpack.c.h.b16 %v878
    %v947 = vunpack.c.l.b16 %v879
    %v948 = vunpack.c.h.b16 %v879
    %v949 = vunpack.c.l.b16 %v880
    %v950 = vunpack.c.h.b16 %v880
    %v951 = vunpack.c.l.b16 %v881
    %v952 = vunpack.c.h.b16 %v881
    %v953 = vunpack.c.l.b16 %v882
    %v954 = vunpack.c.h.b16 %v882
    %v955 = vunpack.c.l.b16 %v883
    %v956 = vunpack.c.h.b16 %v883
    %v957 = vunpack.c.l.b16 %v884
    %v958 = vunpack.c.h.b16 %v884
    %v959 = vunpack.c.l.b16 %v885
    %v960 = vunpack.c.h.b16 %v885
    %v961 = vunpack.c.l.b16 %v886
    %v962 = vunpack.c.h.b16 %v886
    %v963 = vunpack.c.l.b16 %v887
    %v964 = vunpack.c.h.b16 %v887
    %v965 = vunpack.c.l.b16 %v888
    %v966 = vunpack.c.h.b16 %v888
    %v967 = vunpack.c.l.b16 %v889
    %v968 = vunpack.c.h.b16 %v889
    %v969 = vunpack.c.l.b16 %v890
    %v970 = vunpack.c.h.b16 %v890
    %v971 = vunpack.c.l.b16 %v891
    %v972 = vunpack.c.h.b16 %v891
    %v973 = vunpack.c.l.b16 %v892
    %v974 = vunpack.c.h.b16 %v892
    %v975 = vunpack.c.l.b16 %v893
    %v976 = vunpack.c.h.b16 %v893
    %v977 = vunpack.c.l.b16 %v894
    %v978 = vunpack.c.h.b16 %v894
    %v979 = vunpack.c.l.b16 %v895
    %v980 = vunpack.c.h.b16 %v895
    %v981 = vunpack.c.l.b16 %v896
    %v982 = vunpack.c.h.b16 %v896
    %v983 = vunpack.c.l.b16 %v897
    %v984 = vunpack.c.h.b16 %v897
    %v985 = vunpack.c.l.b16 %v898
    %v986 = vunpack.c.h.b16 %v898
    %v987 = vunpack.c.l.b16 %v899
    %v988 = vunpack.c.h.b16 %v899
    %v989 = vunpack.c.l.b16 %v900
    %v990 = vunpack.c.h.b16 %v900
    %v991 = vunpack.c.l.b16 %v901
    %v992 = vunpack.c.h.b16 %v901
    %v993 = vunpack.c.l.b16 %v902
    %v994 = vunpack.c.h.b16 %v902
    %v995 = vunpack.c.l.b16 %v903
    %v996 = vunpack.c.h.b16 %v903
    %v997 = vunpack.c.l.b16 %v904
    %v998 = vunpack.c.h.b16 %v904
    %v999 = vunpack.c.l.b16 %v905
    %v1000 = vunpack.c.h.b16 %v905
    %v1001 = vunpack.c.l.b16 %v906
    %v1002 = vunpack.c.h.b16 %v906
    %v1003 = vpack.c.b16 %v943, %v939
    %v1004 = vpack.c.b16 %v944, %v940
    %v1005 = vpack.c.b16 %v945, %v941
    %v1006 = vpack.c.b16 %v946, %v942
    %v1007 = vpack.c.b16 %v951, %v947
    %v1008 = vpack.c.b16 %v952, %v948
    %v1009 = vpack.c.b16 %v953, %v949
    %v1010 = vpack.c.b16 %v954, %v950
    %v1011 = vpack.c.b16 %v959, %v955
    %v1012 = vpack.c.b16 %v960, %v956
    %v1013 = vpack.c.b16 %v961, %v957
    %v1014 = vpack.c.b16 %v962, %v958
    %v1015 = vpack.c.b16 %v967, %v963
    %v1016 = vpack.c.b16 %v968, %v964
    %v1017 = vpack.c.b16 %v969, %v965
    %v1018 = vpack.c.b16 %v970, %v966
    %v1019 = vpack.c.b16 %v975, %v971
    %v1020 = vpack.c.b16 %v976, %v972
    %v1021 = vpack.c.b16 %v977, %v973
    %v1022 = vpack.c.b16 %v978, %v974
    %v1023 = vpack.c.b16 %v983, %v979
    %v1024 = vpack.c.b16 %v984, %v980
    %v1025 = vpack.c.b16 %v985, %v981
    %v1026 = vpack.c.b16 %v986, %v982
    %v1027 = vpack.c.b16 %v991, %v987
    %v1028 = vpack.c.b16 %v992, %v988
    %v1029 = vpack.c.b16 %v993, %v989
    %v1030 = vpack.c.b16 %v994, %v990
    %v1031 = vpack.c.b16 %v999, %v995
    %v1032 = vpack.c.b16 %v1000, %v996
    %v1033 = vpack.c.b16 %v1001, %v997
    %v1034 = vpack.c.b16 %v1002, %v998
    %1067 = vmatprep.subr.bf16.mxu0 %v1032
    %1068 = vmatpush1.bf16.msra.mxu0 %v1031
    %1069 = vmatprep.subr.bf16.mxu0 %v1028
    %1070 = vmatpush1.bf16.msra.mxu0 %v1027
    %1071 = vmatprep.subr.bf16.mxu0 %v1024
    %1072 = vmatpush1.bf16.msra.mxu0 %v1023
    %1073 = vmatprep.subr.bf16.mxu0 %v1020
    %1074 = vmatpush1.bf16.msra.mxu0 %v1019
    %1075 = vmatprep.subr.bf16.mxu0 %v1016
    %1076 = vmatpush1.bf16.msra.mxu0 %v1015
    %1077 = vmatprep.subr.bf16.mxu0 %v1012
    %1078 = vmatpush1.bf16.msra.mxu0 %v1011
    %1079 = vmatprep.subr.bf16.mxu0 %v1008
    %1080 = vmatpush1.bf16.msra.mxu0 %v1007
    %1081 = vmatprep.subr.bf16.mxu0 %v1004
    %1082 = vmatpush1.bf16.msra.mxu0 %v1003
    %1083 = vmatprep.subr.bf16.mxu0 0
    %1084 = vmatpush2.bf16.msra.mxu0 0
    %1085 = vmatprep.subr.bf16.mxu0 0
    %1086 = vmatpush2.bf16.msra.mxu0 0
    %1087 = vmatprep.subr.bf16.mxu0 0
    %1088 = vmatpush2.bf16.msra.mxu0 0
    %1089 = vmatprep.subr.bf16.mxu0 0
    %1090 = vmatpush2.bf16.msra.mxu0 0
    %1091 = vmatprep.subr.bf16.mxu0 0
    %1092 = vmatpush2.bf16.msra.mxu0 0
    %1093 = vmatprep.subr.bf16.mxu0 0
    %1094 = vmatpush2.bf16.msra.mxu0 0
    %1095 = vmatprep.subr.bf16.mxu0 0
    %1096 = vmatpush2.bf16.msra.mxu0 0
    %1097 = vmatprep.subr.bf16.mxu0 0
    %1098 = vmatpush2.bf16.msra.mxu0 0
    %1099 = vmatprep.mubr.bf16.mxu0 0
    %1100 = vmatmul.mubr.bf16.gmra.mxu0 0
    %v1101 = vpop.f32.mrf.mxu0
    %v1102 = vadd.f32 0.0, %v1101
    %v1103 = vpop.f32.mrf.mxu0
    %v1104 = vadd.f32 0.0, %v1103
    %v1105 = vpop.f32.mrf.mxu0
    %v1106 = vpop.f32.mrf.mxu0
    %1107 = vdwg.mxu0
    %1108 = vmatprep.subr.bf16.mxu0 %v1034
    %1109 = vmatpush1.bf16.msra.mxu0 %v1033
    %1110 = vmatprep.subr.bf16.mxu0 %v1030
    %1111 = vmatpush1.bf16.msra.mxu0 %v1029
    %1112 = vmatprep.subr.bf16.mxu0 %v1026
    %1113 = vmatpush1.bf16.msra.mxu0 %v1025
    %1114 = vmatprep.subr.bf16.mxu0 %v1022
    %1115 = vmatpush1.bf16.msra.mxu0 %v1021
    %1116 = vmatprep.subr.bf16.mxu0 %v1018
    %1117 = vmatpush1.bf16.msra.mxu0 %v1017
    %1118 = vmatprep.subr.bf16.mxu0 %v1014
    %1119 = vmatpush1.bf16.msra.mxu0 %v1013
    %1120 = vmatprep.subr.bf16.mxu0 %v1010
    %1121 = vmatpush1.bf16.msra.mxu0 %v1009
    %1122 = vmatprep.subr.bf16.mxu0 %v1006
    %1123 = vmatpush1.bf16.msra.mxu0 %v1005
    %1124 = vmatprep.subr.bf16.mxu0 0
    %1125 = vmatpush2.bf16.msra.mxu0 0
    %1126 = vmatprep.subr.bf16.mxu0 0
    %1127 = vmatpush2.bf16.msra.mxu0 0
    %1128 = vmatprep.subr.bf16.mxu0 0
    %1129 = vmatpush2.bf16.msra.mxu0 0
    %1130 = vmatprep.subr.bf16.mxu0 0
    %1131 = vmatpush2.bf16.msra.mxu0 0
    %1132 = vmatprep.subr.bf16.mxu0 0
    %1133 = vmatpush2.bf16.msra.mxu0 0
    %1134 = vmatprep.subr.bf16.mxu0 0
    %1135 = vmatpush2.bf16.msra.mxu0 0
    %1136 = vmatprep.subr.bf16.mxu0 0
    %1137 = vmatpush2.bf16.msra.mxu0 0
    %1138 = vmatprep.subr.bf16.mxu0 0
    %1139 = vmatpush2.bf16.msra.mxu0 0
    %1140 = vmatprep.mubr.bf16.mxu0 0
    %1141 = vmatmul.mubr.bf16.gmra.mxu0 0
    %v1142 = vpop.f32.mrf.mxu0
    %v1143 = vadd.f32 0.0, %v1142
    %v1144 = vpop.f32.mrf.mxu0
    %v1145 = vadd.f32 0.0, %v1144
    %v1146 = vpop.f32.mrf.mxu0
    %v1147 = vpop.f32.mrf.mxu0
    %1148 = vdwg.mxu0
    %v1181 = vunpack.c.l.b16 %v843
    %v1182 = vunpack.c.h.b16 %v843
    %v1183 = vunpack.c.l.b16 %v844
    %v1184 = vunpack.c.h.b16 %v844
    %v1185 = vunpack.c.l.b16 %v845
    %v1186 = vunpack.c.h.b16 %v845
    %v1187 = vunpack.c.l.b16 %v846
    %v1188 = vunpack.c.h.b16 %v846
    %v1189 = vunpack.c.l.b16 %v847
    %v1190 = vunpack.c.h.b16 %v847
    %v1191 = vunpack.c.l.b16 %v848
    %v1192 = vunpack.c.h.b16 %v848
    %v1193 = vunpack.c.l.b16 %v849
    %v1194 = vunpack.c.h.b16 %v849
    %v1195 = vunpack.c.l.b16 %v850
    %v1196 = vunpack.c.h.b16 %v850
    %v1197 = vunpack.c.l.b16 %v851
    %v1198 = vunpack.c.h.b16 %v851
    %v1199 = vunpack.c.l.b16 %v852
    %v1200 = vunpack.c.h.b16 %v852
    %v1201 = vunpack.c.l.b16 %v853
    %v1202 = vunpack.c.h.b16 %v853
    %v1203 = vunpack.c.l.b16 %v854
    %v1204 = vunpack.c.h.b16 %v854
    %v1205 = vunpack.c.l.b16 %v855
    %v1206 = vunpack.c.h.b16 %v855
    %v1207 = vunpack.c.l.b16 %v856
    %v1208 = vunpack.c.h.b16 %v856
    %v1209 = vunpack.c.l.b16 %v857
    %v1210 = vunpack.c.h.b16 %v857
    %v1211 = vunpack.c.l.b16 %v858
    %v1212 = vunpack.c.h.b16 %v858
    %v1213 = vunpack.c.l.b16 %v859
    %v1214 = vunpack.c.h.b16 %v859
    %v1215 = vunpack.c.l.b16 %v860
    %v1216 = vunpack.c.h.b16 %v860
    %v1217 = vunpack.c.l.b16 %v861
    %v1218 = vunpack.c.h.b16 %v861
    %v1219 = vunpack.c.l.b16 %v862
    %v1220 = vunpack.c.h.b16 %v862
    %v1221 = vunpack.c.l.b16 %v863
    %v1222 = vunpack.c.h.b16 %v863
    %v1223 = vunpack.c.l.b16 %v864
    %v1224 = vunpack.c.h.b16 %v864
    %v1225 = vunpack.c.l.b16 %v865
    %v1226 = vunpack.c.h.b16 %v865
    %v1227 = vunpack.c.l.b16 %v866
    %v1228 = vunpack.c.h.b16 %v866
    %v1229 = vunpack.c.l.b16 %v867
    %v1230 = vunpack.c.h.b16 %v867
    %v1231 = vunpack.c.l.b16 %v868
    %v1232 = vunpack.c.h.b16 %v868
    %v1233 = vunpack.c.l.b16 %v869
    %v1234 = vunpack.c.h.b16 %v869
    %v1235 = vunpack.c.l.b16 %v870
    %v1236 = vunpack.c.h.b16 %v870
    %v1237 = vunpack.c.l.b16 %v871
    %v1238 = vunpack.c.h.b16 %v871
    %v1239 = vunpack.c.l.b16 %v872
    %v1240 = vunpack.c.h.b16 %v872
    %v1241 = vunpack.c.l.b16 %v873
    %v1242 = vunpack.c.h.b16 %v873
    %v1243 = vunpack.c.l.b16 %v874
    %v1244 = vunpack.c.h.b16 %v874
    %v1245 = vpack.c.b16 %v1185, %v1181
    %v1246 = vpack.c.b16 %v1186, %v1182
    %v1247 = vpack.c.b16 %v1187, %v1183
    %v1248 = vpack.c.b16 %v1188, %v1184
    %v1249 = vpack.c.b16 %v1193, %v1189
    %v1250 = vpack.c.b16 %v1194, %v1190
    %v1251 = vpack.c.b16 %v1195, %v1191
    %v1252 = vpack.c.b16 %v1196, %v1192
    %v1253 = vpack.c.b16 %v1201, %v1197
    %v1254 = vpack.c.b16 %v1202, %v1198
    %v1255 = vpack.c.b16 %v1203, %v1199
    %v1256 = vpack.c.b16 %v1204, %v1200
    %v1257 = vpack.c.b16 %v1209, %v1205
    %v1258 = vpack.c.b16 %v1210, %v1206
    %v1259 = vpack.c.b16 %v1211, %v1207
    %v1260 = vpack.c.b16 %v1212, %v1208
    %v1261 = vpack.c.b16 %v1217, %v1213
    %v1262 = vpack.c.b16 %v1218, %v1214
    %v1263 = vpack.c.b16 %v1219, %v1215
    %v1264 = vpack.c.b16 %v1220, %v1216
    %v1265 = vpack.c.b16 %v1225, %v1221
    %v1266 = vpack.c.b16 %v1226, %v1222
    %v1267 = vpack.c.b16 %v1227, %v1223
    %v1268 = vpack.c.b16 %v1228, %v1224
    %v1269 = vpack.c.b16 %v1233, %v1229
    %v1270 = vpack.c.b16 %v1234, %v1230
    %v1271 = vpack.c.b16 %v1235, %v1231
    %v1272 = vpack.c.b16 %v1236, %v1232
    %v1273 = vpack.c.b16 %v1241, %v1237
    %v1274 = vpack.c.b16 %v1242, %v1238
    %v1275 = vpack.c.b16 %v1243, %v1239
    %v1276 = vpack.c.b16 %v1244, %v1240
    %1309 = vmatprep.subr.bf16.mxu0 %v1274
    %1310 = vmatpush1.bf16.msra.mxu0 %v1273
    %1311 = vmatprep.subr.bf16.mxu0 %v1270
    %1312 = vmatpush1.bf16.msra.mxu0 %v1269
    %1313 = vmatprep.subr.bf16.mxu0 %v1266
    %1314 = vmatpush1.bf16.msra.mxu0 %v1265
    %1315 = vmatprep.subr.bf16.mxu0 %v1262
    %1316 = vmatpush1.bf16.msra.mxu0 %v1261
    %1317 = vmatprep.subr.bf16.mxu0 %v1258
    %1318 = vmatpush1.bf16.msra.mxu0 %v1257
    %1319 = vmatprep.subr.bf16.mxu0 %v1254
    %1320 = vmatpush1.bf16.msra.mxu0 %v1253
    %1321 = vmatprep.subr.bf16.mxu0 %v1250
    %1322 = vmatpush1.bf16.msra.mxu0 %v1249
    %1323 = vmatprep.subr.bf16.mxu0 %v1246
    %1324 = vmatpush1.bf16.msra.mxu0 %v1245
    %1325 = vmatprep.subr.bf16.mxu0 0
    %1326 = vmatpush2.bf16.msra.mxu0 0
    %1327 = vmatprep.subr.bf16.mxu0 0
    %1328 = vmatpush2.bf16.msra.mxu0 0
    %1329 = vmatprep.subr.bf16.mxu0 0
    %1330 = vmatpush2.bf16.msra.mxu0 0
    %1331 = vmatprep.subr.bf16.mxu0 0
    %1332 = vmatpush2.bf16.msra.mxu0 0
    %1333 = vmatprep.subr.bf16.mxu0 0
    %1334 = vmatpush2.bf16.msra.mxu0 0
    %1335 = vmatprep.subr.bf16.mxu0 0
    %1336 = vmatpush2.bf16.msra.mxu0 0
    %1337 = vmatprep.subr.bf16.mxu0 0
    %1338 = vmatpush2.bf16.msra.mxu0 0
    %1339 = vmatprep.subr.bf16.mxu0 0
    %1340 = vmatpush2.bf16.msra.mxu0 0
    %1341 = vmatprep.mubr.bf16.mxu0 0
    %1342 = vmatmul.mubr.bf16.gmra.mxu0 %v842
    %v1343 = vpop.f32.mrf.mxu0
    %v1344 = vadd.f32 %v1102, %v1343
    %v1345 = vpop.f32.mrf.mxu0
    %v1346 = vadd.f32 %v1104, %v1345
    %v1347 = vpop.f32.mrf.mxu0
    %v1348 = vpop.f32.mrf.mxu0
    %1349 = vdwg.mxu0
    %1350 = vmatprep.subr.bf16.mxu0 %v1276
    %1351 = vmatpush1.bf16.msra.mxu0 %v1275
    %1352 = vmatprep.subr.bf16.mxu0 %v1272
    %1353 = vmatpush1.bf16.msra.mxu0 %v1271
    %1354 = vmatprep.subr.bf16.mxu0 %v1268
    %1355 = vmatpush1.bf16.msra.mxu0 %v1267
    %1356 = vmatprep.subr.bf16.mxu0 %v1264
    %1357 = vmatpush1.bf16.msra.mxu0 %v1263
    %1358 = vmatprep.subr.bf16.mxu0 %v1260
    %1359 = vmatpush1.bf16.msra.mxu0 %v1259
    %1360 = vmatprep.subr.bf16.mxu0 %v1256
    %1361 = vmatpush1.bf16.msra.mxu0 %v1255
    %1362 = vmatprep.subr.bf16.mxu0 %v1252
    %1363 = vmatpush1.bf16.msra.mxu0 %v1251
    %1364 = vmatprep.subr.bf16.mxu0 %v1248
    %1365 = vmatpush1.bf16.msra.mxu0 %v1247
    %1366 = vmatprep.subr.bf16.mxu0 0
    %1367 = vmatpush2.bf16.msra.mxu0 0
    %1368 = vmatprep.subr.bf16.mxu0 0
    %1369 = vmatpush2.bf16.msra.mxu0 0
    %1370 = vmatprep.subr.bf16.mxu0 0
    %1371 = vmatpush2.bf16.msra.mxu0 0
    %1372 = vmatprep.subr.bf16.mxu0 0
    %1373 = vmatpush2.bf16.msra.mxu0 0
    %1374 = vmatprep.subr.bf16.mxu0 0
    %1375 = vmatpush2.bf16.msra.mxu0 0
    %1376 = vmatprep.subr.bf16.mxu0 0
    %1377 = vmatpush2.bf16.msra.mxu0 0
    %1378 = vmatprep.subr.bf16.mxu0 0
    %1379 = vmatpush2.bf16.msra.mxu0 0
    %1380 = vmatprep.subr.bf16.mxu0 0
    %1381 = vmatpush2.bf16.msra.mxu0 0
    %1382 = vmatprep.mubr.bf16.mxu0 0
    %1383 = vmatmul.mubr.bf16.gmra.mxu0 %v842
    %v1384 = vpop.f32.mrf.mxu0
    %v1385 = vadd.f32 %v1143, %v1384
    %v1386 = vpop.f32.mrf.mxu0
    %v1387 = vadd.f32 %v1145, %v1386
    %v1388 = vpop.f32.mrf.mxu0
    %v1389 = vpop.f32.mrf.mxu0
    %1390 = vdwg.mxu0
    %v1392 = vlaneseq
    %v1393 = vshrl.u32 %v1392, 7
    %v1394 = vsub.s32 0, %v1393
    %v1395 = vrot.slane %v527, %v1394
    %v1396 = vlaneseq
    %v1397 = vshrl.u32 %v1396, 7
    %v1398 = vsub.s32 1, %v1397
    %v1399 = vrot.slane %v527, %v1398
    %v1400 = vlaneseq
    %v1401 = vshrl.u32 %v1400, 7
    %v1402 = vsub.s32 2, %v1401
    %v1403 = vrot.slane %v527, %v1402
    %v1404 = vlaneseq
    %v1405 = vshrl.u32 %v1404, 7
    %v1406 = vsub.s32 3, %v1405
    %v1407 = vrot.slane %v527, %v1406
    %v1412 = vadd.f32 %v1344, %v1395
    %v1413 = vadd.f32 %v1346, %v1399
    %v1414 = vadd.f32 %v1385, %v1403
    %v1415 = vadd.f32 %v1387, %v1407
    %v1416 = vxor.u32 %v1412, 2147483648
    %v1417 = vxor.u32 %v1413, 2147483648
    %v1418 = vxor.u32 %v1414, 2147483648
    %v1419 = vmul.f32 %v1416, 1.442695
    %v1420 = vpow.pop %v1419
    %v1421 = vmul.f32 %v1417, 1.442695
    %v1422 = vpow.pop %v1421
    %v1423 = vmul.f32 %v1418, 1.442695
    %v1424 = vpow.pop %v1423
    %v1425 = vadd.f32 %v1420, 1.0
    %v1426 = vadd.f32 %v1422, 1.0
    %v1427 = vadd.f32 %v1424, 1.0
    %v1428 = vrcp.pop %v1425
    %v1429 = vmul.f32 1.0, %v1428
    %v1430 = vrcp.pop %v1426
    %v1431 = vmul.f32 1.0, %v1430
    %v1432 = vrcp.pop %v1427
    %v1433 = vmul.f32 1.0, %v1432
    %v1434 = vtanh.pop %v1415
    %v1435 = vmul.f32 %v1431, 0.0
    %v1436 = vmul.f32 %v1429, %v1434
    %v1437 = vadd.f32 %v1435, %v1436
    %v1438 = vtanh.pop %v1437
    %v1439 = vmul.f32 %v1433, %v1438
    %v1440 = vsel %vm533, %v1439, 0.0
    %v1441 = vsel %vm533, %v1437, 0.0
    %vm1442 = vcmp.gt.s32.totalorder %v526, 1
    %v1443 = vsel %vm1442, 1, 0
    %1444 = vset.pattern.permute.xlu0 0
    %1445 = vperm.xlu0 %1444, %v1443
    %v1446 = vpop.permute.xlu0 %1445
    %vm1447 = vcmp.eq.s32.totalorder %v1446, 1
    %s1448 = scalar_lea.vmem [#allocation2], 32
    %v1449 = vld [vmem:[%s1448] sm:$0xff]
    %v1450 = vld [vmem:[%s1448 + $0x8] sm:$0xff]
    %v1451 = vld [vmem:[%s1448 + $0x10] sm:$0xff]
    %v1452 = vld [vmem:[%s1448 + $0x18] sm:$0xff]
    %1453 = vmatprep.subr.bf16.mxu0 %v695
    %1454 = vmatpush1.bf16.msra.mxu0 %v694
    %1455 = vmatprep.subr.bf16.mxu0 %v691
    %1456 = vmatpush1.bf16.msra.mxu0 %v690
    %1457 = vmatprep.subr.bf16.mxu0 %v687
    %1458 = vmatpush1.bf16.msra.mxu0 %v686
    %1459 = vmatprep.subr.bf16.mxu0 %v683
    %1460 = vmatpush1.bf16.msra.mxu0 %v682
    %1461 = vmatprep.subr.bf16.mxu0 %v679
    %1462 = vmatpush1.bf16.msra.mxu0 %v678
    %1463 = vmatprep.subr.bf16.mxu0 %v675
    %1464 = vmatpush1.bf16.msra.mxu0 %v674
    %1465 = vmatprep.subr.bf16.mxu0 %v671
    %1466 = vmatpush1.bf16.msra.mxu0 %v670
    %1467 = vmatprep.subr.bf16.mxu0 %v667
    %1468 = vmatpush1.bf16.msra.mxu0 %v666
    %1469 = vmatprep.subr.bf16.mxu0 0
    %1470 = vmatpush2.bf16.msra.mxu0 0
    %1471 = vmatprep.subr.bf16.mxu0 0
    %1472 = vmatpush2.bf16.msra.mxu0 0
    %1473 = vmatprep.subr.bf16.mxu0 0
    %1474 = vmatpush2.bf16.msra.mxu0 0
    %1475 = vmatprep.subr.bf16.mxu0 0
    %1476 = vmatpush2.bf16.msra.mxu0 0
    %1477 = vmatprep.subr.bf16.mxu0 0
    %1478 = vmatpush2.bf16.msra.mxu0 0
    %1479 = vmatprep.subr.bf16.mxu0 0
    %1480 = vmatpush2.bf16.msra.mxu0 0
    %1481 = vmatprep.subr.bf16.mxu0 0
    %1482 = vmatpush2.bf16.msra.mxu0 0
    %1483 = vmatprep.subr.bf16.mxu0 0
    %1484 = vmatpush2.bf16.msra.mxu0 0
    %1485 = vmatprep.mubr.bf16.mxu0 0
    %1486 = vmatmul.mubr.bf16.gmra.mxu0 %v842
    %v1487 = vpop.f32.mrf.mxu0
    %v1488 = vadd.f32 0.0, %v1487
    %v1489 = vpop.f32.mrf.mxu0
    %v1490 = vadd.f32 0.0, %v1489
    %v1491 = vpop.f32.mrf.mxu0
    %v1492 = vpop.f32.mrf.mxu0
    %1493 = vdwg.mxu0
    %1494 = vmatprep.subr.bf16.mxu0 %v697
    %1495 = vmatpush1.bf16.msra.mxu0 %v696
    %1496 = vmatprep.subr.bf16.mxu0 %v693
    %1497 = vmatpush1.bf16.msra.mxu0 %v692
    %1498 = vmatprep.subr.bf16.mxu0 %v689
    %1499 = vmatpush1.bf16.msra.mxu0 %v688
    %1500 = vmatprep.subr.bf16.mxu0 %v685
    %1501 = vmatpush1.bf16.msra.mxu0 %v684
    %1502 = vmatprep.subr.bf16.mxu0 %v681
    %1503 = vmatpush1.bf16.msra.mxu0 %v680
    %1504 = vmatprep.subr.bf16.mxu0 %v677
    %1505 = vmatpush1.bf16.msra.mxu0 %v676
    %1506 = vmatprep.subr.bf16.mxu0 %v673
    %1507 = vmatpush1.bf16.msra.mxu0 %v672
    %1508 = vmatprep.subr.bf16.mxu0 %v669
    %1509 = vmatpush1.bf16.msra.mxu0 %v668
    %1510 = vmatprep.subr.bf16.mxu0 0
    %1511 = vmatpush2.bf16.msra.mxu0 0
    %1512 = vmatprep.subr.bf16.mxu0 0
    %1513 = vmatpush2.bf16.msra.mxu0 0
    %1514 = vmatprep.subr.bf16.mxu0 0
    %1515 = vmatpush2.bf16.msra.mxu0 0
    %1516 = vmatprep.subr.bf16.mxu0 0
    %1517 = vmatpush2.bf16.msra.mxu0 0
    %1518 = vmatprep.subr.bf16.mxu0 0
    %1519 = vmatpush2.bf16.msra.mxu0 0
    %1520 = vmatprep.subr.bf16.mxu0 0
    %1521 = vmatpush2.bf16.msra.mxu0 0
    %1522 = vmatprep.subr.bf16.mxu0 0
    %1523 = vmatpush2.bf16.msra.mxu0 0
    %1524 = vmatprep.subr.bf16.mxu0 0
    %1525 = vmatpush2.bf16.msra.mxu0 0
    %1526 = vmatprep.mubr.bf16.mxu0 0
    %1527 = vmatmul.mubr.bf16.gmra.mxu0 %v842
    %v1528 = vpop.f32.mrf.mxu0
    %v1529 = vadd.f32 0.0, %v1528
    %v1530 = vpop.f32.mrf.mxu0
    %v1531 = vadd.f32 0.0, %v1530
    %v1532 = vpop.f32.mrf.mxu0
    %v1533 = vpop.f32.mrf.mxu0
    %1534 = vdwg.mxu0
    %v1535 = vadd.f32 %v1449, %v1488
    %v1536 = vadd.f32 %v1450, %v1490
    %v1537 = vadd.f32 %v1451, %v1529
    %v1538 = vadd.f32 %v1452, %v1531
    %v1539 = vxor.u32 %v1535, 2147483648
    %v1540 = vxor.u32 %v1536, 2147483648
    %v1541 = vxor.u32 %v1537, 2147483648
    %v1542 = vmul.f32 %v1539, 1.442695
    %v1543 = vpow.pop %v1542
    %v1544 = vmul.f32 %v1540, 1.442695
    %v1545 = vpow.pop %v1544
    %v1546 = vmul.f32 %v1541, 1.442695
    %v1547 = vpow.pop %v1546
    %v1548 = vadd.f32 %v1543, 1.0
    %v1549 = vadd.f32 %v1545, 1.0
    %v1550 = vadd.f32 %v1547, 1.0
    %v1551 = vrcp.pop %v1548
    %v1552 = vmul.f32 1.0, %v1551
    %v1553 = vrcp.pop %v1549
    %v1554 = vmul.f32 1.0, %v1553
    %v1555 = vrcp.pop %v1550
    %v1556 = vmul.f32 1.0, %v1555
    %v1557 = vtanh.pop %v1538
    %v1558 = vmul.f32 %v1554, %v841
    %v1559 = vmul.f32 %v1552, %v1557
    %v1560 = vadd.f32 %v1558, %v1559
    %v1561 = vtanh.pop %v1560
    %v1562 = vmul.f32 %v1556, %v1561
    %v1563 = vsel %vm1447, %v1562, %v840
    %v1564 = vsel %vm1447, %v1560, %v841
    %v1565 = vpack.c.bf16 %v1563, %v1563
    %v1566 = vpack.c.bf16 %v1440, %v1440
    %1567 = vmatprep.subr.bf16.mxu0 %v1032
    %1568 = vmatpush1.bf16.msra.mxu0 %v1031
    %1569 = vmatprep.subr.bf16.mxu0 %v1028
    %1570 = vmatpush1.bf16.msra.mxu0 %v1027
    %1571 = vmatprep.subr.bf16.mxu0 %v1024
    %1572 = vmatpush1.bf16.msra.mxu0 %v1023
    %1573 = vmatprep.subr.bf16.mxu0 %v1020
    %1574 = vmatpush1.bf16.msra.mxu0 %v1019
    %1575 = vmatprep.subr.bf16.mxu0 %v1016
    %1576 = vmatpush1.bf16.msra.mxu0 %v1015
    %1577 = vmatprep.subr.bf16.mxu0 %v1012
    %1578 = vmatpush1.bf16.msra.mxu0 %v1011
    %1579 = vmatprep.subr.bf16.mxu0 %v1008
    %1580 = vmatpush1.bf16.msra.mxu0 %v1007
    %1581 = vmatprep.subr.bf16.mxu0 %v1004
    %1582 = vmatpush1.bf16.msra.mxu0 %v1003
    %1583 = vmatprep.subr.bf16.mxu0 0
    %1584 = vmatpush2.bf16.msra.mxu0 0
    %1585 = vmatprep.subr.bf16.mxu0 0
    %1586 = vmatpush2.bf16.msra.mxu0 0
    %1587 = vmatprep.subr.bf16.mxu0 0
    %1588 = vmatpush2.bf16.msra.mxu0 0
    %1589 = vmatprep.subr.bf16.mxu0 0
    %1590 = vmatpush2.bf16.msra.mxu0 0
    %1591 = vmatprep.subr.bf16.mxu0 0
    %1592 = vmatpush2.bf16.msra.mxu0 0
    %1593 = vmatprep.subr.bf16.mxu0 0
    %1594 = vmatpush2.bf16.msra.mxu0 0
    %1595 = vmatprep.subr.bf16.mxu0 0
    %1596 = vmatpush2.bf16.msra.mxu0 0
    %1597 = vmatprep.subr.bf16.mxu0 0
    %1598 = vmatpush2.bf16.msra.mxu0 0
    %1599 = vmatprep.mubr.bf16.mxu0 0
    %1600 = vmatmul.mubr.bf16.gmra.mxu0 %v1566
    %v1601 = vpop.f32.mrf.mxu0
    %v1602 = vadd.f32 0.0, %v1601
    %v1603 = vpop.f32.mrf.mxu0
    %v1604 = vadd.f32 0.0, %v1603
    %v1605 = vpop.f32.mrf.mxu0
    %v1606 = vpop.f32.mrf.mxu0
    %1607 = vdwg.mxu0
    %1608 = vmatprep.subr.bf16.mxu0 %v1034
    %1609 = vmatpush1.bf16.msra.mxu0 %v1033
    %1610 = vmatprep.subr.bf16.mxu0 %v1030
    %1611 = vmatpush1.bf16.msra.mxu0 %v1029
    %1612 = vmatprep.subr.bf16.mxu0 %v1026
    %1613 = vmatpush1.bf16.msra.mxu0 %v1025
    %1614 = vmatprep.subr.bf16.mxu0 %v1022
    %1615 = vmatpush1.bf16.msra.mxu0 %v1021
    %1616 = vmatprep.subr.bf16.mxu0 %v1018
    %1617 = vmatpush1.bf16.msra.mxu0 %v1017
    %1618 = vmatprep.subr.bf16.mxu0 %v1014
    %1619 = vmatpush1.bf16.msra.mxu0 %v1013
    %1620 = vmatprep.subr.bf16.mxu0 %v1010
    %1621 = vmatpush1.bf16.msra.mxu0 %v1009
    %1622 = vmatprep.subr.bf16.mxu0 %v1006
    %1623 = vmatpush1.bf16.msra.mxu0 %v1005
    %1624 = vmatprep.subr.bf16.mxu0 0
    %1625 = vmatpush2.bf16.msra.mxu0 0
    %1626 = vmatprep.subr.bf16.mxu0 0
    %1627 = vmatpush2.bf16.msra.mxu0 0
    %1628 = vmatprep.subr.bf16.mxu0 0
    %1629 = vmatpush2.bf16.msra.mxu0 0
    %1630 = vmatprep.subr.bf16.mxu0 0
    %1631 = vmatpush2.bf16.msra.mxu0 0
    %1632 = vmatprep.subr.bf16.mxu0 0
    %1633 = vmatpush2.bf16.msra.mxu0 0
    %1634 = vmatprep.subr.bf16.mxu0 0
    %1635 = vmatpush2.bf16.msra.mxu0 0
    %1636 = vmatprep.subr.bf16.mxu0 0
    %1637 = vmatpush2.bf16.msra.mxu0 0
    %1638 = vmatprep.subr.bf16.mxu0 0
    %1639 = vmatpush2.bf16.msra.mxu0 0
    %1640 = vmatprep.mubr.bf16.mxu0 0
    %1641 = vmatmul.mubr.bf16.gmra.mxu0 %v1566
    %v1642 = vpop.f32.mrf.mxu0
    %v1643 = vadd.f32 0.0, %v1642
    %v1644 = vpop.f32.mrf.mxu0
    %v1645 = vadd.f32 0.0, %v1644
    %v1646 = vpop.f32.mrf.mxu0
    %v1647 = vpop.f32.mrf.mxu0
    %1648 = vdwg.mxu0
    %1649 = vmatprep.subr.bf16.mxu0 %v1274
    %1650 = vmatpush1.bf16.msra.mxu0 %v1273
    %1651 = vmatprep.subr.bf16.mxu0 %v1270
    %1652 = vmatpush1.bf16.msra.mxu0 %v1269
    %1653 = vmatprep.subr.bf16.mxu0 %v1266
    %1654 = vmatpush1.bf16.msra.mxu0 %v1265
    %1655 = vmatprep.subr.bf16.mxu0 %v1262
    %1656 = vmatpush1.bf16.msra.mxu0 %v1261
    %1657 = vmatprep.subr.bf16.mxu0 %v1258
    %1658 = vmatpush1.bf16.msra.mxu0 %v1257
    %1659 = vmatprep.subr.bf16.mxu0 %v1254
    %1660 = vmatpush1.bf16.msra.mxu0 %v1253
    %1661 = vmatprep.subr.bf16.mxu0 %v1250
    %1662 = vmatpush1.bf16.msra.mxu0 %v1249
    %1663 = vmatprep.subr.bf16.mxu0 %v1246
    %1664 = vmatpush1.bf16.msra.mxu0 %v1245
    %1665 = vmatprep.subr.bf16.mxu0 0
    %1666 = vmatpush2.bf16.msra.mxu0 0
    %1667 = vmatprep.subr.bf16.mxu0 0
    %1668 = vmatpush2.bf16.msra.mxu0 0
    %1669 = vmatprep.subr.bf16.mxu0 0
    %1670 = vmatpush2.bf16.msra.mxu0 0
    %1671 = vmatprep.subr.bf16.mxu0 0
    %1672 = vmatpush2.bf16.msra.mxu0 0
    %1673 = vmatprep.subr.bf16.mxu0 0
    %1674 = vmatpush2.bf16.msra.mxu0 0
    %1675 = vmatprep.subr.bf16.mxu0 0
    %1676 = vmatpush2.bf16.msra.mxu0 0
    %1677 = vmatprep.subr.bf16.mxu0 0
    %1678 = vmatpush2.bf16.msra.mxu0 0
    %1679 = vmatprep.subr.bf16.mxu0 0
    %1680 = vmatpush2.bf16.msra.mxu0 0
    %1681 = vmatprep.mubr.bf16.mxu0 0
    %1682 = vmatmul.mubr.bf16.gmra.mxu0 %v1565
    %v1683 = vpop.f32.mrf.mxu0
    %v1684 = vadd.f32 %v1602, %v1683
    %v1685 = vpop.f32.mrf.mxu0
    %v1686 = vadd.f32 %v1604, %v1685
    %v1687 = vpop.f32.mrf.mxu0
    %v1688 = vpop.f32.mrf.mxu0
    %1689 = vdwg.mxu0
    %1690 = vmatprep.subr.bf16.mxu0 %v1276
    %1691 = vmatpush1.bf16.msra.mxu0 %v1275
    %1692 = vmatprep.subr.bf16.mxu0 %v1272
    %1693 = vmatpush1.bf16.msra.mxu0 %v1271
    %1694 = vmatprep.subr.bf16.mxu0 %v1268
    %1695 = vmatpush1.bf16.msra.mxu0 %v1267
    %1696 = vmatprep.subr.bf16.mxu0 %v1264
    %1697 = vmatpush1.bf16.msra.mxu0 %v1263
    %1698 = vmatprep.subr.bf16.mxu0 %v1260
    %1699 = vmatpush1.bf16.msra.mxu0 %v1259
    %1700 = vmatprep.subr.bf16.mxu0 %v1256
    %1701 = vmatpush1.bf16.msra.mxu0 %v1255
    %1702 = vmatprep.subr.bf16.mxu0 %v1252
    %1703 = vmatpush1.bf16.msra.mxu0 %v1251
    %1704 = vmatprep.subr.bf16.mxu0 %v1248
    %1705 = vmatpush1.bf16.msra.mxu0 %v1247
    %1706 = vmatprep.subr.bf16.mxu0 0
    %1707 = vmatpush2.bf16.msra.mxu0 0
    %1708 = vmatprep.subr.bf16.mxu0 0
    %1709 = vmatpush2.bf16.msra.mxu0 0
    %1710 = vmatprep.subr.bf16.mxu0 0
    %1711 = vmatpush2.bf16.msra.mxu0 0
    %1712 = vmatprep.subr.bf16.mxu0 0
    %1713 = vmatpush2.bf16.msra.mxu0 0
    %1714 = vmatprep.subr.bf16.mxu0 0
    %1715 = vmatpush2.bf16.msra.mxu0 0
    %1716 = vmatprep.subr.bf16.mxu0 0
    %1717 = vmatpush2.bf16.msra.mxu0 0
    %1718 = vmatprep.subr.bf16.mxu0 0
    %1719 = vmatpush2.bf16.msra.mxu0 0
    %1720 = vmatprep.subr.bf16.mxu0 0
    %1721 = vmatpush2.bf16.msra.mxu0 0
    %1722 = vmatprep.mubr.bf16.mxu0 0
    %1723 = vmatmul.mubr.bf16.gmra.mxu0 %v1565
    %v1724 = vpop.f32.mrf.mxu0
    %v1725 = vadd.f32 %v1643, %v1724
    %v1726 = vpop.f32.mrf.mxu0
    %v1727 = vadd.f32 %v1645, %v1726
    %v1728 = vpop.f32.mrf.mxu0
    %v1729 = vpop.f32.mrf.mxu0
    %1730 = vdwg.mxu0
    %v1731 = vadd.f32 %v1684, %v1395
    %v1732 = vadd.f32 %v1686, %v1399
    %v1733 = vadd.f32 %v1725, %v1403
    %v1734 = vadd.f32 %v1727, %v1407
    %v1735 = vxor.u32 %v1731, 2147483648
    %v1736 = vxor.u32 %v1732, 2147483648
    %v1737 = vxor.u32 %v1733, 2147483648
    %v1738 = vmul.f32 %v1735, 1.442695
    %v1739 = vpow.pop %v1738
    %v1740 = vmul.f32 %v1736, 1.442695
    %v1741 = vpow.pop %v1740
    %v1742 = vmul.f32 %v1737, 1.442695
    %v1743 = vpow.pop %v1742
    %v1744 = vadd.f32 %v1739, 1.0
    %v1745 = vadd.f32 %v1741, 1.0
    %v1746 = vadd.f32 %v1743, 1.0
    %v1747 = vrcp.pop %v1744
    %v1748 = vmul.f32 1.0, %v1747
    %v1749 = vrcp.pop %v1745
    %v1750 = vmul.f32 1.0, %v1749
    %v1751 = vrcp.pop %v1746
    %v1752 = vmul.f32 1.0, %v1751
    %v1753 = vtanh.pop %v1734
    %v1754 = vmul.f32 %v1750, %v1441
    %v1755 = vmul.f32 %v1748, %v1753
    %v1756 = vadd.f32 %v1754, %v1755
    %v1757 = vtanh.pop %v1756
    %v1758 = vmul.f32 %v1752, %v1757
    %v1759 = vsel %vm1447, %v1758, %v1440
    %v1760 = vsel %vm1447, %v1756, %v1441
    %vm1761 = vcmp.gt.s32.totalorder %v526, 2
    %v1762 = vsel %vm1761, 1, 0
    %1763 = vset.pattern.permute.xlu0 0
    %1764 = vperm.xlu0 %1763, %v1762
    %v1765 = vpop.permute.xlu0 %1764
    %vm1766 = vcmp.eq.s32.totalorder %v1765, 1
    %s1767 = scalar_lea.vmem [#allocation2], 64
    %v1768 = vld [vmem:[%s1767] sm:$0xff]
    %v1769 = vld [vmem:[%s1767 + $0x8] sm:$0xff]
    %v1770 = vld [vmem:[%s1767 + $0x10] sm:$0xff]
    %v1771 = vld [vmem:[%s1767 + $0x18] sm:$0xff]
    %1772 = vmatprep.subr.bf16.mxu0 %v695
    %1773 = vmatpush1.bf16.msra.mxu0 %v694
    %1774 = vmatprep.subr.bf16.mxu0 %v691
    %1775 = vmatpush1.bf16.msra.mxu0 %v690
    %1776 = vmatprep.subr.bf16.mxu0 %v687
    %1777 = vmatpush1.bf16.msra.mxu0 %v686
    %1778 = vmatprep.subr.bf16.mxu0 %v683
    %1779 = vmatpush1.bf16.msra.mxu0 %v682
    %1780 = vmatprep.subr.bf16.mxu0 %v679
    %1781 = vmatpush1.bf16.msra.mxu0 %v678
    %1782 = vmatprep.subr.bf16.mxu0 %v675
    %1783 = vmatpush1.bf16.msra.mxu0 %v674
    %1784 = vmatprep.subr.bf16.mxu0 %v671
    %1785 = vmatpush1.bf16.msra.mxu0 %v670
    %1786 = vmatprep.subr.bf16.mxu0 %v667
    %1787 = vmatpush1.bf16.msra.mxu0 %v666
    %1788 = vmatprep.subr.bf16.mxu0 0
    %1789 = vmatpush2.bf16.msra.mxu0 0
    %1790 = vmatprep.subr.bf16.mxu0 0
    %1791 = vmatpush2.bf16.msra.mxu0 0
    %1792 = vmatprep.subr.bf16.mxu0 0
    %1793 = vmatpush2.bf16.msra.mxu0 0
    %1794 = vmatprep.subr.bf16.mxu0 0
    %1795 = vmatpush2.bf16.msra.mxu0 0
    %1796 = vmatprep.subr.bf16.mxu0 0
    %1797 = vmatpush2.bf16.msra.mxu0 0
    %1798 = vmatprep.subr.bf16.mxu0 0
    %1799 = vmatpush2.bf16.msra.mxu0 0
    %1800 = vmatprep.subr.bf16.mxu0 0
    %1801 = vmatpush2.bf16.msra.mxu0 0
    %1802 = vmatprep.subr.bf16.mxu0 0
    %1803 = vmatpush2.bf16.msra.mxu0 0
    %1804 = vmatprep.mubr.bf16.mxu0 0
    %1805 = vmatmul.mubr.bf16.gmra.mxu0 %v1565
    %v1806 = vpop.f32.mrf.mxu0
    %v1807 = vadd.f32 0.0, %v1806
    %v1808 = vpop.f32.mrf.mxu0
    %v1809 = vadd.f32 0.0, %v1808
    %v1810 = vpop.f32.mrf.mxu0
    %v1811 = vpop.f32.mrf.mxu0
    %1812 = vdwg.mxu0
    %1813 = vmatprep.subr.bf16.mxu0 %v697
    %1814 = vmatpush1.bf16.msra.mxu0 %v696
    %1815 = vmatprep.subr.bf16.mxu0 %v693
    %1816 = vmatpush1.bf16.msra.mxu0 %v692
    %1817 = vmatprep.subr.bf16.mxu0 %v689
    %1818 = vmatpush1.bf16.msra.mxu0 %v688
    %1819 = vmatprep.subr.bf16.mxu0 %v685
    %1820 = vmatpush1.bf16.msra.mxu0 %v684
    %1821 = vmatprep.subr.bf16.mxu0 %v681
    %1822 = vmatpush1.bf16.msra.mxu0 %v680
    %1823 = vmatprep.subr.bf16.mxu0 %v677
    %1824 = vmatpush1.bf16.msra.mxu0 %v676
    %1825 = vmatprep.subr.bf16.mxu0 %v673
    %1826 = vmatpush1.bf16.msra.mxu0 %v672
    %1827 = vmatprep.subr.bf16.mxu0 %v669
    %1828 = vmatpush1.bf16.msra.mxu0 %v668
    %1829 = vmatprep.subr.bf16.mxu0 0
    %1830 = vmatpush2.bf16.msra.mxu0 0
    %1831 = vmatprep.subr.bf16.mxu0 0
    %1832 = vmatpush2.bf16.msra.mxu0 0
    %1833 = vmatprep.subr.bf16.mxu0 0
    %1834 = vmatpush2.bf16.msra.mxu0 0
    %1835 = vmatprep.subr.bf16.mxu0 0
    %1836 = vmatpush2.bf16.msra.mxu0 0
    %1837 = vmatprep.subr.bf16.mxu0 0
    %1838 = vmatpush2.bf16.msra.mxu0 0
    %1839 = vmatprep.subr.bf16.mxu0 0
    %1840 = vmatpush2.bf16.msra.mxu0 0
    %1841 = vmatprep.subr.bf16.mxu0 0
    %1842 = vmatpush2.bf16.msra.mxu0 0
    %1843 = vmatprep.subr.bf16.mxu0 0
    %1844 = vmatpush2.bf16.msra.mxu0 0
    %1845 = vmatprep.mubr.bf16.mxu0 0
    %1846 = vmatmul.mubr.bf16.gmra.mxu0 %v1565
    %v1847 = vpop.f32.mrf.mxu0
    %v1848 = vadd.f32 0.0, %v1847
    %v1849 = vpop.f32.mrf.mxu0
    %v1850 = vadd.f32 0.0, %v1849
    %v1851 = vpop.f32.mrf.mxu0
    %v1852 = vpop.f32.mrf.mxu0
    %1853 = vdwg.mxu0
    %v1854 = vadd.f32 %v1768, %v1807
    %v1855 = vadd.f32 %v1769, %v1809
    %v1856 = vadd.f32 %v1770, %v1848
    %v1857 = vadd.f32 %v1771, %v1850
    %v1858 = vxor.u32 %v1854, 2147483648
    %v1859 = vxor.u32 %v1855, 2147483648
    %v1860 = vxor.u32 %v1856, 2147483648
    %v1861 = vmul.f32 %v1858, 1.442695
    %v1862 = vpow.pop %v1861
    %v1863 = vmul.f32 %v1859, 1.442695
    %v1864 = vpow.pop %v1863
    %v1865 = vmul.f32 %v1860, 1.442695
    %v1866 = vpow.pop %v1865
    %v1867 = vadd.f32 %v1862, 1.0
    %v1868 = vadd.f32 %v1864, 1.0
    %v1869 = vadd.f32 %v1866, 1.0
    %v1870 = vrcp.pop %v1867
    %v1871 = vmul.f32 1.0, %v1870
    %v1872 = vrcp.pop %v1868
    %v1873 = vmul.f32 1.0, %v1872
    %v1874 = vrcp.pop %v1869
    %v1875 = vmul.f32 1.0, %v1874
    %v1876 = vtanh.pop %v1857
    %v1877 = vmul.f32 %v1873, %v1564
    %v1878 = vmul.f32 %v1871, %v1876
    %v1879 = vadd.f32 %v1877, %v1878
    %v1880 = vtanh.pop %v1879
    %v1881 = vmul.f32 %v1875, %v1880
    %v1882 = vsel %vm1766, %v1881, %v1563
    %v1883 = vsel %vm1766, %v1879, %v1564
    %v1884 = vpack.c.bf16 %v1882, %v1882
    %v1885 = vpack.c.bf16 %v1759, %v1759
    %1886 = vmatprep.subr.bf16.mxu0 %v1032
    %1887 = vmatpush1.bf16.msra.mxu0 %v1031
    %1888 = vmatprep.subr.bf16.mxu0 %v1028
    %1889 = vmatpush1.bf16.msra.mxu0 %v1027
    %1890 = vmatprep.subr.bf16.mxu0 %v1024
    %1891 = vmatpush1.bf16.msra.mxu0 %v1023
    %1892 = vmatprep.subr.bf16.mxu0 %v1020
    %1893 = vmatpush1.bf16.msra.mxu0 %v1019
    %1894 = vmatprep.subr.bf16.mxu0 %v1016
    %1895 = vmatpush1.bf16.msra.mxu0 %v1015
    %1896 = vmatprep.subr.bf16.mxu0 %v1012
    %1897 = vmatpush1.bf16.msra.mxu0 %v1011
    %1898 = vmatprep.subr.bf16.mxu0 %v1008
    %1899 = vmatpush1.bf16.msra.mxu0 %v1007
    %1900 = vmatprep.subr.bf16.mxu0 %v1004
    %1901 = vmatpush1.bf16.msra.mxu0 %v1003
    %1902 = vmatprep.subr.bf16.mxu0 0
    %1903 = vmatpush2.bf16.msra.mxu0 0
    %1904 = vmatprep.subr.bf16.mxu0 0
    %1905 = vmatpush2.bf16.msra.mxu0 0
    %1906 = vmatprep.subr.bf16.mxu0 0
    %1907 = vmatpush2.bf16.msra.mxu0 0
    %1908 = vmatprep.subr.bf16.mxu0 0
    %1909 = vmatpush2.bf16.msra.mxu0 0
    %1910 = vmatprep.subr.bf16.mxu0 0
    %1911 = vmatpush2.bf16.msra.mxu0 0
    %1912 = vmatprep.subr.bf16.mxu0 0
    %1913 = vmatpush2.bf16.msra.mxu0 0
    %1914 = vmatprep.subr.bf16.mxu0 0
    %1915 = vmatpush2.bf16.msra.mxu0 0
    %1916 = vmatprep.subr.bf16.mxu0 0
    %1917 = vmatpush2.bf16.msra.mxu0 0
    %1918 = vmatprep.mubr.bf16.mxu0 0
    %1919 = vmatmul.mubr.bf16.gmra.mxu0 %v1885
    %v1920 = vpop.f32.mrf.mxu0
    %v1921 = vadd.f32 0.0, %v1920
    %v1922 = vpop.f32.mrf.mxu0
    %v1923 = vadd.f32 0.0, %v1922
    %v1924 = vpop.f32.mrf.mxu0
    %v1925 = vpop.f32.mrf.mxu0
    %1926 = vdwg.mxu0
    %1927 = vmatprep.subr.bf16.mxu0 %v1034
    %1928 = vmatpush1.bf16.msra.mxu0 %v1033
    %1929 = vmatprep.subr.bf16.mxu0 %v1030
    %1930 = vmatpush1.bf16.msra.mxu0 %v1029
    %1931 = vmatprep.subr.bf16.mxu0 %v1026
    %1932 = vmatpush1.bf16.msra.mxu0 %v1025
    %1933 = vmatprep.subr.bf16.mxu0 %v1022
    %1934 = vmatpush1.bf16.msra.mxu0 %v1021
    %1935 = vmatprep.subr.bf16.mxu0 %v1018
    %1936 = vmatpush1.bf16.msra.mxu0 %v1017
    %1937 = vmatprep.subr.bf16.mxu0 %v1014
    %1938 = vmatpush1.bf16.msra.mxu0 %v1013
    %1939 = vmatprep.subr.bf16.mxu0 %v1010
    %1940 = vmatpush1.bf16.msra.mxu0 %v1009
    %1941 = vmatprep.subr.bf16.mxu0 %v1006
    %1942 = vmatpush1.bf16.msra.mxu0 %v1005
    %1943 = vmatprep.subr.bf16.mxu0 0
    %1944 = vmatpush2.bf16.msra.mxu0 0
    %1945 = vmatprep.subr.bf16.mxu0 0
    %1946 = vmatpush2.bf16.msra.mxu0 0
    %1947 = vmatprep.subr.bf16.mxu0 0
    %1948 = vmatpush2.bf16.msra.mxu0 0
    %1949 = vmatprep.subr.bf16.mxu0 0
    %1950 = vmatpush2.bf16.msra.mxu0 0
    %1951 = vmatprep.subr.bf16.mxu0 0
    %1952 = vmatpush2.bf16.msra.mxu0 0
    %1953 = vmatprep.subr.bf16.mxu0 0
    %1954 = vmatpush2.bf16.msra.mxu0 0
    %1955 = vmatprep.subr.bf16.mxu0 0
    %1956 = vmatpush2.bf16.msra.mxu0 0
    %1957 = vmatprep.subr.bf16.mxu0 0
    %1958 = vmatpush2.bf16.msra.mxu0 0
    %1959 = vmatprep.mubr.bf16.mxu0 0
    %1960 = vmatmul.mubr.bf16.gmra.mxu0 %v1885
    %v1961 = vpop.f32.mrf.mxu0
    %v1962 = vadd.f32 0.0, %v1961
    %v1963 = vpop.f32.mrf.mxu0
    %v1964 = vadd.f32 0.0, %v1963
    %v1965 = vpop.f32.mrf.mxu0
    %v1966 = vpop.f32.mrf.mxu0
    %1967 = vdwg.mxu0
    %1968 = vmatprep.subr.bf16.mxu0 %v1274
    %1969 = vmatpush1.bf16.msra.mxu0 %v1273
    %1970 = vmatprep.subr.bf16.mxu0 %v1270
    %1971 = vmatpush1.bf16.msra.mxu0 %v1269
    %1972 = vmatprep.subr.bf16.mxu0 %v1266
    %1973 = vmatpush1.bf16.msra.mxu0 %v1265
    %1974 = vmatprep.subr.bf16.mxu0 %v1262
    %1975 = vmatpush1.bf16.msra.mxu0 %v1261
    %1976 = vmatprep.subr.bf16.mxu0 %v1258
    %1977 = vmatpush1.bf16.msra.mxu0 %v1257
    %1978 = vmatprep.subr.bf16.mxu0 %v1254
    %1979 = vmatpush1.bf16.msra.mxu0 %v1253
    %1980 = vmatprep.subr.bf16.mxu0 %v1250
    %1981 = vmatpush1.bf16.msra.mxu0 %v1249
    %1982 = vmatprep.subr.bf16.mxu0 %v1246
    %1983 = vmatpush1.bf16.msra.mxu0 %v1245
    %1984 = vmatprep.subr.bf16.mxu0 0
    %1985 = vmatpush2.bf16.msra.mxu0 0
    %1986 = vmatprep.subr.bf16.mxu0 0
    %1987 = vmatpush2.bf16.msra.mxu0 0
    %1988 = vmatprep.subr.bf16.mxu0 0
    %1989 = vmatpush2.bf16.msra.mxu0 0
    %1990 = vmatprep.subr.bf16.mxu0 0
    %1991 = vmatpush2.bf16.msra.mxu0 0
    %1992 = vmatprep.subr.bf16.mxu0 0
    %1993 = vmatpush2.bf16.msra.mxu0 0
    %1994 = vmatprep.subr.bf16.mxu0 0
    %1995 = vmatpush2.bf16.msra.mxu0 0
    %1996 = vmatprep.subr.bf16.mxu0 0
    %1997 = vmatpush2.bf16.msra.mxu0 0
    %1998 = vmatprep.subr.bf16.mxu0 0
    %1999 = vmatpush2.bf16.msra.mxu0 0
    %2000 = vmatprep.mubr.bf16.mxu0 0
    %2001 = vmatmul.mubr.bf16.gmra.mxu0 %v1884
    %v2002 = vpop.f32.mrf.mxu0
    %v2003 = vadd.f32 %v1921, %v2002
    %v2004 = vpop.f32.mrf.mxu0
    %v2005 = vadd.f32 %v1923, %v2004
    %v2006 = vpop.f32.mrf.mxu0
    %v2007 = vpop.f32.mrf.mxu0
    %2008 = vdwg.mxu0
    %2009 = vmatprep.subr.bf16.mxu0 %v1276
    %2010 = vmatpush1.bf16.msra.mxu0 %v1275
    %2011 = vmatprep.subr.bf16.mxu0 %v1272
    %2012 = vmatpush1.bf16.msra.mxu0 %v1271
    %2013 = vmatprep.subr.bf16.mxu0 %v1268
    %2014 = vmatpush1.bf16.msra.mxu0 %v1267
    %2015 = vmatprep.subr.bf16.mxu0 %v1264
    %2016 = vmatpush1.bf16.msra.mxu0 %v1263
    %2017 = vmatprep.subr.bf16.mxu0 %v1260
    %2018 = vmatpush1.bf16.msra.mxu0 %v1259
    %2019 = vmatprep.subr.bf16.mxu0 %v1256
    %2020 = vmatpush1.bf16.msra.mxu0 %v1255
    %2021 = vmatprep.subr.bf16.mxu0 %v1252
    %2022 = vmatpush1.bf16.msra.mxu0 %v1251
    %2023 = vmatprep.subr.bf16.mxu0 %v1248
    %2024 = vmatpush1.bf16.msra.mxu0 %v1247
    %2025 = vmatprep.subr.bf16.mxu0 0
    %2026 = vmatpush2.bf16.msra.mxu0 0
    %2027 = vmatprep.subr.bf16.mxu0 0
    %2028 = vmatpush2.bf16.msra.mxu0 0
    %2029 = vmatprep.subr.bf16.mxu0 0
    %2030 = vmatpush2.bf16.msra.mxu0 0
    %2031 = vmatprep.subr.bf16.mxu0 0
    %2032 = vmatpush2.bf16.msra.mxu0 0
    %2033 = vmatprep.subr.bf16.mxu0 0
    %2034 = vmatpush2.bf16.msra.mxu0 0
    %2035 = vmatprep.subr.bf16.mxu0 0
    %2036 = vmatpush2.bf16.msra.mxu0 0
    %2037 = vmatprep.subr.bf16.mxu0 0
    %2038 = vmatpush2.bf16.msra.mxu0 0
    %2039 = vmatprep.subr.bf16.mxu0 0
    %2040 = vmatpush2.bf16.msra.mxu0 0
    %2041 = vmatprep.mubr.bf16.mxu0 0
    %2042 = vmatmul.mubr.bf16.gmra.mxu0 %v1884
    %v2043 = vpop.f32.mrf.mxu0
    %v2044 = vadd.f32 %v1962, %v2043
    %v2045 = vpop.f32.mrf.mxu0
    %v2046 = vadd.f32 %v1964, %v2045
    %v2047 = vpop.f32.mrf.mxu0
    %v2048 = vpop.f32.mrf.mxu0
    %2049 = vdwg.mxu0
    %v2050 = vadd.f32 %v2003, %v1395
    %v2051 = vadd.f32 %v2005, %v1399
    %v2052 = vadd.f32 %v2044, %v1403
    %v2053 = vadd.f32 %v2046, %v1407
    %v2054 = vxor.u32 %v2050, 2147483648
    %v2055 = vxor.u32 %v2051, 2147483648
    %v2056 = vxor.u32 %v2052, 2147483648
    %v2057 = vmul.f32 %v2054, 1.442695
    %v2058 = vpow.pop %v2057
    %v2059 = vmul.f32 %v2055, 1.442695
    %v2060 = vpow.pop %v2059
    %v2061 = vmul.f32 %v2056, 1.442695
    %v2062 = vpow.pop %v2061
    %v2063 = vadd.f32 %v2058, 1.0
    %v2064 = vadd.f32 %v2060, 1.0
    %v2065 = vadd.f32 %v2062, 1.0
    %v2066 = vrcp.pop %v2063
    %v2067 = vmul.f32 1.0, %v2066
    %v2068 = vrcp.pop %v2064
    %v2069 = vmul.f32 1.0, %v2068
    %v2070 = vrcp.pop %v2065
    %v2071 = vmul.f32 1.0, %v2070
    %v2072 = vtanh.pop %v2053
    %v2073 = vmul.f32 %v2069, %v1760
    %v2074 = vmul.f32 %v2067, %v2072
    %v2075 = vadd.f32 %v2073, %v2074
    %v2076 = vtanh.pop %v2075
    %v2077 = vmul.f32 %v2071, %v2076
    %v2078 = vsel %vm1766, %v2077, %v1759
    %v2079 = vsel %vm1766, %v2075, %v1760
    %vm2080 = vcmp.gt.s32.totalorder %v526, 3
    %v2081 = vsel %vm2080, 1, 0
    %2082 = vset.pattern.permute.xlu0 0
    %2083 = vperm.xlu0 %2082, %v2081
    %v2084 = vpop.permute.xlu0 %2083
    %vm2085 = vcmp.eq.s32.totalorder %v2084, 1
    %s2086 = scalar_lea.vmem [#allocation2], 96
    %v2087 = vld [vmem:[%s2086] sm:$0xff]
    %v2088 = vld [vmem:[%s2086 + $0x8] sm:$0xff]
    %v2089 = vld [vmem:[%s2086 + $0x10] sm:$0xff]
    %v2090 = vld [vmem:[%s2086 + $0x18] sm:$0xff]
    %2091 = vmatprep.subr.bf16.mxu0 %v695
    %2092 = vmatpush1.bf16.msra.mxu0 %v694
    %2093 = vmatprep.subr.bf16.mxu0 %v691
    %2094 = vmatpush1.bf16.msra.mxu0 %v690
    %2095 = vmatprep.subr.bf16.mxu0 %v687
    %2096 = vmatpush1.bf16.msra.mxu0 %v686
    %2097 = vmatprep.subr.bf16.mxu0 %v683
    %2098 = vmatpush1.bf16.msra.mxu0 %v682
    %2099 = vmatprep.subr.bf16.mxu0 %v679
    %2100 = vmatpush1.bf16.msra.mxu0 %v678
    %2101 = vmatprep.subr.bf16.mxu0 %v675
    %2102 = vmatpush1.bf16.msra.mxu0 %v674
    %2103 = vmatprep.subr.bf16.mxu0 %v671
    %2104 = vmatpush1.bf16.msra.mxu0 %v670
    %2105 = vmatprep.subr.bf16.mxu0 %v667
    %2106 = vmatpush1.bf16.msra.mxu0 %v666
    %2107 = vmatprep.subr.bf16.mxu0 0
    %2108 = vmatpush2.bf16.msra.mxu0 0
    %2109 = vmatprep.subr.bf16.mxu0 0
    %2110 = vmatpush2.bf16.msra.mxu0 0
    %2111 = vmatprep.subr.bf16.mxu0 0
    %2112 = vmatpush2.bf16.msra.mxu0 0
    %2113 = vmatprep.subr.bf16.mxu0 0
    %2114 = vmatpush2.bf16.msra.mxu0 0
    %2115 = vmatprep.subr.bf16.mxu0 0
    %2116 = vmatpush2.bf16.msra.mxu0 0
    %2117 = vmatprep.subr.bf16.mxu0 0
    %2118 = vmatpush2.bf16.msra.mxu0 0
    %2119 = vmatprep.subr.bf16.mxu0 0
    %2120 = vmatpush2.bf16.msra.mxu0 0
    %2121 = vmatprep.subr.bf16.mxu0 0
    %2122 = vmatpush2.bf16.msra.mxu0 0
    %2123 = vmatprep.mubr.bf16.mxu0 0
    %2124 = vmatmul.mubr.bf16.gmra.mxu0 %v1884
    %v2125 = vpop.f32.mrf.mxu0
    %v2126 = vadd.f32 0.0, %v2125
    %v2127 = vpop.f32.mrf.mxu0
    %v2128 = vadd.f32 0.0, %v2127
    %v2129 = vpop.f32.mrf.mxu0
    %v2130 = vpop.f32.mrf.mxu0
    %2131 = vdwg.mxu0
    %2132 = vmatprep.subr.bf16.mxu0 %v697
    %2133 = vmatpush1.bf16.msra.mxu0 %v696
    %2134 = vmatprep.subr.bf16.mxu0 %v693
    %2135 = vmatpush1.bf16.msra.mxu0 %v692
    %2136 = vmatprep.subr.bf16.mxu0 %v689
    %2137 = vmatpush1.bf16.msra.mxu0 %v688
    %2138 = vmatprep.subr.bf16.mxu0 %v685
    %2139 = vmatpush1.bf16.msra.mxu0 %v684
    %2140 = vmatprep.subr.bf16.mxu0 %v681
    %2141 = vmatpush1.bf16.msra.mxu0 %v680
    %2142 = vmatprep.subr.bf16.mxu0 %v677
    %2143 = vmatpush1.bf16.msra.mxu0 %v676
    %2144 = vmatprep.subr.bf16.mxu0 %v673
    %2145 = vmatpush1.bf16.msra.mxu0 %v672
    %2146 = vmatprep.subr.bf16.mxu0 %v669
    %2147 = vmatpush1.bf16.msra.mxu0 %v668
    %2148 = vmatprep.subr.bf16.mxu0 0
    %2149 = vmatpush2.bf16.msra.mxu0 0
    %2150 = vmatprep.subr.bf16.mxu0 0
    %2151 = vmatpush2.bf16.msra.mxu0 0
    %2152 = vmatprep.subr.bf16.mxu0 0
    %2153 = vmatpush2.bf16.msra.mxu0 0
    %2154 = vmatprep.subr.bf16.mxu0 0
    %2155 = vmatpush2.bf16.msra.mxu0 0
    %2156 = vmatprep.subr.bf16.mxu0 0
    %2157 = vmatpush2.bf16.msra.mxu0 0
    %2158 = vmatprep.subr.bf16.mxu0 0
    %2159 = vmatpush2.bf16.msra.mxu0 0
    %2160 = vmatprep.subr.bf16.mxu0 0
    %2161 = vmatpush2.bf16.msra.mxu0 0
    %2162 = vmatprep.subr.bf16.mxu0 0
    %2163 = vmatpush2.bf16.msra.mxu0 0
    %2164 = vmatprep.mubr.bf16.mxu0 0
    %2165 = vmatmul.mubr.bf16.gmra.mxu0 %v1884
    %v2166 = vpop.f32.mrf.mxu0
    %v2167 = vadd.f32 0.0, %v2166
    %v2168 = vpop.f32.mrf.mxu0
    %v2169 = vadd.f32 0.0, %v2168
    %v2170 = vpop.f32.mrf.mxu0
    %v2171 = vpop.f32.mrf.mxu0
    %2172 = vdwg.mxu0
    %v2173 = vadd.f32 %v2087, %v2126
    %v2174 = vadd.f32 %v2088, %v2128
    %v2175 = vadd.f32 %v2089, %v2167
    %v2176 = vadd.f32 %v2090, %v2169
    %v2177 = vxor.u32 %v2173, 2147483648
    %v2178 = vxor.u32 %v2174, 2147483648
    %v2179 = vxor.u32 %v2175, 2147483648
    %v2180 = vmul.f32 %v2177, 1.442695
    %v2181 = vpow.pop %v2180
    %v2182 = vmul.f32 %v2178, 1.442695
    %v2183 = vpow.pop %v2182
    %v2184 = vmul.f32 %v2179, 1.442695
    %v2185 = vpow.pop %v2184
    %v2186 = vadd.f32 %v2181, 1.0
    %v2187 = vadd.f32 %v2183, 1.0
    %v2188 = vadd.f32 %v2185, 1.0
    %v2189 = vrcp.pop %v2186
    %v2190 = vmul.f32 1.0, %v2189
    %v2191 = vrcp.pop %v2187
    %v2192 = vmul.f32 1.0, %v2191
    %v2193 = vrcp.pop %v2188
    %v2194 = vmul.f32 1.0, %v2193
    %v2195 = vtanh.pop %v2176
    %v2196 = vmul.f32 %v2192, %v1883
    %v2197 = vmul.f32 %v2190, %v2195
    %v2198 = vadd.f32 %v2196, %v2197
    %v2199 = vtanh.pop %v2198
    %v2200 = vmul.f32 %v2194, %v2199
    %v2201 = vsel %vm2085, %v2200, %v1882
    %v2202 = vsel %vm2085, %v2198, %v1883
    %v2203 = vpack.c.bf16 %v2201, %v2201
    %v2204 = vpack.c.bf16 %v2078, %v2078
    %2205 = vmatprep.subr.bf16.mxu0 %v1032
    %2206 = vmatpush1.bf16.msra.mxu0 %v1031
    %2207 = vmatprep.subr.bf16.mxu0 %v1028
    %2208 = vmatpush1.bf16.msra.mxu0 %v1027
    %2209 = vmatprep.subr.bf16.mxu0 %v1024
    %2210 = vmatpush1.bf16.msra.mxu0 %v1023
    %2211 = vmatprep.subr.bf16.mxu0 %v1020
    %2212 = vmatpush1.bf16.msra.mxu0 %v1019
    %2213 = vmatprep.subr.bf16.mxu0 %v1016
    %2214 = vmatpush1.bf16.msra.mxu0 %v1015
    %2215 = vmatprep.subr.bf16.mxu0 %v1012
    %2216 = vmatpush1.bf16.msra.mxu0 %v1011
    %2217 = vmatprep.subr.bf16.mxu0 %v1008
    %2218 = vmatpush1.bf16.msra.mxu0 %v1007
    %2219 = vmatprep.subr.bf16.mxu0 %v1004
    %2220 = vmatpush1.bf16.msra.mxu0 %v1003
    %2221 = vmatprep.subr.bf16.mxu0 0
    %2222 = vmatpush2.bf16.msra.mxu0 0
    %2223 = vmatprep.subr.bf16.mxu0 0
    %2224 = vmatpush2.bf16.msra.mxu0 0
    %2225 = vmatprep.subr.bf16.mxu0 0
    %2226 = vmatpush2.bf16.msra.mxu0 0
    %2227 = vmatprep.subr.bf16.mxu0 0
    %2228 = vmatpush2.bf16.msra.mxu0 0
    %2229 = vmatprep.subr.bf16.mxu0 0
    %2230 = vmatpush2.bf16.msra.mxu0 0
    %2231 = vmatprep.subr.bf16.mxu0 0
    %2232 = vmatpush2.bf16.msra.mxu0 0
    %2233 = vmatprep.subr.bf16.mxu0 0
    %2234 = vmatpush2.bf16.msra.mxu0 0
    %2235 = vmatprep.subr.bf16.mxu0 0
    %2236 = vmatpush2.bf16.msra.mxu0 0
    %2237 = vmatprep.mubr.bf16.mxu0 0
    %2238 = vmatmul.mubr.bf16.gmra.mxu0 %v2204
    %v2239 = vpop.f32.mrf.mxu0
    %v2240 = vadd.f32 0.0, %v2239
    %v2241 = vpop.f32.mrf.mxu0
    %v2242 = vadd.f32 0.0, %v2241
    %v2243 = vpop.f32.mrf.mxu0
    %v2244 = vpop.f32.mrf.mxu0
    %2245 = vdwg.mxu0
    %2246 = vmatprep.subr.bf16.mxu0 %v1034
    %2247 = vmatpush1.bf16.msra.mxu0 %v1033
    %2248 = vmatprep.subr.bf16.mxu0 %v1030
    %2249 = vmatpush1.bf16.msra.mxu0 %v1029
    %2250 = vmatprep.subr.bf16.mxu0 %v1026
    %2251 = vmatpush1.bf16.msra.mxu0 %v1025
    %2252 = vmatprep.subr.bf16.mxu0 %v1022
    %2253 = vmatpush1.bf16.msra.mxu0 %v1021
    %2254 = vmatprep.subr.bf16.mxu0 %v1018
    %2255 = vmatpush1.bf16.msra.mxu0 %v1017
    %2256 = vmatprep.subr.bf16.mxu0 %v1014
    %2257 = vmatpush1.bf16.msra.mxu0 %v1013
    %2258 = vmatprep.subr.bf16.mxu0 %v1010
    %2259 = vmatpush1.bf16.msra.mxu0 %v1009
    %2260 = vmatprep.subr.bf16.mxu0 %v1006
    %2261 = vmatpush1.bf16.msra.mxu0 %v1005
    %2262 = vmatprep.subr.bf16.mxu0 0
    %2263 = vmatpush2.bf16.msra.mxu0 0
    %2264 = vmatprep.subr.bf16.mxu0 0
    %2265 = vmatpush2.bf16.msra.mxu0 0
    %2266 = vmatprep.subr.bf16.mxu0 0
    %2267 = vmatpush2.bf16.msra.mxu0 0
    %2268 = vmatprep.subr.bf16.mxu0 0
    %2269 = vmatpush2.bf16.msra.mxu0 0
    %2270 = vmatprep.subr.bf16.mxu0 0
    %2271 = vmatpush2.bf16.msra.mxu0 0
    %2272 = vmatprep.subr.bf16.mxu0 0
    %2273 = vmatpush2.bf16.msra.mxu0 0
    %2274 = vmatprep.subr.bf16.mxu0 0
    %2275 = vmatpush2.bf16.msra.mxu0 0
    %2276 = vmatprep.subr.bf16.mxu0 0
    %2277 = vmatpush2.bf16.msra.mxu0 0
    %2278 = vmatprep.mubr.bf16.mxu0 0
    %2279 = vmatmul.mubr.bf16.gmra.mxu0 %v2204
    %v2280 = vpop.f32.mrf.mxu0
    %v2281 = vadd.f32 0.0, %v2280
    %v2282 = vpop.f32.mrf.mxu0
    %v2283 = vadd.f32 0.0, %v2282
    %v2284 = vpop.f32.mrf.mxu0
    %v2285 = vpop.f32.mrf.mxu0
    %2286 = vdwg.mxu0
    %2287 = vmatprep.subr.bf16.mxu0 %v1274
    %2288 = vmatpush1.bf16.msra.mxu0 %v1273
    %2289 = vmatprep.subr.bf16.mxu0 %v1270
    %2290 = vmatpush1.bf16.msra.mxu0 %v1269
    %2291 = vmatprep.subr.bf16.mxu0 %v1266
    %2292 = vmatpush1.bf16.msra.mxu0 %v1265
    %2293 = vmatprep.subr.bf16.mxu0 %v1262
    %2294 = vmatpush1.bf16.msra.mxu0 %v1261
    %2295 = vmatprep.subr.bf16.mxu0 %v1258
    %2296 = vmatpush1.bf16.msra.mxu0 %v1257
    %2297 = vmatprep.subr.bf16.mxu0 %v1254
    %2298 = vmatpush1.bf16.msra.mxu0 %v1253
    %2299 = vmatprep.subr.bf16.mxu0 %v1250
    %2300 = vmatpush1.bf16.msra.mxu0 %v1249
    %2301 = vmatprep.subr.bf16.mxu0 %v1246
    %2302 = vmatpush1.bf16.msra.mxu0 %v1245
    %2303 = vmatprep.subr.bf16.mxu0 0
    %2304 = vmatpush2.bf16.msra.mxu0 0
    %2305 = vmatprep.subr.bf16.mxu0 0
    %2306 = vmatpush2.bf16.msra.mxu0 0
    %2307 = vmatprep.subr.bf16.mxu0 0
    %2308 = vmatpush2.bf16.msra.mxu0 0
    %2309 = vmatprep.subr.bf16.mxu0 0
    %2310 = vmatpush2.bf16.msra.mxu0 0
    %2311 = vmatprep.subr.bf16.mxu0 0
    %2312 = vmatpush2.bf16.msra.mxu0 0
    %2313 = vmatprep.subr.bf16.mxu0 0
    %2314 = vmatpush2.bf16.msra.mxu0 0
    %2315 = vmatprep.subr.bf16.mxu0 0
    %2316 = vmatpush2.bf16.msra.mxu0 0
    %2317 = vmatprep.subr.bf16.mxu0 0
    %2318 = vmatpush2.bf16.msra.mxu0 0
    %2319 = vmatprep.mubr.bf16.mxu0 0
    %2320 = vmatmul.mubr.bf16.gmra.mxu0 %v2203
    %v2321 = vpop.f32.mrf.mxu0
    %v2322 = vadd.f32 %v2240, %v2321
    %v2323 = vpop.f32.mrf.mxu0
    %v2324 = vadd.f32 %v2242, %v2323
    %v2325 = vpop.f32.mrf.mxu0
    %v2326 = vpop.f32.mrf.mxu0
    %2327 = vdwg.mxu0
    %2328 = vmatprep.subr.bf16.mxu0 %v1276
    %2329 = vmatpush1.bf16.msra.mxu0 %v1275
    %2330 = vmatprep.subr.bf16.mxu0 %v1272
    %2331 = vmatpush1.bf16.msra.mxu0 %v1271
    %2332 = vmatprep.subr.bf16.mxu0 %v1268
    %2333 = vmatpush1.bf16.msra.mxu0 %v1267
    %2334 = vmatprep.subr.bf16.mxu0 %v1264
    %2335 = vmatpush1.bf16.msra.mxu0 %v1263
    %2336 = vmatprep.subr.bf16.mxu0 %v1260
    %2337 = vmatpush1.bf16.msra.mxu0 %v1259
    %2338 = vmatprep.subr.bf16.mxu0 %v1256
    %2339 = vmatpush1.bf16.msra.mxu0 %v1255
    %2340 = vmatprep.subr.bf16.mxu0 %v1252
    %2341 = vmatpush1.bf16.msra.mxu0 %v1251
    %2342 = vmatprep.subr.bf16.mxu0 %v1248
    %2343 = vmatpush1.bf16.msra.mxu0 %v1247
    %2344 = vmatprep.subr.bf16.mxu0 0
    %2345 = vmatpush2.bf16.msra.mxu0 0
    %2346 = vmatprep.subr.bf16.mxu0 0
    %2347 = vmatpush2.bf16.msra.mxu0 0
    %2348 = vmatprep.subr.bf16.mxu0 0
    %2349 = vmatpush2.bf16.msra.mxu0 0
    %2350 = vmatprep.subr.bf16.mxu0 0
    %2351 = vmatpush2.bf16.msra.mxu0 0
    %2352 = vmatprep.subr.bf16.mxu0 0
    %2353 = vmatpush2.bf16.msra.mxu0 0
    %2354 = vmatprep.subr.bf16.mxu0 0
    %2355 = vmatpush2.bf16.msra.mxu0 0
    %2356 = vmatprep.subr.bf16.mxu0 0
    %2357 = vmatpush2.bf16.msra.mxu0 0
    %2358 = vmatprep.subr.bf16.mxu0 0
    %2359 = vmatpush2.bf16.msra.mxu0 0
    %2360 = vmatprep.mubr.bf16.mxu0 0
    %2361 = vmatmul.mubr.bf16.gmra.mxu0 %v2203
    %v2362 = vpop.f32.mrf.mxu0
    %v2363 = vadd.f32 %v2281, %v2362
    %v2364 = vpop.f32.mrf.mxu0
    %v2365 = vadd.f32 %v2283, %v2364
    %v2366 = vpop.f32.mrf.mxu0
    %v2367 = vpop.f32.mrf.mxu0
    %2368 = vdwg.mxu0
    %v2369 = vadd.f32 %v2322, %v1395
    %v2370 = vadd.f32 %v2324, %v1399
    %v2371 = vadd.f32 %v2363, %v1403
    %v2372 = vadd.f32 %v2365, %v1407
    %v2373 = vxor.u32 %v2369, 2147483648
    %v2374 = vxor.u32 %v2370, 2147483648
    %v2375 = vxor.u32 %v2371, 2147483648
    %v2376 = vmul.f32 %v2373, 1.442695
    %v2377 = vpow.pop %v2376
    %v2378 = vmul.f32 %v2374, 1.442695
    %v2379 = vpow.pop %v2378
    %v2380 = vmul.f32 %v2375, 1.442695
    %v2381 = vpow.pop %v2380
    %v2382 = vadd.f32 %v2377, 1.0
    %v2383 = vadd.f32 %v2379, 1.0
    %v2384 = vadd.f32 %v2381, 1.0
    %v2385 = vrcp.pop %v2382
    %v2386 = vmul.f32 1.0, %v2385
    %v2387 = vrcp.pop %v2383
    %v2388 = vmul.f32 1.0, %v2387
    %v2389 = vrcp.pop %v2384
    %v2390 = vmul.f32 1.0, %v2389
    %v2391 = vtanh.pop %v2372
    %v2392 = vmul.f32 %v2388, %v2079
    %v2393 = vmul.f32 %v2386, %v2391
    %v2394 = vadd.f32 %v2392, %v2393
    %v2395 = vtanh.pop %v2394
    %v2396 = vmul.f32 %v2390, %v2395
    %v2397 = vsel %vm2085, %v2396, %v2078
    %v2398 = vsel %vm2085, %v2394, %v2079
    %vm2399 = vcmp.gt.s32.totalorder %v526, 4
    %v2400 = vsel %vm2399, 1, 0
    %2401 = vset.pattern.permute.xlu0 0
    %2402 = vperm.xlu0 %2401, %v2400
    %v2403 = vpop.permute.xlu0 %2402
    %vm2404 = vcmp.eq.s32.totalorder %v2403, 1
    %s2405 = scalar_lea.vmem [#allocation2], 128
    %v2406 = vld [vmem:[%s2405] sm:$0xff]
    %v2407 = vld [vmem:[%s2405 + $0x8] sm:$0xff]
    %v2408 = vld [vmem:[%s2405 + $0x10] sm:$0xff]
    %v2409 = vld [vmem:[%s2405 + $0x18] sm:$0xff]
    %2410 = vmatprep.subr.bf16.mxu0 %v695
    %2411 = vmatpush1.bf16.msra.mxu0 %v694
    %2412 = vmatprep.subr.bf16.mxu0 %v691
    %2413 = vmatpush1.bf16.msra.mxu0 %v690
    %2414 = vmatprep.subr.bf16.mxu0 %v687
    %2415 = vmatpush1.bf16.msra.mxu0 %v686
    %2416 = vmatprep.subr.bf16.mxu0 %v683
    %2417 = vmatpush1.bf16.msra.mxu0 %v682
    %2418 = vmatprep.subr.bf16.mxu0 %v679
    %2419 = vmatpush1.bf16.msra.mxu0 %v678
    %2420 = vmatprep.subr.bf16.mxu0 %v675
    %2421 = vmatpush1.bf16.msra.mxu0 %v674
    %2422 = vmatprep.subr.bf16.mxu0 %v671
    %2423 = vmatpush1.bf16.msra.mxu0 %v670
    %2424 = vmatprep.subr.bf16.mxu0 %v667
    %2425 = vmatpush1.bf16.msra.mxu0 %v666
    %2426 = vmatprep.subr.bf16.mxu0 0
    %2427 = vmatpush2.bf16.msra.mxu0 0
    %2428 = vmatprep.subr.bf16.mxu0 0
    %2429 = vmatpush2.bf16.msra.mxu0 0
    %2430 = vmatprep.subr.bf16.mxu0 0
    %2431 = vmatpush2.bf16.msra.mxu0 0
    %2432 = vmatprep.subr.bf16.mxu0 0
    %2433 = vmatpush2.bf16.msra.mxu0 0
    %2434 = vmatprep.subr.bf16.mxu0 0
    %2435 = vmatpush2.bf16.msra.mxu0 0
    %2436 = vmatprep.subr.bf16.mxu0 0
    %2437 = vmatpush2.bf16.msra.mxu0 0
    %2438 = vmatprep.subr.bf16.mxu0 0
    %2439 = vmatpush2.bf16.msra.mxu0 0
    %2440 = vmatprep.subr.bf16.mxu0 0
    %2441 = vmatpush2.bf16.msra.mxu0 0
    %2442 = vmatprep.mubr.bf16.mxu0 0
    %2443 = vmatmul.mubr.bf16.gmra.mxu0 %v2203
    %v2444 = vpop.f32.mrf.mxu0
    %v2445 = vadd.f32 0.0, %v2444
    %v2446 = vpop.f32.mrf.mxu0
    %v2447 = vadd.f32 0.0, %v2446
    %v2448 = vpop.f32.mrf.mxu0
    %v2449 = vpop.f32.mrf.mxu0
    %2450 = vdwg.mxu0
    %2451 = vmatprep.subr.bf16.mxu0 %v697
    %2452 = vmatpush1.bf16.msra.mxu0 %v696
    %2453 = vmatprep.subr.bf16.mxu0 %v693
    %2454 = vmatpush1.bf16.msra.mxu0 %v692
    %2455 = vmatprep.subr.bf16.mxu0 %v689
    %2456 = vmatpush1.bf16.msra.mxu0 %v688
    %2457 = vmatprep.subr.bf16.mxu0 %v685
    %2458 = vmatpush1.bf16.msra.mxu0 %v684
    %2459 = vmatprep.subr.bf16.mxu0 %v681
    %2460 = vmatpush1.bf16.msra.mxu0 %v680
    %2461 = vmatprep.subr.bf16.mxu0 %v677
    %2462 = vmatpush1.bf16.msra.mxu0 %v676
    %2463 = vmatprep.subr.bf16.mxu0 %v673
    %2464 = vmatpush1.bf16.msra.mxu0 %v672
    %2465 = vmatprep.subr.bf16.mxu0 %v669
    %2466 = vmatpush1.bf16.msra.mxu0 %v668
    %2467 = vmatprep.subr.bf16.mxu0 0
    %2468 = vmatpush2.bf16.msra.mxu0 0
    %2469 = vmatprep.subr.bf16.mxu0 0
    %2470 = vmatpush2.bf16.msra.mxu0 0
    %2471 = vmatprep.subr.bf16.mxu0 0
    %2472 = vmatpush2.bf16.msra.mxu0 0
    %2473 = vmatprep.subr.bf16.mxu0 0
    %2474 = vmatpush2.bf16.msra.mxu0 0
    %2475 = vmatprep.subr.bf16.mxu0 0
    %2476 = vmatpush2.bf16.msra.mxu0 0
    %2477 = vmatprep.subr.bf16.mxu0 0
    %2478 = vmatpush2.bf16.msra.mxu0 0
    %2479 = vmatprep.subr.bf16.mxu0 0
    %2480 = vmatpush2.bf16.msra.mxu0 0
    %2481 = vmatprep.subr.bf16.mxu0 0
    %2482 = vmatpush2.bf16.msra.mxu0 0
    %2483 = vmatprep.mubr.bf16.mxu0 0
    %2484 = vmatmul.mubr.bf16.gmra.mxu0 %v2203
    %v2485 = vpop.f32.mrf.mxu0
    %v2486 = vadd.f32 0.0, %v2485
    %v2487 = vpop.f32.mrf.mxu0
    %v2488 = vadd.f32 0.0, %v2487
    %v2489 = vpop.f32.mrf.mxu0
    %v2490 = vpop.f32.mrf.mxu0
    %2491 = vdwg.mxu0
    %v2492 = vadd.f32 %v2406, %v2445
    %v2493 = vadd.f32 %v2407, %v2447
    %v2494 = vadd.f32 %v2408, %v2486
    %v2495 = vadd.f32 %v2409, %v2488
    %v2496 = vxor.u32 %v2492, 2147483648
    %v2497 = vxor.u32 %v2493, 2147483648
    %v2498 = vxor.u32 %v2494, 2147483648
    %v2499 = vmul.f32 %v2496, 1.442695
    %v2500 = vpow.pop %v2499
    %v2501 = vmul.f32 %v2497, 1.442695
    %v2502 = vpow.pop %v2501
    %v2503 = vmul.f32 %v2498, 1.442695
    %v2504 = vpow.pop %v2503
    %v2505 = vadd.f32 %v2500, 1.0
    %v2506 = vadd.f32 %v2502, 1.0
    %v2507 = vadd.f32 %v2504, 1.0
    %v2508 = vrcp.pop %v2505
    %v2509 = vmul.f32 1.0, %v2508
    %v2510 = vrcp.pop %v2506
    %v2511 = vmul.f32 1.0, %v2510
    %v2512 = vrcp.pop %v2507
    %v2513 = vmul.f32 1.0, %v2512
    %v2514 = vtanh.pop %v2495
    %v2515 = vmul.f32 %v2511, %v2202
    %v2516 = vmul.f32 %v2509, %v2514
    %v2517 = vadd.f32 %v2515, %v2516
    %v2518 = vtanh.pop %v2517
    %v2519 = vmul.f32 %v2513, %v2518
    %v2520 = vsel %vm2404, %v2519, %v2201
    %v2521 = vsel %vm2404, %v2517, %v2202
    %v2522 = vpack.c.bf16 %v2520, %v2520
    %v2523 = vpack.c.bf16 %v2397, %v2397
    %2524 = vmatprep.subr.bf16.mxu0 %v1032
    %2525 = vmatpush1.bf16.msra.mxu0 %v1031
    %2526 = vmatprep.subr.bf16.mxu0 %v1028
    %2527 = vmatpush1.bf16.msra.mxu0 %v1027
    %2528 = vmatprep.subr.bf16.mxu0 %v1024
    %2529 = vmatpush1.bf16.msra.mxu0 %v1023
    %2530 = vmatprep.subr.bf16.mxu0 %v1020
    %2531 = vmatpush1.bf16.msra.mxu0 %v1019
    %2532 = vmatprep.subr.bf16.mxu0 %v1016
    %2533 = vmatpush1.bf16.msra.mxu0 %v1015
    %2534 = vmatprep.subr.bf16.mxu0 %v1012
    %2535 = vmatpush1.bf16.msra.mxu0 %v1011
    %2536 = vmatprep.subr.bf16.mxu0 %v1008
    %2537 = vmatpush1.bf16.msra.mxu0 %v1007
    %2538 = vmatprep.subr.bf16.mxu0 %v1004
    %2539 = vmatpush1.bf16.msra.mxu0 %v1003
    %2540 = vmatprep.subr.bf16.mxu0 0
    %2541 = vmatpush2.bf16.msra.mxu0 0
    %2542 = vmatprep.subr.bf16.mxu0 0
    %2543 = vmatpush2.bf16.msra.mxu0 0
    %2544 = vmatprep.subr.bf16.mxu0 0
    %2545 = vmatpush2.bf16.msra.mxu0 0
    %2546 = vmatprep.subr.bf16.mxu0 0
    %2547 = vmatpush2.bf16.msra.mxu0 0
    %2548 = vmatprep.subr.bf16.mxu0 0
    %2549 = vmatpush2.bf16.msra.mxu0 0
    %2550 = vmatprep.subr.bf16.mxu0 0
    %2551 = vmatpush2.bf16.msra.mxu0 0
    %2552 = vmatprep.subr.bf16.mxu0 0
    %2553 = vmatpush2.bf16.msra.mxu0 0
    %2554 = vmatprep.subr.bf16.mxu0 0
    %2555 = vmatpush2.bf16.msra.mxu0 0
    %2556 = vmatprep.mubr.bf16.mxu0 0
    %2557 = vmatmul.mubr.bf16.gmra.mxu0 %v2523
    %v2558 = vpop.f32.mrf.mxu0
    %v2559 = vadd.f32 0.0, %v2558
    %v2560 = vpop.f32.mrf.mxu0
    %v2561 = vadd.f32 0.0, %v2560
    %v2562 = vpop.f32.mrf.mxu0
    %v2563 = vpop.f32.mrf.mxu0
    %2564 = vdwg.mxu0
    %2565 = vmatprep.subr.bf16.mxu0 %v1034
    %2566 = vmatpush1.bf16.msra.mxu0 %v1033
    %2567 = vmatprep.subr.bf16.mxu0 %v1030
    %2568 = vmatpush1.bf16.msra.mxu0 %v1029
    %2569 = vmatprep.subr.bf16.mxu0 %v1026
    %2570 = vmatpush1.bf16.msra.mxu0 %v1025
    %2571 = vmatprep.subr.bf16.mxu0 %v1022
    %2572 = vmatpush1.bf16.msra.mxu0 %v1021
    %2573 = vmatprep.subr.bf16.mxu0 %v1018
    %2574 = vmatpush1.bf16.msra.mxu0 %v1017
    %2575 = vmatprep.subr.bf16.mxu0 %v1014
    %2576 = vmatpush1.bf16.msra.mxu0 %v1013
    %2577 = vmatprep.subr.bf16.mxu0 %v1010
    %2578 = vmatpush1.bf16.msra.mxu0 %v1009
    %2579 = vmatprep.subr.bf16.mxu0 %v1006
    %2580 = vmatpush1.bf16.msra.mxu0 %v1005
    %2581 = vmatprep.subr.bf16.mxu0 0
    %2582 = vmatpush2.bf16.msra.mxu0 0
    %2583 = vmatprep.subr.bf16.mxu0 0
    %2584 = vmatpush2.bf16.msra.mxu0 0
    %2585 = vmatprep.subr.bf16.mxu0 0
    %2586 = vmatpush2.bf16.msra.mxu0 0
    %2587 = vmatprep.subr.bf16.mxu0 0
    %2588 = vmatpush2.bf16.msra.mxu0 0
    %2589 = vmatprep.subr.bf16.mxu0 0
    %2590 = vmatpush2.bf16.msra.mxu0 0
    %2591 = vmatprep.subr.bf16.mxu0 0
    %2592 = vmatpush2.bf16.msra.mxu0 0
    %2593 = vmatprep.subr.bf16.mxu0 0
    %2594 = vmatpush2.bf16.msra.mxu0 0
    %2595 = vmatprep.subr.bf16.mxu0 0
    %2596 = vmatpush2.bf16.msra.mxu0 0
    %2597 = vmatprep.mubr.bf16.mxu0 0
    %2598 = vmatmul.mubr.bf16.gmra.mxu0 %v2523
    %v2599 = vpop.f32.mrf.mxu0
    %v2600 = vadd.f32 0.0, %v2599
    %v2601 = vpop.f32.mrf.mxu0
    %v2602 = vadd.f32 0.0, %v2601
    %v2603 = vpop.f32.mrf.mxu0
    %v2604 = vpop.f32.mrf.mxu0
    %2605 = vdwg.mxu0
    %2606 = vmatprep.subr.bf16.mxu0 %v1274
    %2607 = vmatpush1.bf16.msra.mxu0 %v1273
    %2608 = vmatprep.subr.bf16.mxu0 %v1270
    %2609 = vmatpush1.bf16.msra.mxu0 %v1269
    %2610 = vmatprep.subr.bf16.mxu0 %v1266
    %2611 = vmatpush1.bf16.msra.mxu0 %v1265
    %2612 = vmatprep.subr.bf16.mxu0 %v1262
    %2613 = vmatpush1.bf16.msra.mxu0 %v1261
    %2614 = vmatprep.subr.bf16.mxu0 %v1258
    %2615 = vmatpush1.bf16.msra.mxu0 %v1257
    %2616 = vmatprep.subr.bf16.mxu0 %v1254
    %2617 = vmatpush1.bf16.msra.mxu0 %v1253
    %2618 = vmatprep.subr.bf16.mxu0 %v1250
    %2619 = vmatpush1.bf16.msra.mxu0 %v1249
    %2620 = vmatprep.subr.bf16.mxu0 %v1246
    %2621 = vmatpush1.bf16.msra.mxu0 %v1245
    %2622 = vmatprep.subr.bf16.mxu0 0
    %2623 = vmatpush2.bf16.msra.mxu0 0
    %2624 = vmatprep.subr.bf16.mxu0 0
    %2625 = vmatpush2.bf16.msra.mxu0 0
    %2626 = vmatprep.subr.bf16.mxu0 0
    %2627 = vmatpush2.bf16.msra.mxu0 0
    %2628 = vmatprep.subr.bf16.mxu0 0
    %2629 = vmatpush2.bf16.msra.mxu0 0
    %2630 = vmatprep.subr.bf16.mxu0 0
    %2631 = vmatpush2.bf16.msra.mxu0 0
    %2632 = vmatprep.subr.bf16.mxu0 0
    %2633 = vmatpush2.bf16.msra.mxu0 0
    %2634 = vmatprep.subr.bf16.mxu0 0
    %2635 = vmatpush2.bf16.msra.mxu0 0
    %2636 = vmatprep.subr.bf16.mxu0 0
    %2637 = vmatpush2.bf16.msra.mxu0 0
    %2638 = vmatprep.mubr.bf16.mxu0 0
    %2639 = vmatmul.mubr.bf16.gmra.mxu0 %v2522
    %v2640 = vpop.f32.mrf.mxu0
    %v2641 = vadd.f32 %v2559, %v2640
    %v2642 = vpop.f32.mrf.mxu0
    %v2643 = vadd.f32 %v2561, %v2642
    %v2644 = vpop.f32.mrf.mxu0
    %v2645 = vpop.f32.mrf.mxu0
    %2646 = vdwg.mxu0
    %2647 = vmatprep.subr.bf16.mxu0 %v1276
    %2648 = vmatpush1.bf16.msra.mxu0 %v1275
    %2649 = vmatprep.subr.bf16.mxu0 %v1272
    %2650 = vmatpush1.bf16.msra.mxu0 %v1271
    %2651 = vmatprep.subr.bf16.mxu0 %v1268
    %2652 = vmatpush1.bf16.msra.mxu0 %v1267
    %2653 = vmatprep.subr.bf16.mxu0 %v1264
    %2654 = vmatpush1.bf16.msra.mxu0 %v1263
    %2655 = vmatprep.subr.bf16.mxu0 %v1260
    %2656 = vmatpush1.bf16.msra.mxu0 %v1259
    %2657 = vmatprep.subr.bf16.mxu0 %v1256
    %2658 = vmatpush1.bf16.msra.mxu0 %v1255
    %2659 = vmatprep.subr.bf16.mxu0 %v1252
    %2660 = vmatpush1.bf16.msra.mxu0 %v1251
    %2661 = vmatprep.subr.bf16.mxu0 %v1248
    %2662 = vmatpush1.bf16.msra.mxu0 %v1247
    %2663 = vmatprep.subr.bf16.mxu0 0
    %2664 = vmatpush2.bf16.msra.mxu0 0
    %2665 = vmatprep.subr.bf16.mxu0 0
    %2666 = vmatpush2.bf16.msra.mxu0 0
    %2667 = vmatprep.subr.bf16.mxu0 0
    %2668 = vmatpush2.bf16.msra.mxu0 0
    %2669 = vmatprep.subr.bf16.mxu0 0
    %2670 = vmatpush2.bf16.msra.mxu0 0
    %2671 = vmatprep.subr.bf16.mxu0 0
    %2672 = vmatpush2.bf16.msra.mxu0 0
    %2673 = vmatprep.subr.bf16.mxu0 0
    %2674 = vmatpush2.bf16.msra.mxu0 0
    %2675 = vmatprep.subr.bf16.mxu0 0
    %2676 = vmatpush2.bf16.msra.mxu0 0
    %2677 = vmatprep.subr.bf16.mxu0 0
    %2678 = vmatpush2.bf16.msra.mxu0 0
    %2679 = vmatprep.mubr.bf16.mxu0 0
    %2680 = vmatmul.mubr.bf16.gmra.mxu0 %v2522
    %v2681 = vpop.f32.mrf.mxu0
    %v2682 = vadd.f32 %v2600, %v2681
    %v2683 = vpop.f32.mrf.mxu0
    %v2684 = vadd.f32 %v2602, %v2683
    %v2685 = vpop.f32.mrf.mxu0
    %v2686 = vpop.f32.mrf.mxu0
    %2687 = vdwg.mxu0
    %v2688 = vadd.f32 %v2641, %v1395
    %v2689 = vadd.f32 %v2643, %v1399
    %v2690 = vadd.f32 %v2682, %v1403
    %v2691 = vadd.f32 %v2684, %v1407
    %v2692 = vxor.u32 %v2688, 2147483648
    %v2693 = vxor.u32 %v2689, 2147483648
    %v2694 = vxor.u32 %v2690, 2147483648
    %v2695 = vmul.f32 %v2692, 1.442695
    %v2696 = vpow.pop %v2695
    %v2697 = vmul.f32 %v2693, 1.442695
    %v2698 = vpow.pop %v2697
    %v2699 = vmul.f32 %v2694, 1.442695
    %v2700 = vpow.pop %v2699
    %v2701 = vadd.f32 %v2696, 1.0
    %v2702 = vadd.f32 %v2698, 1.0
    %v2703 = vadd.f32 %v2700, 1.0
    %v2704 = vrcp.pop %v2701
    %v2705 = vmul.f32 1.0, %v2704
    %v2706 = vrcp.pop %v2702
    %v2707 = vmul.f32 1.0, %v2706
    %v2708 = vrcp.pop %v2703
    %v2709 = vmul.f32 1.0, %v2708
    %v2710 = vtanh.pop %v2691
    %v2711 = vmul.f32 %v2707, %v2398
    %v2712 = vmul.f32 %v2705, %v2710
    %v2713 = vadd.f32 %v2711, %v2712
    %v2714 = vtanh.pop %v2713
    %v2715 = vmul.f32 %v2709, %v2714
    %v2716 = vsel %vm2404, %v2715, %v2397
    %v2717 = vsel %vm2404, %v2713, %v2398
    %vm2718 = vcmp.gt.s32.totalorder %v526, 5
    %v2719 = vsel %vm2718, 1, 0
    %2720 = vset.pattern.permute.xlu0 0
    %2721 = vperm.xlu0 %2720, %v2719
    %v2722 = vpop.permute.xlu0 %2721
    %vm2723 = vcmp.eq.s32.totalorder %v2722, 1
    %s2724 = scalar_lea.vmem [#allocation2], 160
    %v2725 = vld [vmem:[%s2724] sm:$0xff]
    %v2726 = vld [vmem:[%s2724 + $0x8] sm:$0xff]
    %v2727 = vld [vmem:[%s2724 + $0x10] sm:$0xff]
    %v2728 = vld [vmem:[%s2724 + $0x18] sm:$0xff]
    %2729 = vmatprep.subr.bf16.mxu0 %v695
    %2730 = vmatpush1.bf16.msra.mxu0 %v694
    %2731 = vmatprep.subr.bf16.mxu0 %v691
    %2732 = vmatpush1.bf16.msra.mxu0 %v690
    %2733 = vmatprep.subr.bf16.mxu0 %v687
    %2734 = vmatpush1.bf16.msra.mxu0 %v686
    %2735 = vmatprep.subr.bf16.mxu0 %v683
    %2736 = vmatpush1.bf16.msra.mxu0 %v682
    %2737 = vmatprep.subr.bf16.mxu0 %v679
    %2738 = vmatpush1.bf16.msra.mxu0 %v678
    %2739 = vmatprep.subr.bf16.mxu0 %v675
    %2740 = vmatpush1.bf16.msra.mxu0 %v674
    %2741 = vmatprep.subr.bf16.mxu0 %v671
    %2742 = vmatpush1.bf16.msra.mxu0 %v670
    %2743 = vmatprep.subr.bf16.mxu0 %v667
    %2744 = vmatpush1.bf16.msra.mxu0 %v666
    %2745 = vmatprep.subr.bf16.mxu0 0
    %2746 = vmatpush2.bf16.msra.mxu0 0
    %2747 = vmatprep.subr.bf16.mxu0 0
    %2748 = vmatpush2.bf16.msra.mxu0 0
    %2749 = vmatprep.subr.bf16.mxu0 0
    %2750 = vmatpush2.bf16.msra.mxu0 0
    %2751 = vmatprep.subr.bf16.mxu0 0
    %2752 = vmatpush2.bf16.msra.mxu0 0
    %2753 = vmatprep.subr.bf16.mxu0 0
    %2754 = vmatpush2.bf16.msra.mxu0 0
    %2755 = vmatprep.subr.bf16.mxu0 0
    %2756 = vmatpush2.bf16.msra.mxu0 0
    %2757 = vmatprep.subr.bf16.mxu0 0
    %2758 = vmatpush2.bf16.msra.mxu0 0
    %2759 = vmatprep.subr.bf16.mxu0 0
    %2760 = vmatpush2.bf16.msra.mxu0 0
    %2761 = vmatprep.mubr.bf16.mxu0 0
    %2762 = vmatmul.mubr.bf16.gmra.mxu0 %v2522
    %v2763 = vpop.f32.mrf.mxu0
    %v2764 = vadd.f32 0.0, %v2763
    %v2765 = vpop.f32.mrf.mxu0
    %v2766 = vadd.f32 0.0, %v2765
    %v2767 = vpop.f32.mrf.mxu0
    %v2768 = vpop.f32.mrf.mxu0
    %2769 = vdwg.mxu0
    %2770 = vmatprep.subr.bf16.mxu0 %v697
    %2771 = vmatpush1.bf16.msra.mxu0 %v696
    %2772 = vmatprep.subr.bf16.mxu0 %v693
    %2773 = vmatpush1.bf16.msra.mxu0 %v692
    %2774 = vmatprep.subr.bf16.mxu0 %v689
    %2775 = vmatpush1.bf16.msra.mxu0 %v688
    %2776 = vmatprep.subr.bf16.mxu0 %v685
    %2777 = vmatpush1.bf16.msra.mxu0 %v684
    %2778 = vmatprep.subr.bf16.mxu0 %v681
    %2779 = vmatpush1.bf16.msra.mxu0 %v680
    %2780 = vmatprep.subr.bf16.mxu0 %v677
    %2781 = vmatpush1.bf16.msra.mxu0 %v676
    %2782 = vmatprep.subr.bf16.mxu0 %v673
    %2783 = vmatpush1.bf16.msra.mxu0 %v672
    %2784 = vmatprep.subr.bf16.mxu0 %v669
    %2785 = vmatpush1.bf16.msra.mxu0 %v668
    %2786 = vmatprep.subr.bf16.mxu0 0
    %2787 = vmatpush2.bf16.msra.mxu0 0
    %2788 = vmatprep.subr.bf16.mxu0 0
    %2789 = vmatpush2.bf16.msra.mxu0 0
    %2790 = vmatprep.subr.bf16.mxu0 0
    %2791 = vmatpush2.bf16.msra.mxu0 0
    %2792 = vmatprep.subr.bf16.mxu0 0
    %2793 = vmatpush2.bf16.msra.mxu0 0
    %2794 = vmatprep.subr.bf16.mxu0 0
    %2795 = vmatpush2.bf16.msra.mxu0 0
    %2796 = vmatprep.subr.bf16.mxu0 0
    %2797 = vmatpush2.bf16.msra.mxu0 0
    %2798 = vmatprep.subr.bf16.mxu0 0
    %2799 = vmatpush2.bf16.msra.mxu0 0
    %2800 = vmatprep.subr.bf16.mxu0 0
    %2801 = vmatpush2.bf16.msra.mxu0 0
    %2802 = vmatprep.mubr.bf16.mxu0 0
    %2803 = vmatmul.mubr.bf16.gmra.mxu0 %v2522
    %v2804 = vpop.f32.mrf.mxu0
    %v2805 = vadd.f32 0.0, %v2804
    %v2806 = vpop.f32.mrf.mxu0
    %v2807 = vadd.f32 0.0, %v2806
    %v2808 = vpop.f32.mrf.mxu0
    %v2809 = vpop.f32.mrf.mxu0
    %2810 = vdwg.mxu0
    %v2811 = vadd.f32 %v2725, %v2764
    %v2812 = vadd.f32 %v2726, %v2766
    %v2813 = vadd.f32 %v2727, %v2805
    %v2814 = vadd.f32 %v2728, %v2807
    %v2815 = vxor.u32 %v2811, 2147483648
    %v2816 = vxor.u32 %v2812, 2147483648
    %v2817 = vxor.u32 %v2813, 2147483648
    %v2818 = vmul.f32 %v2815, 1.442695
    %v2819 = vpow.pop %v2818
    %v2820 = vmul.f32 %v2816, 1.442695
    %v2821 = vpow.pop %v2820
    %v2822 = vmul.f32 %v2817, 1.442695
    %v2823 = vpow.pop %v2822
    %v2824 = vadd.f32 %v2819, 1.0
    %v2825 = vadd.f32 %v2821, 1.0
    %v2826 = vadd.f32 %v2823, 1.0
    %v2827 = vrcp.pop %v2824
    %v2828 = vmul.f32 1.0, %v2827
    %v2829 = vrcp.pop %v2825
    %v2830 = vmul.f32 1.0, %v2829
    %v2831 = vrcp.pop %v2826
    %v2832 = vmul.f32 1.0, %v2831
    %v2833 = vtanh.pop %v2814
    %v2834 = vmul.f32 %v2830, %v2521
    %v2835 = vmul.f32 %v2828, %v2833
    %v2836 = vadd.f32 %v2834, %v2835
    %v2837 = vtanh.pop %v2836
    %v2838 = vmul.f32 %v2832, %v2837
    %v2839 = vsel %vm2723, %v2838, %v2520
    %v2840 = vsel %vm2723, %v2836, %v2521
    %v2841 = vpack.c.bf16 %v2839, %v2839
    %v2842 = vpack.c.bf16 %v2716, %v2716
    %2843 = vmatprep.subr.bf16.mxu0 %v1032
    %2844 = vmatpush1.bf16.msra.mxu0 %v1031
    %2845 = vmatprep.subr.bf16.mxu0 %v1028
    %2846 = vmatpush1.bf16.msra.mxu0 %v1027
    %2847 = vmatprep.subr.bf16.mxu0 %v1024
    %2848 = vmatpush1.bf16.msra.mxu0 %v1023
    %2849 = vmatprep.subr.bf16.mxu0 %v1020
    %2850 = vmatpush1.bf16.msra.mxu0 %v1019
    %2851 = vmatprep.subr.bf16.mxu0 %v1016
    %2852 = vmatpush1.bf16.msra.mxu0 %v1015
    %2853 = vmatprep.subr.bf16.mxu0 %v1012
    %2854 = vmatpush1.bf16.msra.mxu0 %v1011
    %2855 = vmatprep.subr.bf16.mxu0 %v1008
    %2856 = vmatpush1.bf16.msra.mxu0 %v1007
    %2857 = vmatprep.subr.bf16.mxu0 %v1004
    %2858 = vmatpush1.bf16.msra.mxu0 %v1003
    %2859 = vmatprep.subr.bf16.mxu0 0
    %2860 = vmatpush2.bf16.msra.mxu0 0
    %2861 = vmatprep.subr.bf16.mxu0 0
    %2862 = vmatpush2.bf16.msra.mxu0 0
    %2863 = vmatprep.subr.bf16.mxu0 0
    %2864 = vmatpush2.bf16.msra.mxu0 0
    %2865 = vmatprep.subr.bf16.mxu0 0
    %2866 = vmatpush2.bf16.msra.mxu0 0
    %2867 = vmatprep.subr.bf16.mxu0 0
    %2868 = vmatpush2.bf16.msra.mxu0 0
    %2869 = vmatprep.subr.bf16.mxu0 0
    %2870 = vmatpush2.bf16.msra.mxu0 0
    %2871 = vmatprep.subr.bf16.mxu0 0
    %2872 = vmatpush2.bf16.msra.mxu0 0
    %2873 = vmatprep.subr.bf16.mxu0 0
    %2874 = vmatpush2.bf16.msra.mxu0 0
    %2875 = vmatprep.mubr.bf16.mxu0 0
    %2876 = vmatmul.mubr.bf16.gmra.mxu0 %v2842
    %v2877 = vpop.f32.mrf.mxu0
    %v2878 = vadd.f32 0.0, %v2877
    %v2879 = vpop.f32.mrf.mxu0
    %v2880 = vadd.f32 0.0, %v2879
    %v2881 = vpop.f32.mrf.mxu0
    %v2882 = vpop.f32.mrf.mxu0
    %2883 = vdwg.mxu0
    %2884 = vmatprep.subr.bf16.mxu0 %v1034
    %2885 = vmatpush1.bf16.msra.mxu0 %v1033
    %2886 = vmatprep.subr.bf16.mxu0 %v1030
    %2887 = vmatpush1.bf16.msra.mxu0 %v1029
    %2888 = vmatprep.subr.bf16.mxu0 %v1026
    %2889 = vmatpush1.bf16.msra.mxu0 %v1025
    %2890 = vmatprep.subr.bf16.mxu0 %v1022
    %2891 = vmatpush1.bf16.msra.mxu0 %v1021
    %2892 = vmatprep.subr.bf16.mxu0 %v1018
    %2893 = vmatpush1.bf16.msra.mxu0 %v1017
    %2894 = vmatprep.subr.bf16.mxu0 %v1014
    %2895 = vmatpush1.bf16.msra.mxu0 %v1013
    %2896 = vmatprep.subr.bf16.mxu0 %v1010
    %2897 = vmatpush1.bf16.msra.mxu0 %v1009
    %2898 = vmatprep.subr.bf16.mxu0 %v1006
    %2899 = vmatpush1.bf16.msra.mxu0 %v1005
    %2900 = vmatprep.subr.bf16.mxu0 0
    %2901 = vmatpush2.bf16.msra.mxu0 0
    %2902 = vmatprep.subr.bf16.mxu0 0
    %2903 = vmatpush2.bf16.msra.mxu0 0
    %2904 = vmatprep.subr.bf16.mxu0 0
    %2905 = vmatpush2.bf16.msra.mxu0 0
    %2906 = vmatprep.subr.bf16.mxu0 0
    %2907 = vmatpush2.bf16.msra.mxu0 0
    %2908 = vmatprep.subr.bf16.mxu0 0
    %2909 = vmatpush2.bf16.msra.mxu0 0
    %2910 = vmatprep.subr.bf16.mxu0 0
    %2911 = vmatpush2.bf16.msra.mxu0 0
    %2912 = vmatprep.subr.bf16.mxu0 0
    %2913 = vmatpush2.bf16.msra.mxu0 0
    %2914 = vmatprep.subr.bf16.mxu0 0
    %2915 = vmatpush2.bf16.msra.mxu0 0
    %2916 = vmatprep.mubr.bf16.mxu0 0
    %2917 = vmatmul.mubr.bf16.gmra.mxu0 %v2842
    %v2918 = vpop.f32.mrf.mxu0
    %v2919 = vadd.f32 0.0, %v2918
    %v2920 = vpop.f32.mrf.mxu0
    %v2921 = vadd.f32 0.0, %v2920
    %v2922 = vpop.f32.mrf.mxu0
    %v2923 = vpop.f32.mrf.mxu0
    %2924 = vdwg.mxu0
    %2925 = vmatprep.subr.bf16.mxu0 %v1274
    %2926 = vmatpush1.bf16.msra.mxu0 %v1273
    %2927 = vmatprep.subr.bf16.mxu0 %v1270
    %2928 = vmatpush1.bf16.msra.mxu0 %v1269
    %2929 = vmatprep.subr.bf16.mxu0 %v1266
    %2930 = vmatpush1.bf16.msra.mxu0 %v1265
    %2931 = vmatprep.subr.bf16.mxu0 %v1262
    %2932 = vmatpush1.bf16.msra.mxu0 %v1261
    %2933 = vmatprep.subr.bf16.mxu0 %v1258
    %2934 = vmatpush1.bf16.msra.mxu0 %v1257
    %2935 = vmatprep.subr.bf16.mxu0 %v1254
    %2936 = vmatpush1.bf16.msra.mxu0 %v1253
    %2937 = vmatprep.subr.bf16.mxu0 %v1250
    %2938 = vmatpush1.bf16.msra.mxu0 %v1249
    %2939 = vmatprep.subr.bf16.mxu0 %v1246
    %2940 = vmatpush1.bf16.msra.mxu0 %v1245
    %2941 = vmatprep.subr.bf16.mxu0 0
    %2942 = vmatpush2.bf16.msra.mxu0 0
    %2943 = vmatprep.subr.bf16.mxu0 0
    %2944 = vmatpush2.bf16.msra.mxu0 0
    %2945 = vmatprep.subr.bf16.mxu0 0
    %2946 = vmatpush2.bf16.msra.mxu0 0
    %2947 = vmatprep.subr.bf16.mxu0 0
    %2948 = vmatpush2.bf16.msra.mxu0 0
    %2949 = vmatprep.subr.bf16.mxu0 0
    %2950 = vmatpush2.bf16.msra.mxu0 0
    %2951 = vmatprep.subr.bf16.mxu0 0
    %2952 = vmatpush2.bf16.msra.mxu0 0
    %2953 = vmatprep.subr.bf16.mxu0 0
    %2954 = vmatpush2.bf16.msra.mxu0 0
    %2955 = vmatprep.subr.bf16.mxu0 0
    %2956 = vmatpush2.bf16.msra.mxu0 0
    %2957 = vmatprep.mubr.bf16.mxu0 0
    %2958 = vmatmul.mubr.bf16.gmra.mxu0 %v2841
    %v2959 = vpop.f32.mrf.mxu0
    %v2960 = vadd.f32 %v2878, %v2959
    %v2961 = vpop.f32.mrf.mxu0
    %v2962 = vadd.f32 %v2880, %v2961
    %v2963 = vpop.f32.mrf.mxu0
    %v2964 = vpop.f32.mrf.mxu0
    %2965 = vdwg.mxu0
    %2966 = vmatprep.subr.bf16.mxu0 %v1276
    %2967 = vmatpush1.bf16.msra.mxu0 %v1275
    %2968 = vmatprep.subr.bf16.mxu0 %v1272
    %2969 = vmatpush1.bf16.msra.mxu0 %v1271
    %2970 = vmatprep.subr.bf16.mxu0 %v1268
    %2971 = vmatpush1.bf16.msra.mxu0 %v1267
    %2972 = vmatprep.subr.bf16.mxu0 %v1264
    %2973 = vmatpush1.bf16.msra.mxu0 %v1263
    %2974 = vmatprep.subr.bf16.mxu0 %v1260
    %2975 = vmatpush1.bf16.msra.mxu0 %v1259
    %2976 = vmatprep.subr.bf16.mxu0 %v1256
    %2977 = vmatpush1.bf16.msra.mxu0 %v1255
    %2978 = vmatprep.subr.bf16.mxu0 %v1252
    %2979 = vmatpush1.bf16.msra.mxu0 %v1251
    %2980 = vmatprep.subr.bf16.mxu0 %v1248
    %2981 = vmatpush1.bf16.msra.mxu0 %v1247
    %2982 = vmatprep.subr.bf16.mxu0 0
    %2983 = vmatpush2.bf16.msra.mxu0 0
    %2984 = vmatprep.subr.bf16.mxu0 0
    %2985 = vmatpush2.bf16.msra.mxu0 0
    %2986 = vmatprep.subr.bf16.mxu0 0
    %2987 = vmatpush2.bf16.msra.mxu0 0
    %2988 = vmatprep.subr.bf16.mxu0 0
    %2989 = vmatpush2.bf16.msra.mxu0 0
    %2990 = vmatprep.subr.bf16.mxu0 0
    %2991 = vmatpush2.bf16.msra.mxu0 0
    %2992 = vmatprep.subr.bf16.mxu0 0
    %2993 = vmatpush2.bf16.msra.mxu0 0
    %2994 = vmatprep.subr.bf16.mxu0 0
    %2995 = vmatpush2.bf16.msra.mxu0 0
    %2996 = vmatprep.subr.bf16.mxu0 0
    %2997 = vmatpush2.bf16.msra.mxu0 0
    %2998 = vmatprep.mubr.bf16.mxu0 0
    %2999 = vmatmul.mubr.bf16.gmra.mxu0 %v2841
    %v3000 = vpop.f32.mrf.mxu0
    %v3001 = vadd.f32 %v2919, %v3000
    %v3002 = vpop.f32.mrf.mxu0
    %v3003 = vadd.f32 %v2921, %v3002
    %v3004 = vpop.f32.mrf.mxu0
    %v3005 = vpop.f32.mrf.mxu0
    %3006 = vdwg.mxu0
    %v3007 = vadd.f32 %v2960, %v1395
    %v3008 = vadd.f32 %v2962, %v1399
    %v3009 = vadd.f32 %v3001, %v1403
    %v3010 = vadd.f32 %v3003, %v1407
    %v3011 = vxor.u32 %v3007, 2147483648
    %v3012 = vxor.u32 %v3008, 2147483648
    %v3013 = vxor.u32 %v3009, 2147483648
    %v3014 = vmul.f32 %v3011, 1.442695
    %v3015 = vpow.pop %v3014
    %v3016 = vmul.f32 %v3012, 1.442695
    %v3017 = vpow.pop %v3016
    %v3018 = vmul.f32 %v3013, 1.442695
    %v3019 = vpow.pop %v3018
    %v3020 = vadd.f32 %v3015, 1.0
    %v3021 = vadd.f32 %v3017, 1.0
    %v3022 = vadd.f32 %v3019, 1.0
    %v3023 = vrcp.pop %v3020
    %v3024 = vmul.f32 1.0, %v3023
    %v3025 = vrcp.pop %v3021
    %v3026 = vmul.f32 1.0, %v3025
    %v3027 = vrcp.pop %v3022
    %v3028 = vmul.f32 1.0, %v3027
    %v3029 = vtanh.pop %v3010
    %v3030 = vmul.f32 %v3026, %v2717
    %v3031 = vmul.f32 %v3024, %v3029
    %v3032 = vadd.f32 %v3030, %v3031
    %v3033 = vtanh.pop %v3032
    %v3034 = vmul.f32 %v3028, %v3033
    %v3035 = vsel %vm2723, %v3034, %v2716
    %v3036 = vsel %vm2723, %v3032, %v2717
    %vm3037 = vcmp.gt.s32.totalorder %v526, 6
    %v3038 = vsel %vm3037, 1, 0
    %3039 = vset.pattern.permute.xlu0 0
    %3040 = vperm.xlu0 %3039, %v3038
    %v3041 = vpop.permute.xlu0 %3040
    %vm3042 = vcmp.eq.s32.totalorder %v3041, 1
    %s3043 = scalar_lea.vmem [#allocation2], 192
    %v3044 = vld [vmem:[%s3043] sm:$0xff]
    %v3045 = vld [vmem:[%s3043 + $0x8] sm:$0xff]
    %v3046 = vld [vmem:[%s3043 + $0x10] sm:$0xff]
    %v3047 = vld [vmem:[%s3043 + $0x18] sm:$0xff]
    %3048 = vmatprep.subr.bf16.mxu0 %v695
    %3049 = vmatpush1.bf16.msra.mxu0 %v694
    %3050 = vmatprep.subr.bf16.mxu0 %v691
    %3051 = vmatpush1.bf16.msra.mxu0 %v690
    %3052 = vmatprep.subr.bf16.mxu0 %v687
    %3053 = vmatpush1.bf16.msra.mxu0 %v686
    %3054 = vmatprep.subr.bf16.mxu0 %v683
    %3055 = vmatpush1.bf16.msra.mxu0 %v682
    %3056 = vmatprep.subr.bf16.mxu0 %v679
    %3057 = vmatpush1.bf16.msra.mxu0 %v678
    %3058 = vmatprep.subr.bf16.mxu0 %v675
    %3059 = vmatpush1.bf16.msra.mxu0 %v674
    %3060 = vmatprep.subr.bf16.mxu0 %v671
    %3061 = vmatpush1.bf16.msra.mxu0 %v670
    %3062 = vmatprep.subr.bf16.mxu0 %v667
    %3063 = vmatpush1.bf16.msra.mxu0 %v666
    %3064 = vmatprep.subr.bf16.mxu0 0
    %3065 = vmatpush2.bf16.msra.mxu0 0
    %3066 = vmatprep.subr.bf16.mxu0 0
    %3067 = vmatpush2.bf16.msra.mxu0 0
    %3068 = vmatprep.subr.bf16.mxu0 0
    %3069 = vmatpush2.bf16.msra.mxu0 0
    %3070 = vmatprep.subr.bf16.mxu0 0
    %3071 = vmatpush2.bf16.msra.mxu0 0
    %3072 = vmatprep.subr.bf16.mxu0 0
    %3073 = vmatpush2.bf16.msra.mxu0 0
    %3074 = vmatprep.subr.bf16.mxu0 0
    %3075 = vmatpush2.bf16.msra.mxu0 0
    %3076 = vmatprep.subr.bf16.mxu0 0
    %3077 = vmatpush2.bf16.msra.mxu0 0
    %3078 = vmatprep.subr.bf16.mxu0 0
    %3079 = vmatpush2.bf16.msra.mxu0 0
    %3080 = vmatprep.mubr.bf16.mxu0 0
    %3081 = vmatmul.mubr.bf16.gmra.mxu0 %v2841
    %v3082 = vpop.f32.mrf.mxu0
    %v3083 = vadd.f32 0.0, %v3082
    %v3084 = vpop.f32.mrf.mxu0
    %v3085 = vadd.f32 0.0, %v3084
    %v3086 = vpop.f32.mrf.mxu0
    %v3087 = vpop.f32.mrf.mxu0
    %3088 = vdwg.mxu0
    %3089 = vmatprep.subr.bf16.mxu0 %v697
    %3090 = vmatpush1.bf16.msra.mxu0 %v696
    %3091 = vmatprep.subr.bf16.mxu0 %v693
    %3092 = vmatpush1.bf16.msra.mxu0 %v692
    %3093 = vmatprep.subr.bf16.mxu0 %v689
    %3094 = vmatpush1.bf16.msra.mxu0 %v688
    %3095 = vmatprep.subr.bf16.mxu0 %v685
    %3096 = vmatpush1.bf16.msra.mxu0 %v684
    %3097 = vmatprep.subr.bf16.mxu0 %v681
    %3098 = vmatpush1.bf16.msra.mxu0 %v680
    %3099 = vmatprep.subr.bf16.mxu0 %v677
    %3100 = vmatpush1.bf16.msra.mxu0 %v676
    %3101 = vmatprep.subr.bf16.mxu0 %v673
    %3102 = vmatpush1.bf16.msra.mxu0 %v672
    %3103 = vmatprep.subr.bf16.mxu0 %v669
    %3104 = vmatpush1.bf16.msra.mxu0 %v668
    %3105 = vmatprep.subr.bf16.mxu0 0
    %3106 = vmatpush2.bf16.msra.mxu0 0
    %3107 = vmatprep.subr.bf16.mxu0 0
    %3108 = vmatpush2.bf16.msra.mxu0 0
    %3109 = vmatprep.subr.bf16.mxu0 0
    %3110 = vmatpush2.bf16.msra.mxu0 0
    %3111 = vmatprep.subr.bf16.mxu0 0
    %3112 = vmatpush2.bf16.msra.mxu0 0
    %3113 = vmatprep.subr.bf16.mxu0 0
    %3114 = vmatpush2.bf16.msra.mxu0 0
    %3115 = vmatprep.subr.bf16.mxu0 0
    %3116 = vmatpush2.bf16.msra.mxu0 0
    %3117 = vmatprep.subr.bf16.mxu0 0
    %3118 = vmatpush2.bf16.msra.mxu0 0
    %3119 = vmatprep.subr.bf16.mxu0 0
    %3120 = vmatpush2.bf16.msra.mxu0 0
    %3121 = vmatprep.mubr.bf16.mxu0 0
    %3122 = vmatmul.mubr.bf16.gmra.mxu0 %v2841
    %v3123 = vpop.f32.mrf.mxu0
    %v3124 = vadd.f32 0.0, %v3123
    %v3125 = vpop.f32.mrf.mxu0
    %v3126 = vadd.f32 0.0, %v3125
    %v3127 = vpop.f32.mrf.mxu0
    %v3128 = vpop.f32.mrf.mxu0
    %3129 = vdwg.mxu0
    %v3130 = vadd.f32 %v3044, %v3083
    %v3131 = vadd.f32 %v3045, %v3085
    %v3132 = vadd.f32 %v3046, %v3124
    %v3133 = vadd.f32 %v3047, %v3126
    %v3134 = vxor.u32 %v3130, 2147483648
    %v3135 = vxor.u32 %v3131, 2147483648
    %v3136 = vxor.u32 %v3132, 2147483648
    %v3137 = vmul.f32 %v3134, 1.442695
    %v3138 = vpow.pop %v3137
    %v3139 = vmul.f32 %v3135, 1.442695
    %v3140 = vpow.pop %v3139
    %v3141 = vmul.f32 %v3136, 1.442695
    %v3142 = vpow.pop %v3141
    %v3143 = vadd.f32 %v3138, 1.0
    %v3144 = vadd.f32 %v3140, 1.0
    %v3145 = vadd.f32 %v3142, 1.0
    %v3146 = vrcp.pop %v3143
    %v3147 = vmul.f32 1.0, %v3146
    %v3148 = vrcp.pop %v3144
    %v3149 = vmul.f32 1.0, %v3148
    %v3150 = vrcp.pop %v3145
    %v3151 = vmul.f32 1.0, %v3150
    %v3152 = vtanh.pop %v3133
    %v3153 = vmul.f32 %v3149, %v2840
    %v3154 = vmul.f32 %v3147, %v3152
    %v3155 = vadd.f32 %v3153, %v3154
    %v3156 = vtanh.pop %v3155
    %v3157 = vmul.f32 %v3151, %v3156
    %v3158 = vsel %vm3042, %v3157, %v2839
    %v3159 = vsel %vm3042, %v3155, %v2840
    %v3160 = vpack.c.bf16 %v3158, %v3158
    %v3161 = vpack.c.bf16 %v3035, %v3035
    %3162 = vmatprep.subr.bf16.mxu0 %v1032
    %3163 = vmatpush1.bf16.msra.mxu0 %v1031
    %3164 = vmatprep.subr.bf16.mxu0 %v1028
    %3165 = vmatpush1.bf16.msra.mxu0 %v1027
    %3166 = vmatprep.subr.bf16.mxu0 %v1024
    %3167 = vmatpush1.bf16.msra.mxu0 %v1023
    %3168 = vmatprep.subr.bf16.mxu0 %v1020
    %3169 = vmatpush1.bf16.msra.mxu0 %v1019
    %3170 = vmatprep.subr.bf16.mxu0 %v1016
    %3171 = vmatpush1.bf16.msra.mxu0 %v1015
    %3172 = vmatprep.subr.bf16.mxu0 %v1012
    %3173 = vmatpush1.bf16.msra.mxu0 %v1011
    %3174 = vmatprep.subr.bf16.mxu0 %v1008
    %3175 = vmatpush1.bf16.msra.mxu0 %v1007
    %3176 = vmatprep.subr.bf16.mxu0 %v1004
    %3177 = vmatpush1.bf16.msra.mxu0 %v1003
    %3178 = vmatprep.subr.bf16.mxu0 0
    %3179 = vmatpush2.bf16.msra.mxu0 0
    %3180 = vmatprep.subr.bf16.mxu0 0
    %3181 = vmatpush2.bf16.msra.mxu0 0
    %3182 = vmatprep.subr.bf16.mxu0 0
    %3183 = vmatpush2.bf16.msra.mxu0 0
    %3184 = vmatprep.subr.bf16.mxu0 0
    %3185 = vmatpush2.bf16.msra.mxu0 0
    %3186 = vmatprep.subr.bf16.mxu0 0
    %3187 = vmatpush2.bf16.msra.mxu0 0
    %3188 = vmatprep.subr.bf16.mxu0 0
    %3189 = vmatpush2.bf16.msra.mxu0 0
    %3190 = vmatprep.subr.bf16.mxu0 0
    %3191 = vmatpush2.bf16.msra.mxu0 0
    %3192 = vmatprep.subr.bf16.mxu0 0
    %3193 = vmatpush2.bf16.msra.mxu0 0
    %3194 = vmatprep.mubr.bf16.mxu0 0
    %3195 = vmatmul.mubr.bf16.gmra.mxu0 %v3161
    %v3196 = vpop.f32.mrf.mxu0
    %v3197 = vadd.f32 0.0, %v3196
    %v3198 = vpop.f32.mrf.mxu0
    %v3199 = vadd.f32 0.0, %v3198
    %v3200 = vpop.f32.mrf.mxu0
    %v3201 = vpop.f32.mrf.mxu0
    %3202 = vdwg.mxu0
    %3203 = vmatprep.subr.bf16.mxu0 %v1034
    %3204 = vmatpush1.bf16.msra.mxu0 %v1033
    %3205 = vmatprep.subr.bf16.mxu0 %v1030
    %3206 = vmatpush1.bf16.msra.mxu0 %v1029
    %3207 = vmatprep.subr.bf16.mxu0 %v1026
    %3208 = vmatpush1.bf16.msra.mxu0 %v1025
    %3209 = vmatprep.subr.bf16.mxu0 %v1022
    %3210 = vmatpush1.bf16.msra.mxu0 %v1021
    %3211 = vmatprep.subr.bf16.mxu0 %v1018
    %3212 = vmatpush1.bf16.msra.mxu0 %v1017
    %3213 = vmatprep.subr.bf16.mxu0 %v1014
    %3214 = vmatpush1.bf16.msra.mxu0 %v1013
    %3215 = vmatprep.subr.bf16.mxu0 %v1010
    %3216 = vmatpush1.bf16.msra.mxu0 %v1009
    %3217 = vmatprep.subr.bf16.mxu0 %v1006
    %3218 = vmatpush1.bf16.msra.mxu0 %v1005
    %3219 = vmatprep.subr.bf16.mxu0 0
    %3220 = vmatpush2.bf16.msra.mxu0 0
    %3221 = vmatprep.subr.bf16.mxu0 0
    %3222 = vmatpush2.bf16.msra.mxu0 0
    %3223 = vmatprep.subr.bf16.mxu0 0
    %3224 = vmatpush2.bf16.msra.mxu0 0
    %3225 = vmatprep.subr.bf16.mxu0 0
    %3226 = vmatpush2.bf16.msra.mxu0 0
    %3227 = vmatprep.subr.bf16.mxu0 0
    %3228 = vmatpush2.bf16.msra.mxu0 0
    %3229 = vmatprep.subr.bf16.mxu0 0
    %3230 = vmatpush2.bf16.msra.mxu0 0
    %3231 = vmatprep.subr.bf16.mxu0 0
    %3232 = vmatpush2.bf16.msra.mxu0 0
    %3233 = vmatprep.subr.bf16.mxu0 0
    %3234 = vmatpush2.bf16.msra.mxu0 0
    %3235 = vmatprep.mubr.bf16.mxu0 0
    %3236 = vmatmul.mubr.bf16.gmra.mxu0 %v3161
    %v3237 = vpop.f32.mrf.mxu0
    %v3238 = vadd.f32 0.0, %v3237
    %v3239 = vpop.f32.mrf.mxu0
    %v3240 = vadd.f32 0.0, %v3239
    %v3241 = vpop.f32.mrf.mxu0
    %v3242 = vpop.f32.mrf.mxu0
    %3243 = vdwg.mxu0
    %3244 = vmatprep.subr.bf16.mxu0 %v1274
    %3245 = vmatpush1.bf16.msra.mxu0 %v1273
    %3246 = vmatprep.subr.bf16.mxu0 %v1270
    %3247 = vmatpush1.bf16.msra.mxu0 %v1269
    %3248 = vmatprep.subr.bf16.mxu0 %v1266
    %3249 = vmatpush1.bf16.msra.mxu0 %v1265
    %3250 = vmatprep.subr.bf16.mxu0 %v1262
    %3251 = vmatpush1.bf16.msra.mxu0 %v1261
    %3252 = vmatprep.subr.bf16.mxu0 %v1258
    %3253 = vmatpush1.bf16.msra.mxu0 %v1257
    %3254 = vmatprep.subr.bf16.mxu0 %v1254
    %3255 = vmatpush1.bf16.msra.mxu0 %v1253
    %3256 = vmatprep.subr.bf16.mxu0 %v1250
    %3257 = vmatpush1.bf16.msra.mxu0 %v1249
    %3258 = vmatprep.subr.bf16.mxu0 %v1246
    %3259 = vmatpush1.bf16.msra.mxu0 %v1245
    %3260 = vmatprep.subr.bf16.mxu0 0
    %3261 = vmatpush2.bf16.msra.mxu0 0
    %3262 = vmatprep.subr.bf16.mxu0 0
    %3263 = vmatpush2.bf16.msra.mxu0 0
    %3264 = vmatprep.subr.bf16.mxu0 0
    %3265 = vmatpush2.bf16.msra.mxu0 0
    %3266 = vmatprep.subr.bf16.mxu0 0
    %3267 = vmatpush2.bf16.msra.mxu0 0
    %3268 = vmatprep.subr.bf16.mxu0 0
    %3269 = vmatpush2.bf16.msra.mxu0 0
    %3270 = vmatprep.subr.bf16.mxu0 0
    %3271 = vmatpush2.bf16.msra.mxu0 0
    %3272 = vmatprep.subr.bf16.mxu0 0
    %3273 = vmatpush2.bf16.msra.mxu0 0
    %3274 = vmatprep.subr.bf16.mxu0 0
    %3275 = vmatpush2.bf16.msra.mxu0 0
    %3276 = vmatprep.mubr.bf16.mxu0 0
    %3277 = vmatmul.mubr.bf16.gmra.mxu0 %v3160
    %v3278 = vpop.f32.mrf.mxu0
    %v3279 = vadd.f32 %v3197, %v3278
    %v3280 = vpop.f32.mrf.mxu0
    %v3281 = vadd.f32 %v3199, %v3280
    %v3282 = vpop.f32.mrf.mxu0
    %v3283 = vpop.f32.mrf.mxu0
    %3284 = vdwg.mxu0
    %3285 = vmatprep.subr.bf16.mxu0 %v1276
    %3286 = vmatpush1.bf16.msra.mxu0 %v1275
    %3287 = vmatprep.subr.bf16.mxu0 %v1272
    %3288 = vmatpush1.bf16.msra.mxu0 %v1271
    %3289 = vmatprep.subr.bf16.mxu0 %v1268
    %3290 = vmatpush1.bf16.msra.mxu0 %v1267
    %3291 = vmatprep.subr.bf16.mxu0 %v1264
    %3292 = vmatpush1.bf16.msra.mxu0 %v1263
    %3293 = vmatprep.subr.bf16.mxu0 %v1260
    %3294 = vmatpush1.bf16.msra.mxu0 %v1259
    %3295 = vmatprep.subr.bf16.mxu0 %v1256
    %3296 = vmatpush1.bf16.msra.mxu0 %v1255
    %3297 = vmatprep.subr.bf16.mxu0 %v1252
    %3298 = vmatpush1.bf16.msra.mxu0 %v1251
    %3299 = vmatprep.subr.bf16.mxu0 %v1248
    %3300 = vmatpush1.bf16.msra.mxu0 %v1247
    %3301 = vmatprep.subr.bf16.mxu0 0
    %3302 = vmatpush2.bf16.msra.mxu0 0
    %3303 = vmatprep.subr.bf16.mxu0 0
    %3304 = vmatpush2.bf16.msra.mxu0 0
    %3305 = vmatprep.subr.bf16.mxu0 0
    %3306 = vmatpush2.bf16.msra.mxu0 0
    %3307 = vmatprep.subr.bf16.mxu0 0
    %3308 = vmatpush2.bf16.msra.mxu0 0
    %3309 = vmatprep.subr.bf16.mxu0 0
    %3310 = vmatpush2.bf16.msra.mxu0 0
    %3311 = vmatprep.subr.bf16.mxu0 0
    %3312 = vmatpush2.bf16.msra.mxu0 0
    %3313 = vmatprep.subr.bf16.mxu0 0
    %3314 = vmatpush2.bf16.msra.mxu0 0
    %3315 = vmatprep.subr.bf16.mxu0 0
    %3316 = vmatpush2.bf16.msra.mxu0 0
    %3317 = vmatprep.mubr.bf16.mxu0 0
    %3318 = vmatmul.mubr.bf16.gmra.mxu0 %v3160
    %v3319 = vpop.f32.mrf.mxu0
    %v3320 = vadd.f32 %v3238, %v3319
    %v3321 = vpop.f32.mrf.mxu0
    %v3322 = vadd.f32 %v3240, %v3321
    %v3323 = vpop.f32.mrf.mxu0
    %v3324 = vpop.f32.mrf.mxu0
    %3325 = vdwg.mxu0
    %v3326 = vadd.f32 %v3279, %v1395
    %v3327 = vadd.f32 %v3281, %v1399
    %v3328 = vadd.f32 %v3320, %v1403
    %v3329 = vadd.f32 %v3322, %v1407
    %v3330 = vxor.u32 %v3326, 2147483648
    %v3331 = vxor.u32 %v3327, 2147483648
    %v3332 = vxor.u32 %v3328, 2147483648
    %v3333 = vmul.f32 %v3330, 1.442695
    %v3334 = vpow.pop %v3333
    %v3335 = vmul.f32 %v3331, 1.442695
    %v3336 = vpow.pop %v3335
    %v3337 = vmul.f32 %v3332, 1.442695
    %v3338 = vpow.pop %v3337
    %v3339 = vadd.f32 %v3334, 1.0
    %v3340 = vadd.f32 %v3336, 1.0
    %v3341 = vadd.f32 %v3338, 1.0
    %v3342 = vrcp.pop %v3339
    %v3343 = vmul.f32 1.0, %v3342
    %v3344 = vrcp.pop %v3340
    %v3345 = vmul.f32 1.0, %v3344
    %v3346 = vrcp.pop %v3341
    %v3347 = vmul.f32 1.0, %v3346
    %v3348 = vtanh.pop %v3329
    %v3349 = vmul.f32 %v3345, %v3036
    %v3350 = vmul.f32 %v3343, %v3348
    %v3351 = vadd.f32 %v3349, %v3350
    %v3352 = vtanh.pop %v3351
    %v3353 = vmul.f32 %v3347, %v3352
    %v3354 = vsel %vm3042, %v3353, %v3035
    %v3355 = vsel %vm3042, %v3351, %v3036
    %vm3356 = vcmp.gt.s32.totalorder %v526, 7
    %v3357 = vsel %vm3356, 1, 0
    %3358 = vset.pattern.permute.xlu0 0
    %3359 = vperm.xlu0 %3358, %v3357
    %v3360 = vpop.permute.xlu0 %3359
    %vm3361 = vcmp.eq.s32.totalorder %v3360, 1
    %s3362 = scalar_lea.vmem [#allocation2], 224
    %v3363 = vld [vmem:[%s3362] sm:$0xff]
    %v3364 = vld [vmem:[%s3362 + $0x8] sm:$0xff]
    %v3365 = vld [vmem:[%s3362 + $0x10] sm:$0xff]
    %v3366 = vld [vmem:[%s3362 + $0x18] sm:$0xff]
    %3367 = vmatprep.subr.bf16.mxu0 %v695
    %3368 = vmatpush1.bf16.msra.mxu0 %v694
    %3369 = vmatprep.subr.bf16.mxu0 %v691
    %3370 = vmatpush1.bf16.msra.mxu0 %v690
    %3371 = vmatprep.subr.bf16.mxu0 %v687
    %3372 = vmatpush1.bf16.msra.mxu0 %v686
    %3373 = vmatprep.subr.bf16.mxu0 %v683
    %3374 = vmatpush1.bf16.msra.mxu0 %v682
    %3375 = vmatprep.subr.bf16.mxu0 %v679
    %3376 = vmatpush1.bf16.msra.mxu0 %v678
    %3377 = vmatprep.subr.bf16.mxu0 %v675
    %3378 = vmatpush1.bf16.msra.mxu0 %v674
    %3379 = vmatprep.subr.bf16.mxu0 %v671
    %3380 = vmatpush1.bf16.msra.mxu0 %v670
    %3381 = vmatprep.subr.bf16.mxu0 %v667
    %3382 = vmatpush1.bf16.msra.mxu0 %v666
    %3383 = vmatprep.subr.bf16.mxu0 0
    %3384 = vmatpush2.bf16.msra.mxu0 0
    %3385 = vmatprep.subr.bf16.mxu0 0
    %3386 = vmatpush2.bf16.msra.mxu0 0
    %3387 = vmatprep.subr.bf16.mxu0 0
    %3388 = vmatpush2.bf16.msra.mxu0 0
    %3389 = vmatprep.subr.bf16.mxu0 0
    %3390 = vmatpush2.bf16.msra.mxu0 0
    %3391 = vmatprep.subr.bf16.mxu0 0
    %3392 = vmatpush2.bf16.msra.mxu0 0
    %3393 = vmatprep.subr.bf16.mxu0 0
    %3394 = vmatpush2.bf16.msra.mxu0 0
    %3395 = vmatprep.subr.bf16.mxu0 0
    %3396 = vmatpush2.bf16.msra.mxu0 0
    %3397 = vmatprep.subr.bf16.mxu0 0
    %3398 = vmatpush2.bf16.msra.mxu0 0
    %3399 = vmatprep.mubr.bf16.mxu0 0
    %3400 = vmatmul.mubr.bf16.gmra.mxu0 %v3160
    %v3401 = vpop.f32.mrf.mxu0
    %v3402 = vadd.f32 0.0, %v3401
    %v3403 = vpop.f32.mrf.mxu0
    %v3404 = vadd.f32 0.0, %v3403
    %v3405 = vpop.f32.mrf.mxu0
    %v3406 = vpop.f32.mrf.mxu0
    %3407 = vdwg.mxu0
    %3408 = vmatprep.subr.bf16.mxu0 %v697
    %3409 = vmatpush1.bf16.msra.mxu0 %v696
    %3410 = vmatprep.subr.bf16.mxu0 %v693
    %3411 = vmatpush1.bf16.msra.mxu0 %v692
    %3412 = vmatprep.subr.bf16.mxu0 %v689
    %3413 = vmatpush1.bf16.msra.mxu0 %v688
    %3414 = vmatprep.subr.bf16.mxu0 %v685
    %3415 = vmatpush1.bf16.msra.mxu0 %v684
    %3416 = vmatprep.subr.bf16.mxu0 %v681
    %3417 = vmatpush1.bf16.msra.mxu0 %v680
    %3418 = vmatprep.subr.bf16.mxu0 %v677
    %3419 = vmatpush1.bf16.msra.mxu0 %v676
    %3420 = vmatprep.subr.bf16.mxu0 %v673
    %3421 = vmatpush1.bf16.msra.mxu0 %v672
    %3422 = vmatprep.subr.bf16.mxu0 %v669
    %3423 = vmatpush1.bf16.msra.mxu0 %v668
    %3424 = vmatprep.subr.bf16.mxu0 0
    %3425 = vmatpush2.bf16.msra.mxu0 0
    %3426 = vmatprep.subr.bf16.mxu0 0
    %3427 = vmatpush2.bf16.msra.mxu0 0
    %3428 = vmatprep.subr.bf16.mxu0 0
    %3429 = vmatpush2.bf16.msra.mxu0 0
    %3430 = vmatprep.subr.bf16.mxu0 0
    %3431 = vmatpush2.bf16.msra.mxu0 0
    %3432 = vmatprep.subr.bf16.mxu0 0
    %3433 = vmatpush2.bf16.msra.mxu0 0
    %3434 = vmatprep.subr.bf16.mxu0 0
    %3435 = vmatpush2.bf16.msra.mxu0 0
    %3436 = vmatprep.subr.bf16.mxu0 0
    %3437 = vmatpush2.bf16.msra.mxu0 0
    %3438 = vmatprep.subr.bf16.mxu0 0
    %3439 = vmatpush2.bf16.msra.mxu0 0
    %3440 = vmatprep.mubr.bf16.mxu0 0
    %3441 = vmatmul.mubr.bf16.gmra.mxu0 %v3160
    %v3442 = vpop.f32.mrf.mxu0
    %v3443 = vadd.f32 0.0, %v3442
    %v3444 = vpop.f32.mrf.mxu0
    %v3445 = vadd.f32 0.0, %v3444
    %v3446 = vpop.f32.mrf.mxu0
    %v3447 = vpop.f32.mrf.mxu0
    %3448 = vdwg.mxu0
    %v3449 = vadd.f32 %v3363, %v3402
    %v3450 = vadd.f32 %v3364, %v3404
    %v3451 = vadd.f32 %v3365, %v3443
    %v3452 = vadd.f32 %v3366, %v3445
    %v3453 = vxor.u32 %v3449, 2147483648
    %v3454 = vxor.u32 %v3450, 2147483648
    %v3455 = vxor.u32 %v3451, 2147483648
    %v3456 = vmul.f32 %v3453, 1.442695
    %v3457 = vpow.pop %v3456
    %v3458 = vmul.f32 %v3454, 1.442695
    %v3459 = vpow.pop %v3458
    %v3460 = vmul.f32 %v3455, 1.442695
    %v3461 = vpow.pop %v3460
    %v3462 = vadd.f32 %v3457, 1.0
    %v3463 = vadd.f32 %v3459, 1.0
    %v3464 = vadd.f32 %v3461, 1.0
    %v3465 = vrcp.pop %v3462
    %v3466 = vmul.f32 1.0, %v3465
    %v3467 = vrcp.pop %v3463
    %v3468 = vmul.f32 1.0, %v3467
    %v3469 = vrcp.pop %v3464
    %v3470 = vmul.f32 1.0, %v3469
    %v3471 = vtanh.pop %v3452
    %v3472 = vmul.f32 %v3468, %v3159
    %v3473 = vmul.f32 %v3466, %v3471
    %v3474 = vadd.f32 %v3472, %v3473
    %v3475 = vtanh.pop %v3474
    %v3476 = vmul.f32 %v3470, %v3475
    %v3477 = vsel %vm3361, %v3476, %v3158
    %v3478 = vsel %vm3361, %v3474, %v3159
    %v3479 = vpack.c.bf16 %v3477, %v3477
    %v3480 = vpack.c.bf16 %v3354, %v3354
    %3481 = vmatprep.subr.bf16.mxu0 %v1032
    %3482 = vmatpush1.bf16.msra.mxu0 %v1031
    %3483 = vmatprep.subr.bf16.mxu0 %v1028
    %3484 = vmatpush1.bf16.msra.mxu0 %v1027
    %3485 = vmatprep.subr.bf16.mxu0 %v1024
    %3486 = vmatpush1.bf16.msra.mxu0 %v1023
    %3487 = vmatprep.subr.bf16.mxu0 %v1020
    %3488 = vmatpush1.bf16.msra.mxu0 %v1019
    %3489 = vmatprep.subr.bf16.mxu0 %v1016
    %3490 = vmatpush1.bf16.msra.mxu0 %v1015
    %3491 = vmatprep.subr.bf16.mxu0 %v1012
    %3492 = vmatpush1.bf16.msra.mxu0 %v1011
    %3493 = vmatprep.subr.bf16.mxu0 %v1008
    %3494 = vmatpush1.bf16.msra.mxu0 %v1007
    %3495 = vmatprep.subr.bf16.mxu0 %v1004
    %3496 = vmatpush1.bf16.msra.mxu0 %v1003
    %3497 = vmatprep.subr.bf16.mxu0 0
    %3498 = vmatpush2.bf16.msra.mxu0 0
    %3499 = vmatprep.subr.bf16.mxu0 0
    %3500 = vmatpush2.bf16.msra.mxu0 0
    %3501 = vmatprep.subr.bf16.mxu0 0
    %3502 = vmatpush2.bf16.msra.mxu0 0
    %3503 = vmatprep.subr.bf16.mxu0 0
    %3504 = vmatpush2.bf16.msra.mxu0 0
    %3505 = vmatprep.subr.bf16.mxu0 0
    %3506 = vmatpush2.bf16.msra.mxu0 0
    %3507 = vmatprep.subr.bf16.mxu0 0
    %3508 = vmatpush2.bf16.msra.mxu0 0
    %3509 = vmatprep.subr.bf16.mxu0 0
    %3510 = vmatpush2.bf16.msra.mxu0 0
    %3511 = vmatprep.subr.bf16.mxu0 0
    %3512 = vmatpush2.bf16.msra.mxu0 0
    %3513 = vmatprep.mubr.bf16.mxu0 0
    %3514 = vmatmul.mubr.bf16.gmra.mxu0 %v3480
    %v3515 = vpop.f32.mrf.mxu0
    %v3516 = vadd.f32 0.0, %v3515
    %v3517 = vpop.f32.mrf.mxu0
    %v3518 = vadd.f32 0.0, %v3517
    %v3519 = vpop.f32.mrf.mxu0
    %v3520 = vpop.f32.mrf.mxu0
    %3521 = vdwg.mxu0
    %3522 = vmatprep.subr.bf16.mxu0 %v1034
    %3523 = vmatpush1.bf16.msra.mxu0 %v1033
    %3524 = vmatprep.subr.bf16.mxu0 %v1030
    %3525 = vmatpush1.bf16.msra.mxu0 %v1029
    %3526 = vmatprep.subr.bf16.mxu0 %v1026
    %3527 = vmatpush1.bf16.msra.mxu0 %v1025
    %3528 = vmatprep.subr.bf16.mxu0 %v1022
    %3529 = vmatpush1.bf16.msra.mxu0 %v1021
    %3530 = vmatprep.subr.bf16.mxu0 %v1018
    %3531 = vmatpush1.bf16.msra.mxu0 %v1017
    %3532 = vmatprep.subr.bf16.mxu0 %v1014
    %3533 = vmatpush1.bf16.msra.mxu0 %v1013
    %3534 = vmatprep.subr.bf16.mxu0 %v1010
    %3535 = vmatpush1.bf16.msra.mxu0 %v1009
    %3536 = vmatprep.subr.bf16.mxu0 %v1006
    %3537 = vmatpush1.bf16.msra.mxu0 %v1005
    %3538 = vmatprep.subr.bf16.mxu0 0
    %3539 = vmatpush2.bf16.msra.mxu0 0
    %3540 = vmatprep.subr.bf16.mxu0 0
    %3541 = vmatpush2.bf16.msra.mxu0 0
    %3542 = vmatprep.subr.bf16.mxu0 0
    %3543 = vmatpush2.bf16.msra.mxu0 0
    %3544 = vmatprep.subr.bf16.mxu0 0
    %3545 = vmatpush2.bf16.msra.mxu0 0
    %3546 = vmatprep.subr.bf16.mxu0 0
    %3547 = vmatpush2.bf16.msra.mxu0 0
    %3548 = vmatprep.subr.bf16.mxu0 0
    %3549 = vmatpush2.bf16.msra.mxu0 0
    %3550 = vmatprep.subr.bf16.mxu0 0
    %3551 = vmatpush2.bf16.msra.mxu0 0
    %3552 = vmatprep.subr.bf16.mxu0 0
    %3553 = vmatpush2.bf16.msra.mxu0 0
    %3554 = vmatprep.mubr.bf16.mxu0 0
    %3555 = vmatmul.mubr.bf16.gmra.mxu0 %v3480
    %v3556 = vpop.f32.mrf.mxu0
    %v3557 = vadd.f32 0.0, %v3556
    %v3558 = vpop.f32.mrf.mxu0
    %v3559 = vadd.f32 0.0, %v3558
    %v3560 = vpop.f32.mrf.mxu0
    %v3561 = vpop.f32.mrf.mxu0
    %3562 = vdwg.mxu0
    %3563 = vmatprep.subr.bf16.mxu0 %v1274
    %3564 = vmatpush1.bf16.msra.mxu0 %v1273
    %3565 = vmatprep.subr.bf16.mxu0 %v1270
    %3566 = vmatpush1.bf16.msra.mxu0 %v1269
    %3567 = vmatprep.subr.bf16.mxu0 %v1266
    %3568 = vmatpush1.bf16.msra.mxu0 %v1265
    %3569 = vmatprep.subr.bf16.mxu0 %v1262
    %3570 = vmatpush1.bf16.msra.mxu0 %v1261
    %3571 = vmatprep.subr.bf16.mxu0 %v1258
    %3572 = vmatpush1.bf16.msra.mxu0 %v1257
    %3573 = vmatprep.subr.bf16.mxu0 %v1254
    %3574 = vmatpush1.bf16.msra.mxu0 %v1253
    %3575 = vmatprep.subr.bf16.mxu0 %v1250
    %3576 = vmatpush1.bf16.msra.mxu0 %v1249
    %3577 = vmatprep.subr.bf16.mxu0 %v1246
    %3578 = vmatpush1.bf16.msra.mxu0 %v1245
    %3579 = vmatprep.subr.bf16.mxu0 0
    %3580 = vmatpush2.bf16.msra.mxu0 0
    %3581 = vmatprep.subr.bf16.mxu0 0
    %3582 = vmatpush2.bf16.msra.mxu0 0
    %3583 = vmatprep.subr.bf16.mxu0 0
    %3584 = vmatpush2.bf16.msra.mxu0 0
    %3585 = vmatprep.subr.bf16.mxu0 0
    %3586 = vmatpush2.bf16.msra.mxu0 0
    %3587 = vmatprep.subr.bf16.mxu0 0
    %3588 = vmatpush2.bf16.msra.mxu0 0
    %3589 = vmatprep.subr.bf16.mxu0 0
    %3590 = vmatpush2.bf16.msra.mxu0 0
    %3591 = vmatprep.subr.bf16.mxu0 0
    %3592 = vmatpush2.bf16.msra.mxu0 0
    %3593 = vmatprep.subr.bf16.mxu0 0
    %3594 = vmatpush2.bf16.msra.mxu0 0
    %3595 = vmatprep.mubr.bf16.mxu0 0
    %3596 = vmatmul.mubr.bf16.gmra.mxu0 %v3479
    %v3597 = vpop.f32.mrf.mxu0
    %v3598 = vadd.f32 %v3516, %v3597
    %v3599 = vpop.f32.mrf.mxu0
    %v3600 = vadd.f32 %v3518, %v3599
    %v3601 = vpop.f32.mrf.mxu0
    %v3602 = vpop.f32.mrf.mxu0
    %3603 = vdwg.mxu0
    %3604 = vmatprep.subr.bf16.mxu0 %v1276
    %3605 = vmatpush1.bf16.msra.mxu0 %v1275
    %3606 = vmatprep.subr.bf16.mxu0 %v1272
    %3607 = vmatpush1.bf16.msra.mxu0 %v1271
    %3608 = vmatprep.subr.bf16.mxu0 %v1268
    %3609 = vmatpush1.bf16.msra.mxu0 %v1267
    %3610 = vmatprep.subr.bf16.mxu0 %v1264
    %3611 = vmatpush1.bf16.msra.mxu0 %v1263
    %3612 = vmatprep.subr.bf16.mxu0 %v1260
    %3613 = vmatpush1.bf16.msra.mxu0 %v1259
    %3614 = vmatprep.subr.bf16.mxu0 %v1256
    %3615 = vmatpush1.bf16.msra.mxu0 %v1255
    %3616 = vmatprep.subr.bf16.mxu0 %v1252
    %3617 = vmatpush1.bf16.msra.mxu0 %v1251
    %3618 = vmatprep.subr.bf16.mxu0 %v1248
    %3619 = vmatpush1.bf16.msra.mxu0 %v1247
    %3620 = vmatprep.subr.bf16.mxu0 0
    %3621 = vmatpush2.bf16.msra.mxu0 0
    %3622 = vmatprep.subr.bf16.mxu0 0
    %3623 = vmatpush2.bf16.msra.mxu0 0
    %3624 = vmatprep.subr.bf16.mxu0 0
    %3625 = vmatpush2.bf16.msra.mxu0 0
    %3626 = vmatprep.subr.bf16.mxu0 0
    %3627 = vmatpush2.bf16.msra.mxu0 0
    %3628 = vmatprep.subr.bf16.mxu0 0
    %3629 = vmatpush2.bf16.msra.mxu0 0
    %3630 = vmatprep.subr.bf16.mxu0 0
    %3631 = vmatpush2.bf16.msra.mxu0 0
    %3632 = vmatprep.subr.bf16.mxu0 0
    %3633 = vmatpush2.bf16.msra.mxu0 0
    %3634 = vmatprep.subr.bf16.mxu0 0
    %3635 = vmatpush2.bf16.msra.mxu0 0
    %3636 = vmatprep.mubr.bf16.mxu0 0
    %3637 = vmatmul.mubr.bf16.gmra.mxu0 %v3479
    %v3638 = vpop.f32.mrf.mxu0
    %v3639 = vadd.f32 %v3557, %v3638
    %v3640 = vpop.f32.mrf.mxu0
    %v3641 = vadd.f32 %v3559, %v3640
    %v3642 = vpop.f32.mrf.mxu0
    %v3643 = vpop.f32.mrf.mxu0
    %3644 = vdwg.mxu0
    %v3645 = vadd.f32 %v3598, %v1395
    %v3646 = vadd.f32 %v3600, %v1399
    %v3647 = vadd.f32 %v3639, %v1403
    %v3648 = vadd.f32 %v3641, %v1407
    %v3649 = vxor.u32 %v3645, 2147483648
    %v3650 = vxor.u32 %v3646, 2147483648
    %v3651 = vxor.u32 %v3647, 2147483648
    %v3652 = vmul.f32 %v3649, 1.442695
    %v3653 = vpow.pop %v3652
    %v3654 = vmul.f32 %v3650, 1.442695
    %v3655 = vpow.pop %v3654
    %v3656 = vmul.f32 %v3651, 1.442695
    %v3657 = vpow.pop %v3656
    %v3658 = vadd.f32 %v3653, 1.0
    %v3659 = vadd.f32 %v3655, 1.0
    %v3660 = vadd.f32 %v3657, 1.0
    %v3661 = vrcp.pop %v3658
    %v3662 = vmul.f32 1.0, %v3661
    %v3663 = vrcp.pop %v3659
    %v3664 = vmul.f32 1.0, %v3663
    %v3665 = vrcp.pop %v3660
    %v3666 = vmul.f32 1.0, %v3665
    %v3667 = vtanh.pop %v3648
    %v3668 = vmul.f32 %v3664, %v3355
    %v3669 = vmul.f32 %v3662, %v3667
    %v3670 = vadd.f32 %v3668, %v3669
    %v3671 = vtanh.pop %v3670
    %v3672 = vmul.f32 %v3666, %v3671
    %v3673 = vsel %vm3361, %v3672, %v3354
    %v3674 = vsel %vm3361, %v3670, %v3355
    %3675 = vst [vmem:[#allocation12] sm:$0xff] %v3477
    %3676 = vst [vmem:[#allocation13] sm:$0xff] %v3478
    %s3677 = scalar_lea.vmem [#allocation12], 8
    %3678 = vst [vmem:[%s3677] sm:$0xff] %v3673
    %s3679 = scalar_lea.vmem [#allocation13], 8
    %3680 = vst [vmem:[%s3679] sm:$0xff] %v3674
    // Predicated region
    $region54: #{tpu_custom_call.1} parent=1 // pred_check
      _
    $region55: #{tpu_custom_call.1} parent=1 // pred_check_branch
      %3682 = sbr.rel (0) target = $region57
    $region56: #{tpu_custom_call.1} parent=1 // pred_region
      %s3684 = ssub.s32 256, 256
      %3685 = vsyncadd [#allocation5], %s3684
      %s3686 = sshll.u32 [#allocation12], 4
      %s3687 = int_to_ptr.vmem [resolvable:$true] %s3686
      %3692 = dma.vmem_to_hbm [thread:$0]  %s3687, 256, %s8, [#allocation5], 128, 128, 8
    $region57: #{tpu_custom_call.1} parent=1 // pred_fallthru
      _
    // Predicated region
    $region58: #{tpu_custom_call.1} parent=1 // pred_check
      _
    $region59: #{tpu_custom_call.1} parent=1 // pred_check_branch
      %3694 = sbr.rel (0) target = $region61
    $region60: #{tpu_custom_call.1} parent=1 // pred_region
      %s3696 = ssub.s32 256, 256
      %3697 = vsyncadd [#allocation14], %s3696
      %s3698 = sshll.u32 [#allocation13], 4
      %s3699 = int_to_ptr.vmem [resolvable:$true] %s3698
      %3704 = dma.vmem_to_hbm [thread:$0]  %s3699, 256, %s9, [#allocation14], 128, 128, 8
    $region61: #{tpu_custom_call.1} parent=1 // pred_fallthru
      _
    // Predicated region
    $region62: #{tpu_custom_call.1} parent=1 // pred_check
      _
    $region63: #{tpu_custom_call.1} parent=1 // pred_check_branch
      %3706 = sbr.rel (0) target = $region65
    $region64: #{tpu_custom_call.1} parent=1 // pred_region
      %3707 = dma.done [#allocation5], 256
    $region65: #{tpu_custom_call.1} parent=1 // pred_fallthru
      _
    // Predicated region
    $region66: #{tpu_custom_call.1} parent=1 // pred_check
      _
    $region67: #{tpu_custom_call.1} parent=1 // pred_check_branch
      %3709 = sbr.rel (0) target = $region69
    $region68: #{tpu_custom_call.1} parent=1 // pred_region
      %3710 = dma.done [#allocation14], 256
    $region69: #{tpu_custom_call.1} parent=1 // pred_fallthru
      _
    %3711 = vsyncpa [#allocation4], 1
    %3712 = vsyncpa [#allocation7], 1
    %3713 = vsyncpa [#allocation10], 1
    %3714 = vsyncpa [#allocation5], 1
    %3715 = vsyncpa [#allocation14], 1

</llo_original>
